<compile_context>
chip_gen: v6e
topology: v6e:2x2x1
jax: 0.10.0
libtpu: 0.0.40
codegen_flags: <defaults>
</compile_context>

<pallas_src>
import functools

import jax
import jax.numpy as jnp
from jax.experimental import pallas as pl
from jax.experimental.pallas import tpu as pltpu


# ----------------------------- Pallas kernel ------------------------------- #

def _round_up(x, m):
    return (x + m - 1) // m * m


def _matmul_bias_act_kernel(x_ref, w_ref, b_ref, o_ref, acc_ref, *, act):
    k = pl.program_id(2)

    @pl.when(k == 0)
    def _():
        acc_ref[...] = jnp.zeros_like(acc_ref)

    acc_ref[...] += jnp.dot(x_ref[...], w_ref[...],
                            preferred_element_type=jnp.float32)

    @pl.when(k == pl.num_programs(2) - 1)
    def _():
        acc = acc_ref[...] + b_ref[...]          # bias + activation once, in f32
        if act == "relu":
            acc = jnp.maximum(acc, 0.0)
        elif act == "sigmoid":
            acc = jax.nn.sigmoid(acc)
        o_ref[...] = acc.astype(o_ref.dtype)


def pallas_matmul_bias_act(patches, w, b, act):
    """activation((M,K) @ (K,N) + b): tiled, pipelined, bf16 MXU / f32 accumulate."""
    M, K = patches.shape
    K2, N = w.shape
    assert K == K2

    # Tile sizes: tn=128 works on all generations (v5e MXU is 128-wide;
    # v6e/v7x simply take two N tiles for the 256-wide layer). tk=256 keeps
    # the K-reduction pipelined with few grid steps at these sizes.
    tn = 128
    tk = 256
    tm = 128 if M >= 128 else _round_up(M, 8)
    Mp = _round_up(M, tm)
    Kp = _round_up(K, tk)
    Np = _round_up(N, tn)

    # Zero-pad: zeros along K contribute nothing; padded M rows / N cols are
    # sliced off below. bf16 inputs, f32 bias.
    xp = jnp.pad(patches.astype(jnp.bfloat16), ((0, Mp - M), (0, Kp - K)))
    wp = jnp.pad(w.astype(jnp.bfloat16), ((0, Kp - K), (0, Np - N)))
    bp = jnp.pad(b.astype(jnp.float32), (0, Np - N)).reshape(1, Np)

    grid = (Mp // tm, Np // tn, Kp // tk)
    out = pl.pallas_call(
        functools.partial(_matmul_bias_act_kernel, act=act),
        out_shape=jax.ShapeDtypeStruct((Mp, Np), jnp.float32),
        grid_spec=pltpu.PrefetchScalarGridSpec(
            num_scalar_prefetch=0,
            grid=grid,
            in_specs=[
                pl.BlockSpec((tm, tk), lambda i, j, k: (i, k)),
                pl.BlockSpec((tk, tn), lambda i, j, k: (k, j)),
                pl.BlockSpec((1, tn), lambda i, j, k: (0, j)),
            ],
            out_specs=pl.BlockSpec((tm, tn), lambda i, j, k: (i, j)),
            scratch_shapes=[pltpu.VMEM((tm, tn), jnp.float32)],
        ),
        compiler_params=pltpu.CompilerParams(
            dimension_semantics=("parallel", "parallel", "arbitrary")),
    )(xp, wp, bp)
    return out[:M, :N]


# ------------------------------ JAX glue ------------------------------------ #

def _im2col(x_nhwc, k, stride, pad):
    """Extract k*k patches -> (N*Ho*Wo, k*k*C), column order [kh, kw, cin].

    pad = ((pad_top, pad_bottom), (pad_left, pad_right)).
    """
    nb, h, w, c = x_nhwc.shape
    (pt, pb), (pleft, pright) = pad
    xp = jnp.pad(x_nhwc, ((0, 0), (pt, pb), (pleft, pright), (0, 0)))
    ho = (h + pt + pb - k) // stride + 1
    wo = (w + pleft + pright - k) // stride + 1
    cols = []
    for kh in range(k):
        for kw in range(k):
            cols.append(
                xp[:,
                   kh:kh + (ho - 1) * stride + 1:stride,
                   kw:kw + (wo - 1) * stride + 1:stride, :])
    patches = jnp.stack(cols, axis=3)            # (N, Ho, Wo, k*k, C)
    return patches.reshape(nb * ho * wo, k * k * c), ho, wo


def conv2d_nhwc(x_nhwc, w_oihw, b, stride, pad, act):
    """nn.Conv2d semantics, NHWC activations."""
    nb, _, _, cin = x_nhwc.shape
    cout, _, k, _ = w_oihw.shape
    patches, ho, wo = _im2col(x_nhwc, k, stride, ((pad, pad), (pad, pad)))
    w_mat = jnp.transpose(w_oihw, (2, 3, 1, 0)).reshape(k * k * cin, cout)
    out = pallas_matmul_bias_act(patches, w_mat, b, act)
    return out.reshape(nb, ho, wo, cout)


def conv_transpose2d_nhwc(x_nhwc, w_iohw, b, stride, pad, act):
    """nn.ConvTranspose2d (weight (Cin,Cout,4,4), stride=2, padding=1) as a
    sub-pixel conv: 4 stride-1 2x2 convs on the undilated input, interleaved.

    For output parity ry (rows): oy = 2*qy + ry gets kernel taps
      ry=0 -> (kh=3 @ iy=qy-1, kh=1 @ iy=qy)   (pad top by 1)
      ry=1 -> (kh=2 @ iy=qy,   kh=0 @ iy=qy+1) (pad bottom by 1)
    and identically for columns.
    """
    assert stride == 2 and pad == 1 and w_iohw.shape[2] == 4
    nb, h, w, cin = x_nhwc.shape
    cout = w_iohw.shape[1]

    subs = []
    for ry in (0, 1):
        row = []
        for rx in (0, 1):
            pad_h = (1, 0) if ry == 0 else (0, 1)
            pad_w = (1, 0) if rx == 0 else (0, 1)
            patches, ho, wo = _im2col(x_nhwc, 2, 1, (pad_h, pad_w))
            # taps along kh: ry=0 -> [3,1]; ry=1 -> [2,0]  (slice 3-ry::-2)
            w_sub = w_iohw[:, :, 3 - ry::-2, :][:, :, :, 3 - rx::-2]  # (Ci,Co,2,2)
            w_mat = jnp.transpose(w_sub, (2, 3, 0, 1)).reshape(4 * cin, cout)
            out = pallas_matmul_bias_act(patches, w_mat, b, act)
            row.append(out.reshape(nb, ho, wo, cout))
        subs.append(row)

    # Interleave: out[:, 2*qy+ry, 2*qx+rx, :] = subs[ry][rx][:, qy, qx, :]
    grid = jnp.stack([jnp.stack(r, axis=3) for r in subs], axis=2)  # (N,H,2,W,2,C)
    return grid.reshape(nb, 2 * h, 2 * w, cout)


# --------------------------- model definition ------------------------------- #

def init_params(key):
    """Deterministic parameter init (kaiming-uniform-like bounds)."""
    def conv_init(key, cout, cin, k):
        k1, k2 = jax.random.split(key)
        bound = 1.0 / jnp.sqrt(cin * k * k)
        w = jax.random.uniform(k1, (cout, cin, k, k), jnp.float32, -bound, bound)
        b = jax.random.uniform(k2, (cout,), jnp.float32, -bound, bound)
        return w, b

    def convt_init(key, cin, cout, k):
        k1, k2 = jax.random.split(key)
        bound = 1.0 / jnp.sqrt(cin * k * k)
        w = jax.random.uniform(k1, (cin, cout, k, k), jnp.float32, -bound, bound)
        b = jax.random.uniform(k2, (cout,), jnp.float32, -bound, bound)
        return w, b

    keys = jax.random.split(key, 6)
    p = {}
    p["enc1_w"], p["enc1_b"] = conv_init(keys[0], 64, 3, 3)      # Conv2d(3,64,3,s1,p1)
    p["enc2_w"], p["enc2_b"] = conv_init(keys[1], 128, 64, 3)    # Conv2d(64,128,3,s2,p1)
    p["enc3_w"], p["enc3_b"] = conv_init(keys[2], 256, 128, 3)   # Conv2d(128,256,3,s2,p1)
    p["dec1_w"], p["dec1_b"] = convt_init(keys[3], 256, 128, 4)  # ConvT(256,128,4,s2,p1)
    p["dec2_w"], p["dec2_b"] = convt_init(keys[4], 128, 64, 4)   # ConvT(128,64,4,s2,p1)
    p["dec3_w"], p["dec3_b"] = conv_init(keys[5], 3, 64, 3)      # Conv2d(64,3,3,s1,p1)
    return p


def simple_diffusion_forward(x_nchw, params):
    x = jnp.transpose(x_nchw, (0, 2, 3, 1))          # NCHW -> NHWC (once)
    # encoder
    x = conv2d_nhwc(x, params["enc1_w"], params["enc1_b"], 1, 1, "relu")
    x = conv2d_nhwc(x, params["enc2_w"], params["enc2_b"], 2, 1, "relu")
    x = conv2d_nhwc(x, params["enc3_w"], params["enc3_b"], 2, 1, "relu")
    # decoder
    x = conv_transpose2d_nhwc(x, params["dec1_w"], params["dec1_b"], 2, 1, "relu")
    x = conv_transpose2d_nhwc(x, params["dec2_w"], params["dec2_b"], 2, 1, "relu")
    x = conv2d_nhwc(x, params["dec3_w"], params["dec3_b"], 1, 1, "sigmoid")
    return jnp.transpose(x, (0, 3, 1, 2))            # NHWC -> NCHW (once)


# ------------------------- pure-JAX reference (f32) ------------------------- #

def _ref_conv(x, w_oihw, b, stride, pad):
    y = jax.lax.conv_general_dilated(
        x, w_oihw, window_strides=(stride, stride),
        padding=((pad, pad), (pad, pad)),
        dimension_numbers=("NCHW", "OIHW", "NCHW"))
    return y + b.reshape(1, -1, 1, 1)


def _ref_convt(x, w_iohw, b, stride, pad):
    k = w_iohw.shape[2]
    w_oihw = jnp.transpose(w_iohw[:, :, ::-1, ::-1], (1, 0, 2, 3))
    y = jax.lax.conv_general_dilated(
        x, w_oihw, window_strides=(1, 1),
        padding=((k - 1 - pad, k - 1 - pad),) * 2,
        lhs_dilation=(stride, stride),
        dimension_numbers=("NCHW", "OIHW", "NCHW"))
    return y + b.reshape(1, -1, 1, 1)


def reference_forward(x, p):
    x = jax.nn.relu(_ref_conv(x, p["enc1_w"], p["enc1_b"], 1, 1))
    x = jax.nn.relu(_ref_conv(x, p["enc2_w"], p["enc2_b"], 2, 1))
    x = jax.nn.relu(_ref_conv(x, p["enc3_w"], p["enc3_b"], 2, 1))
    x = jax.nn.relu(_ref_convt(x, p["dec1_w"], p["dec1_b"], 2, 1))
    x = jax.nn.relu(_ref_convt(x, p["dec2_w"], p["dec2_b"], 2, 1))
    x = jax.nn.sigmoid(_ref_conv(x, p["dec3_w"], p["dec3_b"], 1, 1))
    return x


if __name__ == "__main__":
    key = jax.random.PRNGKey(0)
    pkey, xkey = jax.random.split(key)
    params = init_params(pkey)

    # NCHW input, matching the PyTorch module (3 input channels).
    x = jax.random.normal(xkey, (2, 3, 16, 16), jnp.float32)

    fwd = jax.jit(simple_diffusion_forward)
    y = fwd(x, params)
    y = jax.block_until_ready(y)

    assert y.shape == (2, 3, 16, 16), y.shape
    assert bool(jnp.all(jnp.isfinite(y)))
    assert bool(jnp.all((y >= 0.0) & (y <= 1.0)))   # sigmoid output range

    # Numerical check vs. an f32 XLA reference (bf16 MXU inputs -> loose tol).
    y_ref = jax.jit(reference_forward)(x, params)
    assert bool(jnp.max(jnp.abs(y - y_ref)) < 5e-2)

    print("KERNEL_OK")
</pallas_src>

<mosaic_0001>
module attributes {stable_mosaic.version = 11 : i64} {
  func.func @_matmul_bias_act_kernel(%arg0: i32, %arg1: i32, %arg2: i32, %arg3: memref<128x256xbf16, #tpu.memory_space<vmem>>, %arg4: memref<256x128xbf16, #tpu.memory_space<vmem>>, %arg5: memref<1x128xf32, #tpu.memory_space<vmem>>, %arg6: memref<128x128xf32, #tpu.memory_space<vmem>>, %arg7: memref<128x128xf32, #tpu.memory_space<vmem>>) attributes {dimension_semantics = [#tpu.dimension_semantics<parallel>, #tpu.dimension_semantics<parallel>, #tpu.dimension_semantics<arbitrary>], iteration_bounds = array<i64: 4, 1, 1>, scalar_prefetch = 0 : i64, scratch_operands = 1 : i64, tpu.core_type = #tpu.core_type<tc>, window_params = [{transform_indices = @transform_0, window_bounds = array<i64: 128, 256>}, {transform_indices = @transform_1, window_bounds = array<i64: 256, 128>}, {transform_indices = @transform_2, window_bounds = array<i64: 1, 128>}, {transform_indices = @transform_3, window_bounds = array<i64: 128, 128>}]} {
    %c0_i32 = arith.constant 0 : i32
    %0 = arith.cmpi eq, %arg2, %c0_i32 : i32
    %1 = arith.extui %0 : i1 to i32
    %c0_i32_0 = arith.constant 0 : i32
    %2 = arith.cmpi ne, %1, %c0_i32_0 : i32
    scf.if %2 {
      %cst_10 = arith.constant 0.000000e+00 : f32
      %12 = vector.broadcast %cst_10 : f32 to vector<128x128xf32>
      %c0_11 = arith.constant 0 : index
      %c0_12 = arith.constant 0 : index
      %13 = vector.load %arg7[%c0_11, %c0_12] : memref<128x128xf32, #tpu.memory_space<vmem>>, vector<128x128xf32>
      tpu.vector_store %arg7[%c0_11, %c0_12], %12 {strides = array<i32>} : memref<128x128xf32, #tpu.memory_space<vmem>>, vector<128x128xf32>,
    } else {
    }
    %c0 = arith.constant 0 : index
    %c0_1 = arith.constant 0 : index
    %3 = vector.load %arg7[%c0, %c0_1] : memref<128x128xf32, #tpu.memory_space<vmem>>, vector<128x128xf32>
    %c0_2 = arith.constant 0 : index
    %c0_3 = arith.constant 0 : index
    %4 = vector.load %arg3[%c0_2, %c0_3] : memref<128x256xbf16, #tpu.memory_space<vmem>>, vector<128x256xbf16>
    %c0_4 = arith.constant 0 : index
    %c0_5 = arith.constant 0 : index
    %5 = vector.load %arg4[%c0_4, %c0_5] : memref<256x128xbf16, #tpu.memory_space<vmem>>, vector<256x128xbf16>
    %cst = arith.constant dense<0.000000e+00> : vector<128x128xf32>
    %6 = tpu.matmul %4, %5, %cst {dimension_numbers = #tpu.dot_dimension_numbers<[1], [0], [0], [1], [0, 0, 1, 1], [], []>} : vector<128x256xbf16>, vector<256x128xbf16>, vector<128x128xf32> -> vector<128x128xf32>
    %7 = arith.addf %3, %6 : vector<128x128xf32>
    %c0_6 = arith.constant 0 : index
    %c0_7 = arith.constant 0 : index
    %8 = vector.load %arg7[%c0_6, %c0_7] : memref<128x128xf32, #tpu.memory_space<vmem>>, vector<128x128xf32>
    tpu.vector_store %arg7[%c0_6, %c0_7], %7 {strides = array<i32>} : memref<128x128xf32, #tpu.memory_space<vmem>>, vector<128x128xf32>,
    %c0_i32_8 = arith.constant 0 : i32
    %9 = arith.cmpi eq, %arg2, %c0_i32_8 : i32
    %10 = arith.extui %9 : i1 to i32
    %c0_i32_9 = arith.constant 0 : i32
    %11 = arith.cmpi ne, %10, %c0_i32_9 : i32
    scf.if %11 {
      %c0_10 = arith.constant 0 : index
      %c0_11 = arith.constant 0 : index
      %12 = vector.load %arg7[%c0_10, %c0_11] : memref<128x128xf32, #tpu.memory_space<vmem>>, vector<128x128xf32>
      %c0_12 = arith.constant 0 : index
      %c0_13 = arith.constant 0 : index
      %13 = vector.load %arg5[%c0_12, %c0_13] : memref<1x128xf32, #tpu.memory_space<vmem>>, vector<1x128xf32>
      %14 = vector.broadcast %13 : vector<1x128xf32> to vector<128x128xf32>
      %15 = arith.addf %12, %14 : vector<128x128xf32>
      %cst_14 = arith.constant 0.000000e+00 : f32
      %16 = vector.broadcast %cst_14 : f32 to vector<128x128xf32>
      %17 = arith.maximumf %15, %16 : vector<128x128xf32>
      %c0_15 = arith.constant 0 : index
      %c0_16 = arith.constant 0 : index
      %18 = vector.load %arg6[%c0_15, %c0_16] : memref<128x128xf32, #tpu.memory_space<vmem>>, vector<128x128xf32>
      tpu.vector_store %arg6[%c0_15, %c0_16], %17 {strides = array<i32>} : memref<128x128xf32, #tpu.memory_space<vmem>>, vector<128x128xf32>,
    } else {
    }
    return
  }
  func.func @transform_0(%arg0: i32, %arg1: i32, %arg2: i32) -> (i32, i32) {
    %c0_i32 = arith.constant 0 : i32
    return %arg0, %arg2 : i32, i32
  }
  func.func @transform_1(%arg0: i32, %arg1: i32, %arg2: i32) -> (i32, i32) {
    %c0_i32 = arith.constant 0 : i32
    return %arg2, %arg1 : i32, i32
  }
  func.func @transform_2(%arg0: i32, %arg1: i32, %arg2: i32) -> (i32, i32) {
    %c0_i32 = arith.constant 0 : i32
    %c0_i32_0 = arith.constant 0 : i32
    return %c0_i32, %arg1 : i32, i32
  }
  func.func @transform_3(%arg0: i32, %arg1: i32, %arg2: i32) -> (i32, i32) {
    %c0_i32 = arith.constant 0 : i32
    return %arg0, %arg1 : i32, i32
  }
}

module attributes {stable_mosaic.version = 11 : i64} {
  func.func @_matmul_bias_act_kernel(%arg0: i32, %arg1: i32, %arg2: i32, %arg3: memref<128x256xbf16, #tpu.memory_space<vmem>>, %arg4: memref<256x128xbf16, #tpu.memory_space<vmem>>, %arg5: memref<1x128xf32, #tpu.memory_space<vmem>>, %arg6: memref<128x128xf32, #tpu.memory_space<vmem>>, %arg7: memref<128x128xf32, #tpu.memory_space<vmem>>) attributes {dimension_semantics = [#tpu.dimension_semantics<parallel>, #tpu.dimension_semantics<parallel>, #tpu.dimension_semantics<arbitrary>], iteration_bounds = array<i64: 1, 1, 3>, scalar_prefetch = 0 : i64, scratch_operands = 1 : i64, tpu.core_type = #tpu.core_type<tc>, window_params = [{transform_indices = @transform_0, window_bounds = array<i64: 128, 256>}, {transform_indices = @transform_1, window_bounds = array<i64: 256, 128>}, {transform_indices = @transform_2, window_bounds = array<i64: 1, 128>}, {transform_indices = @transform_3, window_bounds = array<i64: 128, 128>}]} {
    %c0_i32 = arith.constant 0 : i32
    %0 = arith.cmpi eq, %arg2, %c0_i32 : i32
    %1 = arith.extui %0 : i1 to i32
    %c0_i32_0 = arith.constant 0 : i32
    %2 = arith.cmpi ne, %1, %c0_i32_0 : i32
    scf.if %2 {
      %cst_9 = arith.constant 0.000000e+00 : f32
      %12 = vector.broadcast %cst_9 : f32 to vector<128x128xf32>
      %c0_10 = arith.constant 0 : index
      %c0_11 = arith.constant 0 : index
      %13 = vector.load %arg7[%c0_10, %c0_11] : memref<128x128xf32, #tpu.memory_space<vmem>>, vector<128x128xf32>
      tpu.vector_store %arg7[%c0_10, %c0_11], %12 {strides = array<i32>} : memref<128x128xf32, #tpu.memory_space<vmem>>, vector<128x128xf32>,
    } else {
    }
    %c0 = arith.constant 0 : index
    %c0_1 = arith.constant 0 : index
    %3 = vector.load %arg7[%c0, %c0_1] : memref<128x128xf32, #tpu.memory_space<vmem>>, vector<128x128xf32>
    %c0_2 = arith.constant 0 : index
    %c0_3 = arith.constant 0 : index
    %4 = vector.load %arg3[%c0_2, %c0_3] : memref<128x256xbf16, #tpu.memory_space<vmem>>, vector<128x256xbf16>
    %c0_4 = arith.constant 0 : index
    %c0_5 = arith.constant 0 : index
    %5 = vector.load %arg4[%c0_4, %c0_5] : memref<256x128xbf16, #tpu.memory_space<vmem>>, vector<256x128xbf16>
    %cst = arith.constant dense<0.000000e+00> : vector<128x128xf32>
    %6 = tpu.matmul %4, %5, %cst {dimension_numbers = #tpu.dot_dimension_numbers<[1], [0], [0], [1], [0, 0, 1, 1], [], []>} : vector<128x256xbf16>, vector<256x128xbf16>, vector<128x128xf32> -> vector<128x128xf32>
    %7 = arith.addf %3, %6 : vector<128x128xf32>
    %c0_6 = arith.constant 0 : index
    %c0_7 = arith.constant 0 : index
    %8 = vector.load %arg7[%c0_6, %c0_7] : memref<128x128xf32, #tpu.memory_space<vmem>>, vector<128x128xf32>
    tpu.vector_store %arg7[%c0_6, %c0_7], %7 {strides = array<i32>} : memref<128x128xf32, #tpu.memory_space<vmem>>, vector<128x128xf32>,
    %c2_i32 = arith.constant 2 : i32
    %9 = arith.cmpi eq, %arg2, %c2_i32 : i32
    %10 = arith.extui %9 : i1 to i32
    %c0_i32_8 = arith.constant 0 : i32
    %11 = arith.cmpi ne, %10, %c0_i32_8 : i32
    scf.if %11 {
      %c0_9 = arith.constant 0 : index
      %c0_10 = arith.constant 0 : index
      %12 = vector.load %arg7[%c0_9, %c0_10] : memref<128x128xf32, #tpu.memory_space<vmem>>, vector<128x128xf32>
      %c0_11 = arith.constant 0 : index
      %c0_12 = arith.constant 0 : index
      %13 = vector.load %arg5[%c0_11, %c0_12] : memref<1x128xf32, #tpu.memory_space<vmem>>, vector<1x128xf32>
      %14 = vector.broadcast %13 : vector<1x128xf32> to vector<128x128xf32>
      %15 = arith.addf %12, %14 : vector<128x128xf32>
      %cst_13 = arith.constant 0.000000e+00 : f32
      %16 = vector.broadcast %cst_13 : f32 to vector<128x128xf32>
      %17 = arith.maximumf %15, %16 : vector<128x128xf32>
      %c0_14 = arith.constant 0 : index
      %c0_15 = arith.constant 0 : index
      %18 = vector.load %arg6[%c0_14, %c0_15] : memref<128x128xf32, #tpu.memory_space<vmem>>, vector<128x128xf32>
      tpu.vector_store %arg6[%c0_14, %c0_15], %17 {strides = array<i32>} : memref<128x128xf32, #tpu.memory_space<vmem>>, vector<128x128xf32>,
    } else {
    }
    return
  }
  func.func @transform_0(%arg0: i32, %arg1: i32, %arg2: i32) -> (i32, i32) {
    %c0_i32 = arith.constant 0 : i32
    return %arg0, %arg2 : i32, i32
  }
  func.func @transform_1(%arg0: i32, %arg1: i32, %arg2: i32) -> (i32, i32) {
    %c0_i32 = arith.constant 0 : i32
    return %arg2, %arg1 : i32, i32
  }
  func.func @transform_2(%arg0: i32, %arg1: i32, %arg2: i32) -> (i32, i32) {
    %c0_i32 = arith.constant 0 : i32
    %c0_i32_0 = arith.constant 0 : i32
    return %c0_i32, %arg1 : i32, i32
  }
  func.func @transform_3(%arg0: i32, %arg1: i32, %arg2: i32) -> (i32, i32) {
    %c0_i32 = arith.constant 0 : i32
    return %arg0, %arg1 : i32, i32
  }
}

module attributes {stable_mosaic.version = 11 : i64} {
  func.func @_matmul_bias_act_kernel(%arg0: i32, %arg1: i32, %arg2: i32, %arg3: memref<32x256xbf16, #tpu.memory_space<vmem>>, %arg4: memref<256x128xbf16, #tpu.memory_space<vmem>>, %arg5: memref<1x128xf32, #tpu.memory_space<vmem>>, %arg6: memref<32x128xf32, #tpu.memory_space<vmem>>, %arg7: memref<32x128xf32, #tpu.memory_space<vmem>>) attributes {dimension_semantics = [#tpu.dimension_semantics<parallel>, #tpu.dimension_semantics<parallel>, #tpu.dimension_semantics<arbitrary>], iteration_bounds = array<i64: 1, 2, 5>, scalar_prefetch = 0 : i64, scratch_operands = 1 : i64, tpu.core_type = #tpu.core_type<tc>, window_params = [{transform_indices = @transform_0, window_bounds = array<i64: 32, 256>}, {transform_indices = @transform_1, window_bounds = array<i64: 256, 128>}, {transform_indices = @transform_2, window_bounds = array<i64: 1, 128>}, {transform_indices = @transform_3, window_bounds = array<i64: 32, 128>}]} {
    %c0_i32 = arith.constant 0 : i32
    %0 = arith.cmpi eq, %arg2, %c0_i32 : i32
    %1 = arith.extui %0 : i1 to i32
    %c0_i32_0 = arith.constant 0 : i32
    %2 = arith.cmpi ne, %1, %c0_i32_0 : i32
    scf.if %2 {
      %cst_9 = arith.constant 0.000000e+00 : f32
      %12 = vector.broadcast %cst_9 : f32 to vector<32x128xf32>
      %c0_10 = arith.constant 0 : index
      %c0_11 = arith.constant 0 : index
      %13 = vector.load %arg7[%c0_10, %c0_11] : memref<32x128xf32, #tpu.memory_space<vmem>>, vector<32x128xf32>
      tpu.vector_store %arg7[%c0_10, %c0_11], %12 {strides = array<i32>} : memref<32x128xf32, #tpu.memory_space<vmem>>, vector<32x128xf32>,
    } else {
    }
    %c0 = arith.constant 0 : index
    %c0_1 = arith.constant 0 : index
    %3 = vector.load %arg7[%c0, %c0_1] : memref<32x128xf32, #tpu.memory_space<vmem>>, vector<32x128xf32>
    %c0_2 = arith.constant 0 : index
    %c0_3 = arith.constant 0 : index
    %4 = vector.load %arg3[%c0_2, %c0_3] : memref<32x256xbf16, #tpu.memory_space<vmem>>, vector<32x256xbf16>
    %c0_4 = arith.constant 0 : index
    %c0_5 = arith.constant 0 : index
    %5 = vector.load %arg4[%c0_4, %c0_5] : memref<256x128xbf16, #tpu.memory_space<vmem>>, vector<256x128xbf16>
    %cst = arith.constant dense<0.000000e+00> : vector<32x128xf32>
    %6 = tpu.matmul %4, %5, %cst {dimension_numbers = #tpu.dot_dimension_numbers<[1], [0], [0], [1], [0, 0, 1, 1], [], []>} : vector<32x256xbf16>, vector<256x128xbf16>, vector<32x128xf32> -> vector<32x128xf32>
    %7 = arith.addf %3, %6 : vector<32x128xf32>
    %c0_6 = arith.constant 0 : index
    %c0_7 = arith.constant 0 : index
    %8 = vector.load %arg7[%c0_6, %c0_7] : memref<32x128xf32, #tpu.memory_space<vmem>>, vector<32x128xf32>
    tpu.vector_store %arg7[%c0_6, %c0_7], %7 {strides = array<i32>} : memref<32x128xf32, #tpu.memory_space<vmem>>, vector<32x128xf32>,
    %c4_i32 = arith.constant 4 : i32
    %9 = arith.cmpi eq, %arg2, %c4_i32 : i32
    %10 = arith.extui %9 : i1 to i32
    %c0_i32_8 = arith.constant 0 : i32
    %11 = arith.cmpi ne, %10, %c0_i32_8 : i32
    scf.if %11 {
      %c0_9 = arith.constant 0 : index
      %c0_10 = arith.constant 0 : index
      %12 = vector.load %arg7[%c0_9, %c0_10] : memref<32x128xf32, #tpu.memory_space<vmem>>, vector<32x128xf32>
      %c0_11 = arith.constant 0 : index
      %c0_12 = arith.constant 0 : index
      %13 = vector.load %arg5[%c0_11, %c0_12] : memref<1x128xf32, #tpu.memory_space<vmem>>, vector<1x128xf32>
      %14 = vector.broadcast %13 : vector<1x128xf32> to vector<32x128xf32>
      %15 = arith.addf %12, %14 : vector<32x128xf32>
      %cst_13 = arith.constant 0.000000e+00 : f32
      %16 = vector.broadcast %cst_13 : f32 to vector<32x128xf32>
      %17 = arith.maximumf %15, %16 : vector<32x128xf32>
      %c0_14 = arith.constant 0 : index
      %c0_15 = arith.constant 0 : index
      %18 = vector.load %arg6[%c0_14, %c0_15] : memref<32x128xf32, #tpu.memory_space<vmem>>, vector<32x128xf32>
      tpu.vector_store %arg6[%c0_14, %c0_15], %17 {strides = array<i32>} : memref<32x128xf32, #tpu.memory_space<vmem>>, vector<32x128xf32>,
    } else {
    }
    return
  }
  func.func @transform_0(%arg0: i32, %arg1: i32, %arg2: i32) -> (i32, i32) {
    %c0_i32 = arith.constant 0 : i32
    return %arg0, %arg2 : i32, i32
  }
  func.func @transform_1(%arg0: i32, %arg1: i32, %arg2: i32) -> (i32, i32) {
    %c0_i32 = arith.constant 0 : i32
    return %arg2, %arg1 : i32, i32
  }
  func.func @transform_2(%arg0: i32, %arg1: i32, %arg2: i32) -> (i32, i32) {
    %c0_i32 = arith.constant 0 : i32
    %c0_i32_0 = arith.constant 0 : i32
    return %c0_i32, %arg1 : i32, i32
  }
  func.func @transform_3(%arg0: i32, %arg1: i32, %arg2: i32) -> (i32, i32) {
    %c0_i32 = arith.constant 0 : i32
    return %arg0, %arg1 : i32, i32
  }
}

module attributes {stable_mosaic.version = 11 : i64} {
  func.func @_matmul_bias_act_kernel(%arg0: i32, %arg1: i32, %arg2: i32, %arg3: memref<32x256xbf16, #tpu.memory_space<vmem>>, %arg4: memref<256x128xbf16, #tpu.memory_space<vmem>>, %arg5: memref<1x128xf32, #tpu.memory_space<vmem>>, %arg6: memref<32x128xf32, #tpu.memory_space<vmem>>, %arg7: memref<32x128xf32, #tpu.memory_space<vmem>>) attributes {dimension_semantics = [#tpu.dimension_semantics<parallel>, #tpu.dimension_semantics<parallel>, #tpu.dimension_semantics<arbitrary>], iteration_bounds = array<i64: 1, 1, 4>, scalar_prefetch = 0 : i64, scratch_operands = 1 : i64, tpu.core_type = #tpu.core_type<tc>, window_params = [{transform_indices = @transform_0, window_bounds = array<i64: 32, 256>}, {transform_indices = @transform_1, window_bounds = array<i64: 256, 128>}, {transform_indices = @transform_2, window_bounds = array<i64: 1, 128>}, {transform_indices = @transform_3, window_bounds = array<i64: 32, 128>}]} {
    %c0_i32 = arith.constant 0 : i32
    %0 = arith.cmpi eq, %arg2, %c0_i32 : i32
    %1 = arith.extui %0 : i1 to i32
    %c0_i32_0 = arith.constant 0 : i32
    %2 = arith.cmpi ne, %1, %c0_i32_0 : i32
    scf.if %2 {
      %cst_9 = arith.constant 0.000000e+00 : f32
      %12 = vector.broadcast %cst_9 : f32 to vector<32x128xf32>
      %c0_10 = arith.constant 0 : index
      %c0_11 = arith.constant 0 : index
      %13 = vector.load %arg7[%c0_10, %c0_11] : memref<32x128xf32, #tpu.memory_space<vmem>>, vector<32x128xf32>
      tpu.vector_store %arg7[%c0_10, %c0_11], %12 {strides = array<i32>} : memref<32x128xf32, #tpu.memory_space<vmem>>, vector<32x128xf32>,
    } else {
    }
    %c0 = arith.constant 0 : index
    %c0_1 = arith.constant 0 : index
    %3 = vector.load %arg7[%c0, %c0_1] : memref<32x128xf32, #tpu.memory_space<vmem>>, vector<32x128xf32>
    %c0_2 = arith.constant 0 : index
    %c0_3 = arith.constant 0 : index
    %4 = vector.load %arg3[%c0_2, %c0_3] : memref<32x256xbf16, #tpu.memory_space<vmem>>, vector<32x256xbf16>
    %c0_4 = arith.constant 0 : index
    %c0_5 = arith.constant 0 : index
    %5 = vector.load %arg4[%c0_4, %c0_5] : memref<256x128xbf16, #tpu.memory_space<vmem>>, vector<256x128xbf16>
    %cst = arith.constant dense<0.000000e+00> : vector<32x128xf32>
    %6 = tpu.matmul %4, %5, %cst {dimension_numbers = #tpu.dot_dimension_numbers<[1], [0], [0], [1], [0, 0, 1, 1], [], []>} : vector<32x256xbf16>, vector<256x128xbf16>, vector<32x128xf32> -> vector<32x128xf32>
    %7 = arith.addf %3, %6 : vector<32x128xf32>
    %c0_6 = arith.constant 0 : index
    %c0_7 = arith.constant 0 : index
    %8 = vector.load %arg7[%c0_6, %c0_7] : memref<32x128xf32, #tpu.memory_space<vmem>>, vector<32x128xf32>
    tpu.vector_store %arg7[%c0_6, %c0_7], %7 {strides = array<i32>} : memref<32x128xf32, #tpu.memory_space<vmem>>, vector<32x128xf32>,
    %c3_i32 = arith.constant 3 : i32
    %9 = arith.cmpi eq, %arg2, %c3_i32 : i32
    %10 = arith.extui %9 : i1 to i32
    %c0_i32_8 = arith.constant 0 : i32
    %11 = arith.cmpi ne, %10, %c0_i32_8 : i32
    scf.if %11 {
      %c0_9 = arith.constant 0 : index
      %c0_10 = arith.constant 0 : index
      %12 = vector.load %arg7[%c0_9, %c0_10] : memref<32x128xf32, #tpu.memory_space<vmem>>, vector<32x128xf32>
      %c0_11 = arith.constant 0 : index
      %c0_12 = arith.constant 0 : index
      %13 = vector.load %arg5[%c0_11, %c0_12] : memref<1x128xf32, #tpu.memory_space<vmem>>, vector<1x128xf32>
      %14 = vector.broadcast %13 : vector<1x128xf32> to vector<32x128xf32>
      %15 = arith.addf %12, %14 : vector<32x128xf32>
      %cst_13 = arith.constant 0.000000e+00 : f32
      %16 = vector.broadcast %cst_13 : f32 to vector<32x128xf32>
      %17 = arith.maximumf %15, %16 : vector<32x128xf32>
      %c0_14 = arith.constant 0 : index
      %c0_15 = arith.constant 0 : index
      %18 = vector.load %arg6[%c0_14, %c0_15] : memref<32x128xf32, #tpu.memory_space<vmem>>, vector<32x128xf32>
      tpu.vector_store %arg6[%c0_14, %c0_15], %17 {strides = array<i32>} : memref<32x128xf32, #tpu.memory_space<vmem>>, vector<32x128xf32>,
    } else {
    }
    return
  }
  func.func @transform_0(%arg0: i32, %arg1: i32, %arg2: i32) -> (i32, i32) {
    %c0_i32 = arith.constant 0 : i32
    return %arg0, %arg2 : i32, i32
  }
  func.func @transform_1(%arg0: i32, %arg1: i32, %arg2: i32) -> (i32, i32) {
    %c0_i32 = arith.constant 0 : i32
    return %arg2, %arg1 : i32, i32
  }
  func.func @transform_2(%arg0: i32, %arg1: i32, %arg2: i32) -> (i32, i32) {
    %c0_i32 = arith.constant 0 : i32
    %c0_i32_0 = arith.constant 0 : i32
    return %c0_i32, %arg1 : i32, i32
  }
  func.func @transform_3(%arg0: i32, %arg1: i32, %arg2: i32) -> (i32, i32) {
    %c0_i32 = arith.constant 0 : i32
    return %arg0, %arg1 : i32, i32
  }
}

module attributes {stable_mosaic.version = 11 : i64} {
  func.func @_matmul_bias_act_kernel(%arg0: i32, %arg1: i32, %arg2: i32, %arg3: memref<128x256xbf16, #tpu.memory_space<vmem>>, %arg4: memref<256x128xbf16, #tpu.memory_space<vmem>>, %arg5: memref<1x128xf32, #tpu.memory_space<vmem>>, %arg6: memref<128x128xf32, #tpu.memory_space<vmem>>, %arg7: memref<128x128xf32, #tpu.memory_space<vmem>>) attributes {dimension_semantics = [#tpu.dimension_semantics<parallel>, #tpu.dimension_semantics<parallel>, #tpu.dimension_semantics<arbitrary>], iteration_bounds = array<i64: 1, 1, 2>, scalar_prefetch = 0 : i64, scratch_operands = 1 : i64, tpu.core_type = #tpu.core_type<tc>, window_params = [{transform_indices = @transform_0, window_bounds = array<i64: 128, 256>}, {transform_indices = @transform_1, window_bounds = array<i64: 256, 128>}, {transform_indices = @transform_2, window_bounds = array<i64: 1, 128>}, {transform_indices = @transform_3, window_bounds = array<i64: 128, 128>}]} {
    %c0_i32 = arith.constant 0 : i32
    %0 = arith.cmpi eq, %arg2, %c0_i32 : i32
    %1 = arith.extui %0 : i1 to i32
    %c0_i32_0 = arith.constant 0 : i32
    %2 = arith.cmpi ne, %1, %c0_i32_0 : i32
    scf.if %2 {
      %cst_9 = arith.constant 0.000000e+00 : f32
      %12 = vector.broadcast %cst_9 : f32 to vector<128x128xf32>
      %c0_10 = arith.constant 0 : index
      %c0_11 = arith.constant 0 : index
      %13 = vector.load %arg7[%c0_10, %c0_11] : memref<128x128xf32, #tpu.memory_space<vmem>>, vector<128x128xf32>
      tpu.vector_store %arg7[%c0_10, %c0_11], %12 {strides = array<i32>} : memref<128x128xf32, #tpu.memory_space<vmem>>, vector<128x128xf32>,
    } else {
    }
    %c0 = arith.constant 0 : index
    %c0_1 = arith.constant 0 : index
    %3 = vector.load %arg7[%c0, %c0_1] : memref<128x128xf32, #tpu.memory_space<vmem>>, vector<128x128xf32>
    %c0_2 = arith.constant 0 : index
    %c0_3 = arith.constant 0 : index
    %4 = vector.load %arg3[%c0_2, %c0_3] : memref<128x256xbf16, #tpu.memory_space<vmem>>, vector<128x256xbf16>
    %c0_4 = arith.constant 0 : index
    %c0_5 = arith.constant 0 : index
    %5 = vector.load %arg4[%c0_4, %c0_5] : memref<256x128xbf16, #tpu.memory_space<vmem>>, vector<256x128xbf16>
    %cst = arith.constant dense<0.000000e+00> : vector<128x128xf32>
    %6 = tpu.matmul %4, %5, %cst {dimension_numbers = #tpu.dot_dimension_numbers<[1], [0], [0], [1], [0, 0, 1, 1], [], []>} : vector<128x256xbf16>, vector<256x128xbf16>, vector<128x128xf32> -> vector<128x128xf32>
    %7 = arith.addf %3, %6 : vector<128x128xf32>
    %c0_6 = arith.constant 0 : index
    %c0_7 = arith.constant 0 : index
    %8 = vector.load %arg7[%c0_6, %c0_7] : memref<128x128xf32, #tpu.memory_space<vmem>>, vector<128x128xf32>
    tpu.vector_store %arg7[%c0_6, %c0_7], %7 {strides = array<i32>} : memref<128x128xf32, #tpu.memory_space<vmem>>, vector<128x128xf32>,
    %c1_i32 = arith.constant 1 : i32
    %9 = arith.cmpi eq, %arg2, %c1_i32 : i32
    %10 = arith.extui %9 : i1 to i32
    %c0_i32_8 = arith.constant 0 : i32
    %11 = arith.cmpi ne, %10, %c0_i32_8 : i32
    scf.if %11 {
      %c0_9 = arith.constant 0 : index
      %c0_10 = arith.constant 0 : index
      %12 = vector.load %arg7[%c0_9, %c0_10] : memref<128x128xf32, #tpu.memory_space<vmem>>, vector<128x128xf32>
      %c0_11 = arith.constant 0 : index
      %c0_12 = arith.constant 0 : index
      %13 = vector.load %arg5[%c0_11, %c0_12] : memref<1x128xf32, #tpu.memory_space<vmem>>, vector<1x128xf32>
      %14 = vector.broadcast %13 : vector<1x128xf32> to vector<128x128xf32>
      %15 = arith.addf %12, %14 : vector<128x128xf32>
      %cst_13 = arith.constant 0.000000e+00 : f32
      %16 = vector.broadcast %cst_13 : f32 to vector<128x128xf32>
      %17 = arith.maximumf %15, %16 : vector<128x128xf32>
      %c0_14 = arith.constant 0 : index
      %c0_15 = arith.constant 0 : index
      %18 = vector.load %arg6[%c0_14, %c0_15] : memref<128x128xf32, #tpu.memory_space<vmem>>, vector<128x128xf32>
      tpu.vector_store %arg6[%c0_14, %c0_15], %17 {strides = array<i32>} : memref<128x128xf32, #tpu.memory_space<vmem>>, vector<128x128xf32>,
    } else {
    }
    return
  }
  func.func @transform_0(%arg0: i32, %arg1: i32, %arg2: i32) -> (i32, i32) {
    %c0_i32 = arith.constant 0 : i32
    return %arg0, %arg2 : i32, i32
  }
  func.func @transform_1(%arg0: i32, %arg1: i32, %arg2: i32) -> (i32, i32) {
    %c0_i32 = arith.constant 0 : i32
    return %arg2, %arg1 : i32, i32
  }
  func.func @transform_2(%arg0: i32, %arg1: i32, %arg2: i32) -> (i32, i32) {
    %c0_i32 = arith.constant 0 : i32
    %c0_i32_0 = arith.constant 0 : i32
    return %c0_i32, %arg1 : i32, i32
  }
  func.func @transform_3(%arg0: i32, %arg1: i32, %arg2: i32) -> (i32, i32) {
    %c0_i32 = arith.constant 0 : i32
    return %arg0, %arg1 : i32, i32
  }
}

module attributes {stable_mosaic.version = 11 : i64} {
  func.func @_matmul_bias_act_kernel(%arg0: i32, %arg1: i32, %arg2: i32, %arg3: memref<128x256xbf16, #tpu.memory_space<vmem>>, %arg4: memref<256x128xbf16, #tpu.memory_space<vmem>>, %arg5: memref<1x128xf32, #tpu.memory_space<vmem>>, %arg6: memref<128x128xf32, #tpu.memory_space<vmem>>, %arg7: memref<128x128xf32, #tpu.memory_space<vmem>>) attributes {dimension_semantics = [#tpu.dimension_semantics<parallel>, #tpu.dimension_semantics<parallel>, #tpu.dimension_semantics<arbitrary>], iteration_bounds = array<i64: 4, 1, 3>, scalar_prefetch = 0 : i64, scratch_operands = 1 : i64, tpu.core_type = #tpu.core_type<tc>, window_params = [{transform_indices = @transform_0, window_bounds = array<i64: 128, 256>}, {transform_indices = @transform_1, window_bounds = array<i64: 256, 128>}, {transform_indices = @transform_2, window_bounds = array<i64: 1, 128>}, {transform_indices = @transform_3, window_bounds = array<i64: 128, 128>}]} {
    %c0_i32 = arith.constant 0 : i32
    %0 = arith.cmpi eq, %arg2, %c0_i32 : i32
    %1 = arith.extui %0 : i1 to i32
    %c0_i32_0 = arith.constant 0 : i32
    %2 = arith.cmpi ne, %1, %c0_i32_0 : i32
    scf.if %2 {
      %cst_9 = arith.constant 0.000000e+00 : f32
      %12 = vector.broadcast %cst_9 : f32 to vector<128x128xf32>
      %c0_10 = arith.constant 0 : index
      %c0_11 = arith.constant 0 : index
      %13 = vector.load %arg7[%c0_10, %c0_11] : memref<128x128xf32, #tpu.memory_space<vmem>>, vector<128x128xf32>
      tpu.vector_store %arg7[%c0_10, %c0_11], %12 {strides = array<i32>} : memref<128x128xf32, #tpu.memory_space<vmem>>, vector<128x128xf32>,
    } else {
    }
    %c0 = arith.constant 0 : index
    %c0_1 = arith.constant 0 : index
    %3 = vector.load %arg7[%c0, %c0_1] : memref<128x128xf32, #tpu.memory_space<vmem>>, vector<128x128xf32>
    %c0_2 = arith.constant 0 : index
    %c0_3 = arith.constant 0 : index
    %4 = vector.load %arg3[%c0_2, %c0_3] : memref<128x256xbf16, #tpu.memory_space<vmem>>, vector<128x256xbf16>
    %c0_4 = arith.constant 0 : index
    %c0_5 = arith.constant 0 : index
    %5 = vector.load %arg4[%c0_4, %c0_5] : memref<256x128xbf16, #tpu.memory_space<vmem>>, vector<256x128xbf16>
    %cst = arith.constant dense<0.000000e+00> : vector<128x128xf32>
    %6 = tpu.matmul %4, %5, %cst {dimension_numbers = #tpu.dot_dimension_numbers<[1], [0], [0], [1], [0, 0, 1, 1], [], []>} : vector<128x256xbf16>, vector<256x128xbf16>, vector<128x128xf32> -> vector<128x128xf32>
    %7 = arith.addf %3, %6 : vector<128x128xf32>
    %c0_6 = arith.constant 0 : index
    %c0_7 = arith.constant 0 : index
    %8 = vector.load %arg7[%c0_6, %c0_7] : memref<128x128xf32, #tpu.memory_space<vmem>>, vector<128x128xf32>
    tpu.vector_store %arg7[%c0_6, %c0_7], %7 {strides = array<i32>} : memref<128x128xf32, #tpu.memory_space<vmem>>, vector<128x128xf32>,
    %c2_i32 = arith.constant 2 : i32
    %9 = arith.cmpi eq, %arg2, %c2_i32 : i32
    %10 = arith.extui %9 : i1 to i32
    %c0_i32_8 = arith.constant 0 : i32
    %11 = arith.cmpi ne, %10, %c0_i32_8 : i32
    scf.if %11 {
      %c0_9 = arith.constant 0 : index
      %c0_10 = arith.constant 0 : index
      %12 = vector.load %arg7[%c0_9, %c0_10] : memref<128x128xf32, #tpu.memory_space<vmem>>, vector<128x128xf32>
      %c0_11 = arith.constant 0 : index
      %c0_12 = arith.constant 0 : index
      %13 = vector.load %arg5[%c0_11, %c0_12] : memref<1x128xf32, #tpu.memory_space<vmem>>, vector<1x128xf32>
      %14 = vector.broadcast %13 : vector<1x128xf32> to vector<128x128xf32>
      %15 = arith.addf %12, %14 : vector<128x128xf32>
      %16 = arith.negf %15 : vector<128x128xf32>
      %17 = math.exp %16 : vector<128x128xf32>
      %cst_13 = arith.constant 1.000000e+00 : f32
      %18 = vector.broadcast %cst_13 : f32 to vector<128x128xf32>
      %19 = arith.addf %18, %17 : vector<128x128xf32>
      %20 = arith.divf %18, %19 : vector<128x128xf32>
      %c0_14 = arith.constant 0 : index
      %c0_15 = arith.constant 0 : index
      %21 = vector.load %arg6[%c0_14, %c0_15] : memref<128x128xf32, #tpu.memory_space<vmem>>, vector<128x128xf32>
      tpu.vector_store %arg6[%c0_14, %c0_15], %20 {strides = array<i32>} : memref<128x128xf32, #tpu.memory_space<vmem>>, vector<128x128xf32>,
    } else {
    }
    return
  }
  func.func @transform_0(%arg0: i32, %arg1: i32, %arg2: i32) -> (i32, i32) {
    %c0_i32 = arith.constant 0 : i32
    return %arg0, %arg2 : i32, i32
  }
  func.func @transform_1(%arg0: i32, %arg1: i32, %arg2: i32) -> (i32, i32) {
    %c0_i32 = arith.constant 0 : i32
    return %arg2, %arg1 : i32, i32
  }
  func.func @transform_2(%arg0: i32, %arg1: i32, %arg2: i32) -> (i32, i32) {
    %c0_i32 = arith.constant 0 : i32
    %c0_i32_0 = arith.constant 0 : i32
    return %c0_i32, %arg1 : i32, i32
  }
  func.func @transform_3(%arg0: i32, %arg1: i32, %arg2: i32) -> (i32, i32) {
    %c0_i32 = arith.constant 0 : i32
    return %arg0, %arg1 : i32, i32
  }
}

</mosaic_0001>

<llo_original>
// kernel: simple_diffusion_forward.12
$region0: #{simple_diffusion_forward.12}
  #allocation0 [shape = 'u32[]', space=smem, size = 0x4, offset = 0x4, fixed_abs, tag = 'smem constant byte address 0x4 - core index']
  #allocation1 [shape = 'u32[144,128]{1,0:T(1,128)}', space=vmem, size = 0x12000, scoped, tag = 'internal scratch']
  #allocation2 [shape = 'f32[128,128]{1,0:T(8,128)}', space=vmem, size = 0x10000, scoped, tag = 'scratch operand']
  %s0 = inlined_call_operand.vmem [shape: bf16[512,256], index: 0, kind: input, shape index: {}]
  %s1 = inlined_call_operand.vmem [shape: bf16[256,128], index: 1, kind: input, shape index: {}]
  %s2 = inlined_call_operand.vmem [shape: f32[1,128], index: 2, kind: input, shape index: {}]
  %s3 = inlined_call_operand.vmem [shape: f32[512,128], index: 3, kind: output, shape index: {}]
  %s4 = sld [smem:[#allocation0]]
  $region53: #{simple_diffusion_forward.12} parent=0
    _
  %s6 = ssub.s32 1, %s4
  %s7 = scalar_select 0, %s6, %s4
  loop: start=0, step=1, limit=6
  $region2: #{simple_diffusion_forward.12} parent=0 // loop_pre_header
    _
  $region3: #{simple_diffusion_forward.12} parent=0 // loop_header
    %s9 = sphi 0, %s13
    %p10 = scmp.ge.s32.totalorder %s9, 6
    %s16 = sphi 0, %s35
    %s17 = sphi 0, %s31
    %s18 = sphi 0, %s27
    %s19 = sphi 0, %s16
    %s20 = sphi 0, %s17
    %s21 = sphi 0, %s18
    %s22 = sphi 0, %s19
    %s23 = sphi 0, %s20
    %s24 = sphi 0, %s21
    %s40 = sphi 0, %s42
    %s43 = sphi 0, %s40
    %s44 = sphi 0, %s43
    %s60 = sphi 0, %s44
    %s68 = sphi 0, %s70
    %s71 = sphi 0, %s68
    %s72 = sphi 0, %s71
    %s88 = sphi 0, %s72
    %s94 = sphi 0, %s96
    %s97 = sphi 0, %s94
    %s98 = sphi 0, %s97
    %s114 = sphi 0, %s98
    %s122 = sphi 0, %s124
    %s125 = sphi 0, %s122
    %s126 = sphi 0, %s125
    %s142 = sphi 0, %s126
  $region4: #{simple_diffusion_forward.12} parent=0 // loop_header_branch
    %12 = sbr.rel (%p10) target = $region8
  $region5: #{simple_diffusion_forward.12} parent=0 // loop_body
    %s14 = ssub.s32 %s9, 1
    %s15 = ssub.s32 %s9, 2
    %s25 = sadd.s32 1, %s18
    %p26 = scmp.ge.s32.totalorder %s25, 1
    %s27 = scalar_select %p26, 0, %s25
    %s28 = sadd.s32 1, %s17
    %s29 = scalar_select %p26, %s28, %s17
    %p30 = scmp.ge.s32.totalorder %s29, 1
    %s31 = scalar_select %p30, 0, %s29
    %s32 = sadd.s32 1, %s16
    %s33 = scalar_select %p30, %s32, %s16
    %p34 = scmp.ge.s32.totalorder %s33, 4
    %s35 = scalar_select %p34, 0, %s33
    %s36 = ssub.s32 %s16, %s35
    %s37 = ssub.s32 %s18, %s27
    %s38 = sor.u32 %s36, %s37
    %p39 = scmp.eq.s32.totalorder %s38, 0
    %s41 = sadd.s32 %s40, 1
    %s42 = scalar_select %p39, %s40, %s41
    %p45 = pneg %p39
    %p46 = scmp.eq.s32.totalorder %s9, 3
    %p47 = por %p45, %p46
    %p48 = scmp.ne.s32.totalorder %s40, %s43
    %p49 = scmp.eq.s32.totalorder %s9, 0
    %p50 = por %p48, %p49
    %p51 = scmp.ne.s32.totalorder %s40, %s43
    %p52 = scmp.eq.s32.totalorder %s14, 3
    %p53 = por %p51, %p52
    %p54 = scmp.ne.s32.totalorder %s43, %s44
    %p55 = scmp.eq.s32.totalorder %s14, 0
    %p56 = por %p54, %p55
    %p57 = scmp.ne.s32.totalorder %s43, %s44
    %p58 = scmp.eq.s32.totalorder %s15, 3
    %p59 = por %p57, %p58
    %p61 = scmp.ne.s32.totalorder %s44, %s60
    %p62 = scmp.eq.s32.totalorder %s15, 0
    %p63 = por %p61, %p62
    %s64 = ssub.s32 %s18, %s27
    %s65 = ssub.s32 %s17, %s31
    %s66 = sor.u32 %s64, %s65
    %p67 = scmp.eq.s32.totalorder %s66, 0
    %s69 = sadd.s32 %s68, 1
    %s70 = scalar_select %p67, %s68, %s69
    %p73 = pneg %p67
    %p74 = scmp.eq.s32.totalorder %s9, 3
    %p75 = por %p73, %p74
    %p76 = scmp.ne.s32.totalorder %s68, %s71
    %p77 = scmp.eq.s32.totalorder %s9, 0
    %p78 = por %p76, %p77
    %p79 = scmp.ne.s32.totalorder %s68, %s71
    %p80 = scmp.eq.s32.totalorder %s14, 3
    %p81 = por %p79, %p80
    %p82 = scmp.ne.s32.totalorder %s71, %s72
    %p83 = scmp.eq.s32.totalorder %s14, 0
    %p84 = por %p82, %p83
    %p85 = scmp.ne.s32.totalorder %s71, %s72
    %p86 = scmp.eq.s32.totalorder %s15, 3
    %p87 = por %p85, %p86
    %p89 = scmp.ne.s32.totalorder %s72, %s88
    %p90 = scmp.eq.s32.totalorder %s15, 0
    %p91 = por %p89, %p90
    %s92 = ssub.s32 %s17, %s31
    %p93 = scmp.eq.s32.totalorder %s92, 0
    %s95 = sadd.s32 %s94, 1
    %s96 = scalar_select %p93, %s94, %s95
    %p99 = pneg %p93
    %p100 = scmp.eq.s32.totalorder %s9, 3
    %p101 = por %p99, %p100
    %p102 = scmp.ne.s32.totalorder %s94, %s97
    %p103 = scmp.eq.s32.totalorder %s9, 0
    %p104 = por %p102, %p103
    %p105 = scmp.ne.s32.totalorder %s94, %s97
    %p106 = scmp.eq.s32.totalorder %s14, 3
    %p107 = por %p105, %p106
    %p108 = scmp.ne.s32.totalorder %s97, %s98
    %p109 = scmp.eq.s32.totalorder %s14, 0
    %p110 = por %p108, %p109
    %p111 = scmp.ne.s32.totalorder %s97, %s98
    %p112 = scmp.eq.s32.totalorder %s15, 3
    %p113 = por %p111, %p112
    %p115 = scmp.ne.s32.totalorder %s98, %s114
    %p116 = scmp.eq.s32.totalorder %s15, 0
    %p117 = por %p115, %p116
    %s118 = ssub.s32 %s16, %s35
    %s119 = ssub.s32 %s17, %s31
    %s120 = sor.u32 %s118, %s119
    %p121 = scmp.eq.s32.totalorder %s120, 0
    %s123 = sadd.s32 %s122, 1
    %s124 = scalar_select %p121, %s122, %s123
    %p127 = pneg %p121
    %p128 = scmp.eq.s32.totalorder %s9, 3
    %p129 = por %p127, %p128
    %p130 = scmp.ne.s32.totalorder %s122, %s125
    %p131 = scmp.eq.s32.totalorder %s9, 0
    %p132 = por %p130, %p131
    %p133 = scmp.ne.s32.totalorder %s122, %s125
    %p134 = scmp.eq.s32.totalorder %s14, 3
    %p135 = por %p133, %p134
    %p136 = scmp.ne.s32.totalorder %s125, %s126
    %p137 = scmp.eq.s32.totalorder %s14, 0
    %p138 = por %p136, %p137
    %p139 = scmp.ne.s32.totalorder %s125, %s126
    %p140 = scmp.eq.s32.totalorder %s15, 3
    %p141 = por %p139, %p140
    %p143 = scmp.ne.s32.totalorder %s126, %s142
    %p144 = scmp.eq.s32.totalorder %s15, 0
    %p145 = por %p143, %p144
    %p146 = scmp.le.s32.totalorder 1, %s9
    %p147 = scmp.lt.s32.totalorder %s9, 5
    %p148 = pnand %p146, %p147
    %p149 = pneg %p148
    // Predicated region
    $region9: #{simple_diffusion_forward.12} parent=5 // pred_check
      _
    $region10: #{simple_diffusion_forward.12} parent=5 // pred_check_branch
      %151 = sbr.rel (%p148) target = $region12
    $region11: #{simple_diffusion_forward.12} parent=5 // pred_region
      %s152 = ssub.s32 %s9, 1
      // Predicated region
      $region13: #{simple_diffusion_forward.12} parent=11 // pred_check
        %p153 = pneg %p84
      $region14: #{simple_diffusion_forward.12} parent=11 // pred_check_branch
        %155 = sbr.rel (%p153) target = $region16
      $region15: #{simple_diffusion_forward.12} parent=11 // pred_region
        %s156 = smul.u32 32, %s21
        %p157 = scmp.lt.s32.totalorder %s156, 31
        %s158 = scalar_select %p157, %s156, 31
        %p159 = scmp.lt.s32.totalorder %s20, 0
        %s160 = scalar_select %p159, %s20, 0
        %s161 = sadd.s32 %s160, %s158
        %s162 = smul.addr %s161, 4
        %s163 = scalar_lea.vmem %s1, %s162
        %s164 = smul.u32 32, %s21
      $region16: #{simple_diffusion_forward.12} parent=11 // pred_fallthru
        _
      // Predicated region
      $region17: #{simple_diffusion_forward.12} parent=11 // pred_check
        %p165 = pneg %p110
      $region18: #{simple_diffusion_forward.12} parent=11 // pred_check_branch
        %167 = sbr.rel (%p165) target = $region20
      $region19: #{simple_diffusion_forward.12} parent=11 // pred_region
        %p168 = scmp.lt.s32.totalorder %s20, 0
        %s169 = scalar_select %p168, %s20, 0
        %s170 = scalar_lea.vmem %s2, %s169
      $region20: #{simple_diffusion_forward.12} parent=11 // pred_fallthru
        _
    $region12: #{simple_diffusion_forward.12} parent=5 // pred_fallthru
      _
    %p171 = scmp.lt.s32.totalorder %s9, 4
    // Predicated region
    $region21: #{simple_diffusion_forward.12} parent=5 // pred_check
      %p172 = pneg %p171
    $region22: #{simple_diffusion_forward.12} parent=5 // pred_check_branch
      %174 = sbr.rel (%p172) target = $region24
    $region23: #{simple_diffusion_forward.12} parent=5 // pred_region
      // Predicated region
      $region25: #{simple_diffusion_forward.12} parent=23 // pred_check
        %p175 = pneg %p50
      $region26: #{simple_diffusion_forward.12} parent=23 // pred_check_branch
        %177 = sbr.rel (%p175) target = $region28
      $region27: #{simple_diffusion_forward.12} parent=23 // pred_region
        %s178 = smul.u32 16, %s16
        %s179 = smul.u32 2, %s18
        %p180 = scmp.lt.s32.totalorder %s178, 63
        %s181 = scalar_select %p180, %s178, 63
        %p182 = scmp.lt.s32.totalorder %s179, 1
        %s183 = scalar_select %p182, %s179, 1
        %s184 = smul.addr %s181, 2
        %s185 = sadd.s32 %s183, %s184
        %s186 = smul.addr %s185, 4
        %s187 = scalar_lea.vmem %s0, %s186
        %s188 = smul.u32 16, %s16
        %s189 = smul.u32 2, %s18
      $region28: #{simple_diffusion_forward.12} parent=23 // pred_fallthru
        _
    $region24: #{simple_diffusion_forward.12} parent=5 // pred_fallthru
      _
    %p190 = scmp.le.s32.totalorder 1, %s9
    %p191 = scmp.lt.s32.totalorder %s9, 5
    %p192 = pnand %p190, %p191
    %p193 = pneg %p192
    // Predicated region
    $region29: #{simple_diffusion_forward.12} parent=5 // pred_check
      _
    $region30: #{simple_diffusion_forward.12} parent=5 // pred_check_branch
      %195 = sbr.rel (%p192) target = $region32
    $region31: #{simple_diffusion_forward.12} parent=5 // pred_region
      %s196 = ssub.s32 %s9, 1
      %s197 = smul.u32 16, %s19
      %s198 = smul.u32 2, %s21
      %p199 = scmp.lt.s32.totalorder %s197, 63
      %s200 = scalar_select %p199, %s197, 63
      %p201 = scmp.lt.s32.totalorder %s198, 1
      %s202 = scalar_select %p201, %s198, 1
      %s203 = smul.addr %s200, 2
      %s204 = sadd.s32 %s202, %s203
      %s205 = smul.addr %s204, 4
      %s206 = scalar_lea.vmem %s0, %s205
      %p207 = pneg %p56
      %p208 = pneg %p53
      %s209 = smul.u32 32, %s21
      %p210 = scmp.lt.s32.totalorder %s209, 31
      %s211 = scalar_select %p210, %s209, 31
      %p212 = scmp.lt.s32.totalorder %s20, 0
      %s213 = scalar_select %p212, %s20, 0
      %s214 = sadd.s32 %s213, %s211
      %s215 = smul.addr %s214, 4
      %s216 = scalar_lea.vmem %s1, %s215
      %p217 = pneg %p84
      %p218 = pneg %p81
      %p219 = scmp.lt.s32.totalorder %s20, 0
      %s220 = scalar_select %p219, %s20, 0
      %s221 = scalar_lea.vmem %s2, %s220
      %p222 = pneg %p110
      %p223 = pneg %p107
      %p224 = pneg %p138
      %p225 = pneg %p135
      %s226 = smul.u32 16, %s19
      %p227 = scmp.lt.s32.totalorder %s226, 63
      %s228 = scalar_select %p227, %s226, 63
      %p229 = scmp.lt.s32.totalorder %s20, 0
      %s230 = scalar_select %p229, %s20, 0
      %s231 = sadd.s32 %s230, %s228
      %s232 = smul.addr %s231, 8
      %s233 = scalar_lea.vmem %s3, %s232
      %s234 = smul.u32 16, %s19
      %s235 = smul.u32 2, %s21
      %p236 = scmp.lt.s32.totalorder %s234, 63
      %s237 = scalar_select %p236, %s234, 63
      %p238 = scmp.lt.s32.totalorder %s235, 1
      %s239 = scalar_select %p238, %s235, 1
      %s240 = smul.addr %s237, 2
      %s241 = sadd.s32 %s239, %s240
      %s242 = smul.addr %s241, 4
      %s243 = scalar_lea.vmem %s0, %s242
      %s244 = smul.u32 16, %s19
      %s245 = smul.u32 2, %s21
      %s246 = smul.u32 32, %s21
      %p247 = scmp.lt.s32.totalorder %s246, 31
      %s248 = scalar_select %p247, %s246, 31
      %p249 = scmp.lt.s32.totalorder %s20, 0
      %s250 = scalar_select %p249, %s20, 0
      %s251 = sadd.s32 %s250, %s248
      %s252 = smul.addr %s251, 4
      %s253 = scalar_lea.vmem %s1, %s252
      %s254 = smul.u32 32, %s21
      %p255 = scmp.lt.s32.totalorder %s20, 0
      %s256 = scalar_select %p255, %s20, 0
      %s257 = scalar_lea.vmem %s2, %s256
      %s258 = smul.u32 16, %s19
      %p259 = scmp.lt.s32.totalorder %s258, 63
      %s260 = scalar_select %p259, %s258, 63
      %p261 = scmp.lt.s32.totalorder %s20, 0
      %s262 = scalar_select %p261, %s20, 0
      %s263 = sadd.s32 %s262, %s260
      %s264 = smul.addr %s263, 8
      %s265 = scalar_lea.vmem %s3, %s264
      %s266 = smul.u32 16, %s19
      %p268 = scmp.eq.s32.totalorder %s21, 0
      // Predicated region
      $region33: #{simple_diffusion_forward.12} parent=31 // pred_check
        %p269 = pneg %p268
      $region34: #{simple_diffusion_forward.12} parent=31 // pred_check_branch
        %271 = sbr.rel (%p269) target = $region36
      $region35: #{simple_diffusion_forward.12} parent=31 // pred_region
        %272 = vst [vmem:[#allocation2] sm:$0xff] 0.0
        %273 = vst [vmem:[#allocation2 + $0x8] sm:$0xff] 0.0
        %274 = vst [vmem:[#allocation2 + $0x10] sm:$0xff] 0.0
        %275 = vst [vmem:[#allocation2 + $0x18] sm:$0xff] 0.0
        %276 = vst [vmem:[#allocation2 + $0x20] sm:$0xff] 0.0
        %277 = vst [vmem:[#allocation2 + $0x28] sm:$0xff] 0.0
        %278 = vst [vmem:[#allocation2 + $0x30] sm:$0xff] 0.0
        %279 = vst [vmem:[#allocation2 + $0x38] sm:$0xff] 0.0
        %280 = vst [vmem:[#allocation2 + $0x40] sm:$0xff] 0.0
        %281 = vst [vmem:[#allocation2 + $0x48] sm:$0xff] 0.0
        %282 = vst [vmem:[#allocation2 + $0x50] sm:$0xff] 0.0
        %283 = vst [vmem:[#allocation2 + $0x58] sm:$0xff] 0.0
        %284 = vst [vmem:[#allocation2 + $0x60] sm:$0xff] 0.0
        %285 = vst [vmem:[#allocation2 + $0x68] sm:$0xff] 0.0
        %286 = vst [vmem:[#allocation2 + $0x70] sm:$0xff] 0.0
        %287 = vst [vmem:[#allocation2 + $0x78] sm:$0xff] 0.0
      $region36: #{simple_diffusion_forward.12} parent=31 // pred_fallthru
        _
      %v288 = vld [vmem:[#allocation2] sm:$0xff]
      %v289 = vld [vmem:[#allocation2 + $0x8] sm:$0xff]
      %v290 = vld [vmem:[#allocation2 + $0x10] sm:$0xff]
      %v291 = vld [vmem:[#allocation2 + $0x18] sm:$0xff]
      %v292 = vld [vmem:[#allocation2 + $0x20] sm:$0xff]
      %v293 = vld [vmem:[#allocation2 + $0x28] sm:$0xff]
      %v294 = vld [vmem:[#allocation2 + $0x30] sm:$0xff]
      %v295 = vld [vmem:[#allocation2 + $0x38] sm:$0xff]
      %v296 = vld [vmem:[#allocation2 + $0x40] sm:$0xff]
      %v297 = vld [vmem:[#allocation2 + $0x48] sm:$0xff]
      %v298 = vld [vmem:[#allocation2 + $0x50] sm:$0xff]
      %v299 = vld [vmem:[#allocation2 + $0x58] sm:$0xff]
      %v300 = vld [vmem:[#allocation2 + $0x60] sm:$0xff]
      %v301 = vld [vmem:[#allocation2 + $0x68] sm:$0xff]
      %v302 = vld [vmem:[#allocation2 + $0x70] sm:$0xff]
      %v303 = vld [vmem:[#allocation2 + $0x78] sm:$0xff]
      %v304 = vld [vmem:[%s243] sm:$0xff]
      %v305 = vld [vmem:[%s243 + $0x8] sm:$0xff]
      %v306 = vld [vmem:[%s243 + $0x10] sm:$0xff]
      %v307 = vld [vmem:[%s243 + $0x18] sm:$0xff]
      %v308 = vld [vmem:[%s243 + $0x20] sm:$0xff]
      %v309 = vld [vmem:[%s243 + $0x28] sm:$0xff]
      %v310 = vld [vmem:[%s243 + $0x30] sm:$0xff]
      %v311 = vld [vmem:[%s243 + $0x38] sm:$0xff]
      %v312 = vld [vmem:[%s243 + $0x40] sm:$0xff]
      %v313 = vld [vmem:[%s243 + $0x48] sm:$0xff]
      %v314 = vld [vmem:[%s243 + $0x50] sm:$0xff]
      %v315 = vld [vmem:[%s243 + $0x58] sm:$0xff]
      %v316 = vld [vmem:[%s243 + $0x60] sm:$0xff]
      %v317 = vld [vmem:[%s243 + $0x68] sm:$0xff]
      %v318 = vld [vmem:[%s243 + $0x70] sm:$0xff]
      %v319 = vld [vmem:[%s243 + $0x78] sm:$0xff]
      %v320 = vld [vmem:[%s253] sm:$0xf]
      %v321 = vld [vmem:[%s253 + $0x4] sm:$0xf]
      %v322 = vld [vmem:[%s253 + $0x8] sm:$0xf]
      %v323 = vld [vmem:[%s253 + $0xc] sm:$0xf]
      %v324 = vld [vmem:[%s253 + $0x10] sm:$0xf]
      %v325 = vld [vmem:[%s253 + $0x14] sm:$0xf]
      %v326 = vld [vmem:[%s253 + $0x18] sm:$0xf]
      %v327 = vld [vmem:[%s253 + $0x1c] sm:$0xf]
      %v328 = vld [vmem:[%s253 + $0x20] sm:$0xf]
      %v329 = vld [vmem:[%s253 + $0x24] sm:$0xf]
      %v330 = vld [vmem:[%s253 + $0x28] sm:$0xf]
      %v331 = vld [vmem:[%s253 + $0x2c] sm:$0xf]
      %v332 = vld [vmem:[%s253 + $0x30] sm:$0xf]
      %v333 = vld [vmem:[%s253 + $0x34] sm:$0xf]
      %v334 = vld [vmem:[%s253 + $0x38] sm:$0xf]
      %v335 = vld [vmem:[%s253 + $0x3c] sm:$0xf]
      %v336 = vld [vmem:[%s253 + $0x40] sm:$0xf]
      %v337 = vld [vmem:[%s253 + $0x44] sm:$0xf]
      %v338 = vld [vmem:[%s253 + $0x48] sm:$0xf]
      %v339 = vld [vmem:[%s253 + $0x4c] sm:$0xf]
      %v340 = vld [vmem:[%s253 + $0x50] sm:$0xf]
      %v341 = vld [vmem:[%s253 + $0x54] sm:$0xf]
      %v342 = vld [vmem:[%s253 + $0x58] sm:$0xf]
      %v343 = vld [vmem:[%s253 + $0x5c] sm:$0xf]
      %v344 = vld [vmem:[%s253 + $0x60] sm:$0xf]
      %v345 = vld [vmem:[%s253 + $0x64] sm:$0xf]
      %v346 = vld [vmem:[%s253 + $0x68] sm:$0xf]
      %v347 = vld [vmem:[%s253 + $0x6c] sm:$0xf]
      %v348 = vld [vmem:[%s253 + $0x70] sm:$0xf]
      %v349 = vld [vmem:[%s253 + $0x74] sm:$0xf]
      %v350 = vld [vmem:[%s253 + $0x78] sm:$0xf]
      %v351 = vld [vmem:[%s253 + $0x7c] sm:$0xf]
      %v368 = vunpack.c.l.b16 %v304
      %v369 = vunpack.c.h.b16 %v304
      %v370 = vunpack.c.l.b16 %v305
      %v371 = vunpack.c.h.b16 %v305
      %v372 = vunpack.c.l.b16 %v306
      %v373 = vunpack.c.h.b16 %v306
      %v374 = vunpack.c.l.b16 %v307
      %v375 = vunpack.c.h.b16 %v307
      %v376 = vunpack.c.l.b16 %v308
      %v377 = vunpack.c.h.b16 %v308
      %v378 = vunpack.c.l.b16 %v309
      %v379 = vunpack.c.h.b16 %v309
      %v380 = vunpack.c.l.b16 %v310
      %v381 = vunpack.c.h.b16 %v310
      %v382 = vunpack.c.l.b16 %v311
      %v383 = vunpack.c.h.b16 %v311
      %v384 = vunpack.c.l.b16 %v312
      %v385 = vunpack.c.h.b16 %v312
      %v386 = vunpack.c.l.b16 %v313
      %v387 = vunpack.c.h.b16 %v313
      %v388 = vunpack.c.l.b16 %v314
      %v389 = vunpack.c.h.b16 %v314
      %v390 = vunpack.c.l.b16 %v315
      %v391 = vunpack.c.h.b16 %v315
      %v392 = vunpack.c.l.b16 %v316
      %v393 = vunpack.c.h.b16 %v316
      %v394 = vunpack.c.l.b16 %v317
      %v395 = vunpack.c.h.b16 %v317
      %v396 = vunpack.c.l.b16 %v318
      %v397 = vunpack.c.h.b16 %v318
      %v398 = vunpack.c.l.b16 %v319
      %v399 = vunpack.c.h.b16 %v319
      %v400 = vpack.c.b16 %v370, %v368
      %v401 = vpack.c.b16 %v371, %v369
      %v402 = vpack.c.b16 %v374, %v372
      %v403 = vpack.c.b16 %v375, %v373
      %v404 = vpack.c.b16 %v378, %v376
      %v405 = vpack.c.b16 %v379, %v377
      %v406 = vpack.c.b16 %v382, %v380
      %v407 = vpack.c.b16 %v383, %v381
      %v408 = vpack.c.b16 %v386, %v384
      %v409 = vpack.c.b16 %v387, %v385
      %v410 = vpack.c.b16 %v390, %v388
      %v411 = vpack.c.b16 %v391, %v389
      %v412 = vpack.c.b16 %v394, %v392
      %v413 = vpack.c.b16 %v395, %v393
      %v414 = vpack.c.b16 %v398, %v396
      %v415 = vpack.c.b16 %v399, %v397
      %v464 = vunpack.c.l.b16 %v320
      %v465 = vunpack.c.l.b16 %v321
      %v466 = vunpack.c.l.b16 %v322
      %v467 = vunpack.c.l.b16 %v323
      %v468 = vunpack.c.l.b16 %v324
      %v469 = vunpack.c.l.b16 %v325
      %v470 = vunpack.c.l.b16 %v326
      %v471 = vunpack.c.l.b16 %v327
      %v472 = vunpack.c.l.b16 %v328
      %v473 = vunpack.c.l.b16 %v329
      %v474 = vunpack.c.l.b16 %v330
      %v475 = vunpack.c.l.b16 %v331
      %v476 = vunpack.c.l.b16 %v332
      %v477 = vunpack.c.l.b16 %v333
      %v478 = vunpack.c.l.b16 %v334
      %v479 = vunpack.c.l.b16 %v335
      %v480 = vunpack.c.l.b16 %v336
      %v481 = vunpack.c.l.b16 %v337
      %v482 = vunpack.c.l.b16 %v338
      %v483 = vunpack.c.l.b16 %v339
      %v484 = vunpack.c.l.b16 %v340
      %v485 = vunpack.c.l.b16 %v341
      %v486 = vunpack.c.l.b16 %v342
      %v487 = vunpack.c.l.b16 %v343
      %v488 = vunpack.c.l.b16 %v344
      %v489 = vunpack.c.l.b16 %v345
      %v490 = vunpack.c.l.b16 %v346
      %v491 = vunpack.c.l.b16 %v347
      %v492 = vunpack.c.l.b16 %v348
      %v493 = vunpack.c.l.b16 %v349
      %v494 = vunpack.c.l.b16 %v350
      %v495 = vunpack.c.l.b16 %v351
      %v496 = vpack.c.b16 %v465, %v464
      %v497 = vpack.c.b16 %v467, %v466
      %v498 = vpack.c.b16 %v469, %v468
      %v499 = vpack.c.b16 %v471, %v470
      %v500 = vpack.c.b16 %v473, %v472
      %v501 = vpack.c.b16 %v475, %v474
      %v502 = vpack.c.b16 %v477, %v476
      %v503 = vpack.c.b16 %v479, %v478
      %v504 = vpack.c.b16 %v481, %v480
      %v505 = vpack.c.b16 %v483, %v482
      %v506 = vpack.c.b16 %v485, %v484
      %v507 = vpack.c.b16 %v487, %v486
      %v508 = vpack.c.b16 %v489, %v488
      %v509 = vpack.c.b16 %v491, %v490
      %v510 = vpack.c.b16 %v493, %v492
      %v511 = vpack.c.b16 %v495, %v494
      %528 = vmatprep.subr.bf16.mxu0 0
      %529 = vmatpush1.bf16.msra.mxu0 %v503
      %530 = vmatprep.subr.bf16.mxu0 0
      %531 = vmatpush1.bf16.msra.mxu0 %v502
      %532 = vmatprep.subr.bf16.mxu0 0
      %533 = vmatpush1.bf16.msra.mxu0 %v501
      %534 = vmatprep.subr.bf16.mxu0 0
      %535 = vmatpush1.bf16.msra.mxu0 %v500
      %536 = vmatprep.subr.bf16.mxu0 0
      %537 = vmatpush1.bf16.msra.mxu0 %v499
      %538 = vmatprep.subr.bf16.mxu0 0
      %539 = vmatpush1.bf16.msra.mxu0 %v498
      %540 = vmatprep.subr.bf16.mxu0 0
      %541 = vmatpush1.bf16.msra.mxu0 %v497
      %542 = vmatprep.subr.bf16.mxu0 0
      %543 = vmatpush1.bf16.msra.mxu0 %v496
      %544 = vmatprep.subr.bf16.mxu0 0
      %545 = vmatpush2.bf16.msra.mxu0 %v511
      %546 = vmatprep.subr.bf16.mxu0 0
      %547 = vmatpush2.bf16.msra.mxu0 %v510
      %548 = vmatprep.subr.bf16.mxu0 0
      %549 = vmatpush2.bf16.msra.mxu0 %v509
      %550 = vmatprep.subr.bf16.mxu0 0
      %551 = vmatpush2.bf16.msra.mxu0 %v508
      %552 = vmatprep.subr.bf16.mxu0 0
      %553 = vmatpush2.bf16.msra.mxu0 %v507
      %554 = vmatprep.subr.bf16.mxu0 0
      %555 = vmatpush2.bf16.msra.mxu0 %v506
      %556 = vmatprep.subr.bf16.mxu0 0
      %557 = vmatpush2.bf16.msra.mxu0 %v505
      %558 = vmatprep.subr.bf16.mxu0 0
      %559 = vmatpush2.bf16.msra.mxu0 %v504
      %560 = vmatprep.mubr.bf16.mxu0 %v401
      %561 = vmatmul.mubr.bf16.gmra.mxu0 %v400
      %v562 = vpop.f32.mrf.mxu0
      %v563 = vadd.f32 0.0, %v562
      %v564 = vpop.f32.mrf.mxu0
      %v565 = vpop.f32.mrf.mxu0
      %v566 = vadd.f32 0.0, %v565
      %v567 = vpop.f32.mrf.mxu0
      %568 = vmatprep.mubr.bf16.mxu0 %v403
      %569 = vmatmul.mubr.bf16.gmra.mxu0 %v402
      %v570 = vpop.f32.mrf.mxu0
      %v571 = vadd.f32 0.0, %v570
      %v572 = vpop.f32.mrf.mxu0
      %v573 = vpop.f32.mrf.mxu0
      %v574 = vadd.f32 0.0, %v573
      %v575 = vpop.f32.mrf.mxu0
      %576 = vmatprep.mubr.bf16.mxu0 %v405
      %577 = vmatmul.mubr.bf16.gmra.mxu0 %v404
      %v578 = vpop.f32.mrf.mxu0
      %v579 = vadd.f32 0.0, %v578
      %v580 = vpop.f32.mrf.mxu0
      %v581 = vpop.f32.mrf.mxu0
      %v582 = vadd.f32 0.0, %v581
      %v583 = vpop.f32.mrf.mxu0
      %584 = vmatprep.mubr.bf16.mxu0 %v407
      %585 = vmatmul.mubr.bf16.gmra.mxu0 %v406
      %v586 = vpop.f32.mrf.mxu0
      %v587 = vadd.f32 0.0, %v586
      %v588 = vpop.f32.mrf.mxu0
      %v589 = vpop.f32.mrf.mxu0
      %v590 = vadd.f32 0.0, %v589
      %v591 = vpop.f32.mrf.mxu0
      %592 = vmatprep.mubr.bf16.mxu0 %v409
      %593 = vmatmul.mubr.bf16.gmra.mxu0 %v408
      %v594 = vpop.f32.mrf.mxu0
      %v595 = vadd.f32 0.0, %v594
      %v596 = vpop.f32.mrf.mxu0
      %v597 = vpop.f32.mrf.mxu0
      %v598 = vadd.f32 0.0, %v597
      %v599 = vpop.f32.mrf.mxu0
      %600 = vmatprep.mubr.bf16.mxu0 %v411
      %601 = vmatmul.mubr.bf16.gmra.mxu0 %v410
      %v602 = vpop.f32.mrf.mxu0
      %v603 = vadd.f32 0.0, %v602
      %v604 = vpop.f32.mrf.mxu0
      %v605 = vpop.f32.mrf.mxu0
      %v606 = vadd.f32 0.0, %v605
      %v607 = vpop.f32.mrf.mxu0
      %608 = vmatprep.mubr.bf16.mxu0 %v413
      %609 = vmatmul.mubr.bf16.gmra.mxu0 %v412
      %v610 = vpop.f32.mrf.mxu0
      %v611 = vadd.f32 0.0, %v610
      %v612 = vpop.f32.mrf.mxu0
      %v613 = vpop.f32.mrf.mxu0
      %v614 = vadd.f32 0.0, %v613
      %v615 = vpop.f32.mrf.mxu0
      %616 = vmatprep.mubr.bf16.mxu0 %v415
      %617 = vmatmul.mubr.bf16.gmra.mxu0 %v414
      %v618 = vpop.f32.mrf.mxu0
      %v619 = vadd.f32 0.0, %v618
      %v620 = vpop.f32.mrf.mxu0
      %v621 = vpop.f32.mrf.mxu0
      %v622 = vadd.f32 0.0, %v621
      %v623 = vpop.f32.mrf.mxu0
      %624 = vdwg.mxu0
      %v625 = vadd.f32 %v288, %v563
      %v626 = vadd.f32 %v289, %v566
      %v627 = vadd.f32 %v290, %v571
      %v628 = vadd.f32 %v291, %v574
      %v629 = vadd.f32 %v292, %v579
      %v630 = vadd.f32 %v293, %v582
      %v631 = vadd.f32 %v294, %v587
      %v632 = vadd.f32 %v295, %v590
      %v633 = vadd.f32 %v296, %v595
      %v634 = vadd.f32 %v297, %v598
      %v635 = vadd.f32 %v298, %v603
      %v636 = vadd.f32 %v299, %v606
      %v637 = vadd.f32 %v300, %v611
      %v638 = vadd.f32 %v301, %v614
      %v639 = vadd.f32 %v302, %v619
      %v640 = vadd.f32 %v303, %v622
      %641 = vst [vmem:[#allocation2] sm:$0xff] %v625
      %642 = vst [vmem:[#allocation2 + $0x8] sm:$0xff] %v626
      %643 = vst [vmem:[#allocation2 + $0x10] sm:$0xff] %v627
      %644 = vst [vmem:[#allocation2 + $0x18] sm:$0xff] %v628
      %645 = vst [vmem:[#allocation2 + $0x20] sm:$0xff] %v629
      %646 = vst [vmem:[#allocation2 + $0x28] sm:$0xff] %v630
      %647 = vst [vmem:[#allocation2 + $0x30] sm:$0xff] %v631
      %648 = vst [vmem:[#allocation2 + $0x38] sm:$0xff] %v632
      %649 = vst [vmem:[#allocation2 + $0x40] sm:$0xff] %v633
      %650 = vst [vmem:[#allocation2 + $0x48] sm:$0xff] %v634
      %651 = vst [vmem:[#allocation2 + $0x50] sm:$0xff] %v635
      %652 = vst [vmem:[#allocation2 + $0x58] sm:$0xff] %v636
      %653 = vst [vmem:[#allocation2 + $0x60] sm:$0xff] %v637
      %654 = vst [vmem:[#allocation2 + $0x68] sm:$0xff] %v638
      %655 = vst [vmem:[#allocation2 + $0x70] sm:$0xff] %v639
      %656 = vst [vmem:[#allocation2 + $0x78] sm:$0xff] %v640
      // Predicated region
      $region37: #{simple_diffusion_forward.12} parent=31 // pred_check
        %p657 = pneg %p268
      $region38: #{simple_diffusion_forward.12} parent=31 // pred_check_branch
        %659 = sbr.rel (%p657) target = $region40
      $region39: #{simple_diffusion_forward.12} parent=31 // pred_region
        %v660 = vld [vmem:[#allocation2] sm:$0xff]
        %v661 = vld [vmem:[#allocation2 + $0x8] sm:$0xff]
        %v662 = vld [vmem:[#allocation2 + $0x10] sm:$0xff]
        %v663 = vld [vmem:[#allocation2 + $0x18] sm:$0xff]
        %v664 = vld [vmem:[#allocation2 + $0x20] sm:$0xff]
        %v665 = vld [vmem:[#allocation2 + $0x28] sm:$0xff]
        %v666 = vld [vmem:[#allocation2 + $0x30] sm:$0xff]
        %v667 = vld [vmem:[#allocation2 + $0x38] sm:$0xff]
        %v668 = vld [vmem:[#allocation2 + $0x40] sm:$0xff]
        %v669 = vld [vmem:[#allocation2 + $0x48] sm:$0xff]
        %v670 = vld [vmem:[#allocation2 + $0x50] sm:$0xff]
        %v671 = vld [vmem:[#allocation2 + $0x58] sm:$0xff]
        %v672 = vld [vmem:[#allocation2 + $0x60] sm:$0xff]
        %v673 = vld [vmem:[#allocation2 + $0x68] sm:$0xff]
        %v674 = vld [vmem:[#allocation2 + $0x70] sm:$0xff]
        %v675 = vld [vmem:[#allocation2 + $0x78] sm:$0xff]
        %v676 = vld [vmem:[%s257] sm:$0x1]
        %v678 = vlaneseq
        %v679 = vshrl.u32 %v678, 7
        %v680 = vsub.s32 0, %v679
        %v681 = vrot.slane %v676, %v680
        %v683 = vadd.f32 %v660, %v681
        %v684 = vadd.f32 %v661, %v681
        %v685 = vadd.f32 %v662, %v681
        %v686 = vadd.f32 %v663, %v681
        %v687 = vadd.f32 %v664, %v681
        %v688 = vadd.f32 %v665, %v681
        %v689 = vadd.f32 %v666, %v681
        %v690 = vadd.f32 %v667, %v681
        %v691 = vadd.f32 %v668, %v681
        %v692 = vadd.f32 %v669, %v681
        %v693 = vadd.f32 %v670, %v681
        %v694 = vadd.f32 %v671, %v681
        %v695 = vadd.f32 %v672, %v681
        %v696 = vadd.f32 %v673, %v681
        %v697 = vadd.f32 %v674, %v681
        %v698 = vadd.f32 %v675, %v681
        %v699 = vmax.f32 %v683, 0.0
        %v700 = vmax.f32 %v684, 0.0
        %v701 = vmax.f32 %v685, 0.0
        %v702 = vmax.f32 %v686, 0.0
        %v703 = vmax.f32 %v687, 0.0
        %v704 = vmax.f32 %v688, 0.0
        %v705 = vmax.f32 %v689, 0.0
        %v706 = vmax.f32 %v690, 0.0
        %v707 = vmax.f32 %v691, 0.0
        %v708 = vmax.f32 %v692, 0.0
        %v709 = vmax.f32 %v693, 0.0
        %v710 = vmax.f32 %v694, 0.0
        %v711 = vmax.f32 %v695, 0.0
        %v712 = vmax.f32 %v696, 0.0
        %v713 = vmax.f32 %v697, 0.0
        %v714 = vmax.f32 %v698, 0.0
        %715 = vst [vmem:[%s265] sm:$0xff] %v699
        %716 = vst [vmem:[%s265 + $0x8] sm:$0xff] %v700
        %717 = vst [vmem:[%s265 + $0x10] sm:$0xff] %v701
        %718 = vst [vmem:[%s265 + $0x18] sm:$0xff] %v702
        %719 = vst [vmem:[%s265 + $0x20] sm:$0xff] %v703
        %720 = vst [vmem:[%s265 + $0x28] sm:$0xff] %v704
        %721 = vst [vmem:[%s265 + $0x30] sm:$0xff] %v705
        %722 = vst [vmem:[%s265 + $0x38] sm:$0xff] %v706
        %723 = vst [vmem:[%s265 + $0x40] sm:$0xff] %v707
        %724 = vst [vmem:[%s265 + $0x48] sm:$0xff] %v708
        %725 = vst [vmem:[%s265 + $0x50] sm:$0xff] %v709
        %726 = vst [vmem:[%s265 + $0x58] sm:$0xff] %v710
        %727 = vst [vmem:[%s265 + $0x60] sm:$0xff] %v711
        %728 = vst [vmem:[%s265 + $0x68] sm:$0xff] %v712
        %729 = vst [vmem:[%s265 + $0x70] sm:$0xff] %v713
        %730 = vst [vmem:[%s265 + $0x78] sm:$0xff] %v714
      $region40: #{simple_diffusion_forward.12} parent=31 // pred_fallthru
        _
      %s731 = smul.u32 16, %s19
      %p732 = scmp.lt.s32.totalorder %s731, 63
      %s733 = scalar_select %p732, %s731, 63
      %p734 = scmp.lt.s32.totalorder %s20, 0
      %s735 = scalar_select %p734, %s20, 0
      %s736 = sadd.s32 %s735, %s733
      %s737 = smul.addr %s736, 8
      %s738 = scalar_lea.vmem %s3, %s737
      // Predicated region
      $region41: #{simple_diffusion_forward.12} parent=31 // pred_check
        %p739 = pneg %p135
      $region42: #{simple_diffusion_forward.12} parent=31 // pred_check_branch
        %741 = sbr.rel (%p739) target = $region44
      $region43: #{simple_diffusion_forward.12} parent=31 // pred_region
        %s742 = smul.u32 16, %s19
      $region44: #{simple_diffusion_forward.12} parent=31 // pred_fallthru
        _
    $region32: #{simple_diffusion_forward.12} parent=5 // pred_fallthru
      _
    %p743 = scmp.le.s32.totalorder 2, %s9
    // Predicated region
    $region45: #{simple_diffusion_forward.12} parent=5 // pred_check
      %p744 = pneg %p743
    $region46: #{simple_diffusion_forward.12} parent=5 // pred_check_branch
      %746 = sbr.rel (%p744) target = $region48
    $region47: #{simple_diffusion_forward.12} parent=5 // pred_region
      %s747 = ssub.s32 %s9, 2
      // Predicated region
      $region49: #{simple_diffusion_forward.12} parent=47 // pred_check
        %p748 = pneg %p141
      $region50: #{simple_diffusion_forward.12} parent=47 // pred_check_branch
        %750 = sbr.rel (%p748) target = $region52
      $region51: #{simple_diffusion_forward.12} parent=47 // pred_region
        %s751 = smul.u32 16, %s22
        %p752 = scmp.lt.s32.totalorder %s751, 63
        %s753 = scalar_select %p752, %s751, 63
        %p754 = scmp.lt.s32.totalorder %s23, 0
        %s755 = scalar_select %p754, %s23, 0
        %s756 = sadd.s32 %s755, %s753
        %s757 = smul.addr %s756, 8
        %s758 = scalar_lea.vmem %s3, %s757
      $region52: #{simple_diffusion_forward.12} parent=47 // pred_fallthru
        _
    $region48: #{simple_diffusion_forward.12} parent=5 // pred_fallthru
      _
  $region6: #{simple_diffusion_forward.12} parent=0 // loop_footer
    %s13 = sadd.s32 1, %s9
  $region7: #{simple_diffusion_forward.12} parent=0 // loop_footer_branch
    %8 = sbr.rel target = $region3
  $region8: #{simple_diffusion_forward.12} parent=0 // loop_exit
    _

// kernel: simple_diffusion_forward.13
$region0: #{simple_diffusion_forward.13}
  #allocation0 [shape = 'u32[]', space=smem, size = 0x4, offset = 0x4, fixed_abs, tag = 'smem constant byte address 0x4 - core index']
  #allocation1 [shape = 'u32[144,128]{1,0:T(1,128)}', space=vmem, size = 0x12000, scoped, tag = 'internal scratch']
  #allocation2 [shape = 'f32[128,128]{1,0:T(8,128)}', space=vmem, size = 0x10000, scoped, tag = 'scratch operand']
  %s0 = inlined_call_operand.vmem [shape: bf16[128,768], index: 0, kind: input, shape index: {}]
  %s1 = inlined_call_operand.vmem [shape: bf16[768,128], index: 1, kind: input, shape index: {}]
  %s2 = inlined_call_operand.vmem [shape: f32[1,128], index: 2, kind: input, shape index: {}]
  %s3 = inlined_call_operand.vmem [shape: f32[128,128], index: 3, kind: output, shape index: {}]
  %s4 = sld [smem:[#allocation0]]
  $region91: #{simple_diffusion_forward.13} parent=0
    _
  %s6 = ssub.s32 1, %s4
  %s7 = scalar_select 0, %s6, %s4
  $region1: #{simple_diffusion_forward.13} parent=0
    #allocation3 [shape = 'u8[131072]{0}', space=vmem, size = 0x20000, scoped, tag = 'input window, operand 0']
    loop: start=0, step=1, limit=5
    $region2: #{simple_diffusion_forward.13} parent=1 // loop_pre_header
      _
    $region3: #{simple_diffusion_forward.13} parent=1 // loop_header
      %s9 = sphi 0, %s13
      %p10 = scmp.ge.s32.totalorder %s9, 5
      %s16 = sphi 0, %s35
      %s17 = sphi 0, %s31
      %s18 = sphi 0, %s27
      %s19 = sphi 0, %s16
      %s20 = sphi 0, %s17
      %s21 = sphi 0, %s18
      %s22 = sphi 0, %s19
      %s23 = sphi 0, %s20
      %s24 = sphi 0, %s21
      %s40 = sphi 0, %s42
      %s43 = sphi 0, %s40
      %s44 = sphi 0, %s43
      %s60 = sphi 0, %s44
      %s68 = sphi 0, %s70
      %s71 = sphi 0, %s68
      %s72 = sphi 0, %s71
      %s88 = sphi 0, %s72
      %s94 = sphi 0, %s96
      %s97 = sphi 0, %s94
      %s98 = sphi 0, %s97
      %s114 = sphi 0, %s98
      %s122 = sphi 0, %s124
      %s125 = sphi 0, %s122
      %s126 = sphi 0, %s125
      %s142 = sphi 0, %s126
    $region4: #{simple_diffusion_forward.13} parent=1 // loop_header_branch
      %12 = sbr.rel (%p10) target = $region8
    $region5: #{simple_diffusion_forward.13} parent=1 // loop_body
      %s14 = ssub.s32 %s9, 1
      %s15 = ssub.s32 %s9, 2
      %s25 = sadd.s32 1, %s18
      %p26 = scmp.ge.s32.totalorder %s25, 3
      %s27 = scalar_select %p26, 0, %s25
      %s28 = sadd.s32 1, %s17
      %s29 = scalar_select %p26, %s28, %s17
      %p30 = scmp.ge.s32.totalorder %s29, 1
      %s31 = scalar_select %p30, 0, %s29
      %s32 = sadd.s32 1, %s16
      %s33 = scalar_select %p30, %s32, %s16
      %p34 = scmp.ge.s32.totalorder %s33, 1
      %s35 = scalar_select %p34, 0, %s33
      %s36 = ssub.s32 %s16, %s35
      %s37 = ssub.s32 %s18, %s27
      %s38 = sor.u32 %s36, %s37
      %p39 = scmp.eq.s32.totalorder %s38, 0
      %s41 = sadd.s32 %s40, 1
      %s42 = scalar_select %p39, %s40, %s41
      %p45 = pneg %p39
      %p46 = scmp.eq.s32.totalorder %s9, 2
      %p47 = por %p45, %p46
      %p48 = scmp.ne.s32.totalorder %s40, %s43
      %p49 = scmp.eq.s32.totalorder %s9, 0
      %p50 = por %p48, %p49
      %p51 = scmp.ne.s32.totalorder %s40, %s43
      %p52 = scmp.eq.s32.totalorder %s14, 2
      %p53 = por %p51, %p52
      %p54 = scmp.ne.s32.totalorder %s43, %s44
      %p55 = scmp.eq.s32.totalorder %s14, 0
      %p56 = por %p54, %p55
      %p57 = scmp.ne.s32.totalorder %s43, %s44
      %p58 = scmp.eq.s32.totalorder %s15, 2
      %p59 = por %p57, %p58
      %p61 = scmp.ne.s32.totalorder %s44, %s60
      %p62 = scmp.eq.s32.totalorder %s15, 0
      %p63 = por %p61, %p62
      %s64 = ssub.s32 %s18, %s27
      %s65 = ssub.s32 %s17, %s31
      %s66 = sor.u32 %s64, %s65
      %p67 = scmp.eq.s32.totalorder %s66, 0
      %s69 = sadd.s32 %s68, 1
      %s70 = scalar_select %p67, %s68, %s69
      %p73 = pneg %p67
      %p74 = scmp.eq.s32.totalorder %s9, 2
      %p75 = por %p73, %p74
      %p76 = scmp.ne.s32.totalorder %s68, %s71
      %p77 = scmp.eq.s32.totalorder %s9, 0
      %p78 = por %p76, %p77
      %p79 = scmp.ne.s32.totalorder %s68, %s71
      %p80 = scmp.eq.s32.totalorder %s14, 2
      %p81 = por %p79, %p80
      %p82 = scmp.ne.s32.totalorder %s71, %s72
      %p83 = scmp.eq.s32.totalorder %s14, 0
      %p84 = por %p82, %p83
      %p85 = scmp.ne.s32.totalorder %s71, %s72
      %p86 = scmp.eq.s32.totalorder %s15, 2
      %p87 = por %p85, %p86
      %p89 = scmp.ne.s32.totalorder %s72, %s88
      %p90 = scmp.eq.s32.totalorder %s15, 0
      %p91 = por %p89, %p90
      %s92 = ssub.s32 %s17, %s31
      %p93 = scmp.eq.s32.totalorder %s92, 0
      %s95 = sadd.s32 %s94, 1
      %s96 = scalar_select %p93, %s94, %s95
      %p99 = pneg %p93
      %p100 = scmp.eq.s32.totalorder %s9, 2
      %p101 = por %p99, %p100
      %p102 = scmp.ne.s32.totalorder %s94, %s97
      %p103 = scmp.eq.s32.totalorder %s9, 0
      %p104 = por %p102, %p103
      %p105 = scmp.ne.s32.totalorder %s94, %s97
      %p106 = scmp.eq.s32.totalorder %s14, 2
      %p107 = por %p105, %p106
      %p108 = scmp.ne.s32.totalorder %s97, %s98
      %p109 = scmp.eq.s32.totalorder %s14, 0
      %p110 = por %p108, %p109
      %p111 = scmp.ne.s32.totalorder %s97, %s98
      %p112 = scmp.eq.s32.totalorder %s15, 2
      %p113 = por %p111, %p112
      %p115 = scmp.ne.s32.totalorder %s98, %s114
      %p116 = scmp.eq.s32.totalorder %s15, 0
      %p117 = por %p115, %p116
      %s118 = ssub.s32 %s16, %s35
      %s119 = ssub.s32 %s17, %s31
      %s120 = sor.u32 %s118, %s119
      %p121 = scmp.eq.s32.totalorder %s120, 0
      %s123 = sadd.s32 %s122, 1
      %s124 = scalar_select %p121, %s122, %s123
      %p127 = pneg %p121
      %p128 = scmp.eq.s32.totalorder %s9, 2
      %p129 = por %p127, %p128
      %p130 = scmp.ne.s32.totalorder %s122, %s125
      %p131 = scmp.eq.s32.totalorder %s9, 0
      %p132 = por %p130, %p131
      %p133 = scmp.ne.s32.totalorder %s122, %s125
      %p134 = scmp.eq.s32.totalorder %s14, 2
      %p135 = por %p133, %p134
      %p136 = scmp.ne.s32.totalorder %s125, %s126
      %p137 = scmp.eq.s32.totalorder %s14, 0
      %p138 = por %p136, %p137
      %p139 = scmp.ne.s32.totalorder %s125, %s126
      %p140 = scmp.eq.s32.totalorder %s15, 2
      %p141 = por %p139, %p140
      %p143 = scmp.ne.s32.totalorder %s126, %s142
      %p144 = scmp.eq.s32.totalorder %s15, 0
      %p145 = por %p143, %p144
      %p146 = scmp.le.s32.totalorder 1, %s9
      %p147 = scmp.lt.s32.totalorder %s9, 4
      %p148 = pnand %p146, %p147
      %p149 = pneg %p148
      // Predicated region
      $region9: #{simple_diffusion_forward.13} parent=5 // pred_check
        _
      $region10: #{simple_diffusion_forward.13} parent=5 // pred_check_branch
        %151 = sbr.rel (%p148) target = $region12
      $region11: #{simple_diffusion_forward.13} parent=5 // pred_region
        %s152 = ssub.s32 %s9, 1
        // Predicated region
        $region13: #{simple_diffusion_forward.13} parent=11 // pred_check
          %p153 = pneg %p110
        $region14: #{simple_diffusion_forward.13} parent=11 // pred_check_branch
          %155 = sbr.rel (%p153) target = $region16
        $region15: #{simple_diffusion_forward.13} parent=11 // pred_region
          %p156 = scmp.lt.s32.totalorder %s20, 0
          %s157 = scalar_select %p156, %s20, 0
          %s158 = scalar_lea.vmem %s2, %s157
        $region16: #{simple_diffusion_forward.13} parent=11 // pred_fallthru
          _
      $region12: #{simple_diffusion_forward.13} parent=5 // pred_fallthru
        _
      %p159 = scmp.lt.s32.totalorder %s9, 3
      // Predicated region
      $region17: #{simple_diffusion_forward.13} parent=5 // pred_check
        %p160 = pneg %p159
      $region18: #{simple_diffusion_forward.13} parent=5 // pred_check_branch
        %162 = sbr.rel (%p160) target = $region20
      $region19: #{simple_diffusion_forward.13} parent=5 // pred_region
        // Predicated region
        $region21: #{simple_diffusion_forward.13} parent=19 // pred_check
          %p163 = pneg %p50
        $region22: #{simple_diffusion_forward.13} parent=19 // pred_check_branch
          %165 = sbr.rel (%p163) target = $region24
        $region23: #{simple_diffusion_forward.13} parent=19 // pred_region
          %s166 = sand.u32 %s40, 1
          %s167 = sand.u32 %s40, 1
          %s168 = smul.addr %s167, 128
          %s169 = scalar_lea.vmem [#allocation3], %s168
          %s170 = smul.u32 16, %s16
          %s171 = smul.u32 2, %s18
          %s172 = smul.addr %s170, 6
          %s173 = sadd.s32 %s171, %s172
          %s174 = smul.addr %s173, 4
          %s175 = scalar_lea.vmem %s0, %s174
          // Predicated region
          $region25: #{simple_diffusion_forward.13} parent=23 // pred_check
            _
          $region26: #{simple_diffusion_forward.13} parent=23 // pred_check_branch
            %177 = sbr.rel (0) target = $region28
          $region27: #{simple_diffusion_forward.13} parent=23 // pred_region
            // Predicated region
            $region29: #{simple_diffusion_forward.13} parent=27 // pred_check
              _
            $region30: #{simple_diffusion_forward.13} parent=27 // pred_check_branch
              %179 = sbr.rel (0) target = $region32
            $region31: #{simple_diffusion_forward.13} parent=27 // pred_region
              // Predicated region
              $region44: #{simple_diffusion_forward.13} parent=31 // pred_check
                _
              $region45: #{simple_diffusion_forward.13} parent=31 // pred_check_branch
                %225 = sbr.rel (0) target = $region47
              $region46: #{simple_diffusion_forward.13} parent=31 // pred_region
                loop: start=0, step=1, limit=1
                $region48: #{simple_diffusion_forward.13} parent=46 // loop_pre_header
                  _
                $region49: #{simple_diffusion_forward.13} parent=46 // loop_header
                  %s227 = sphi 0, %s231
                  %p228 = scmp.ge.s32.totalorder %s227, 1
                  %s232 = sphi %s175, %s175
                  %s233 = sphi %s169, %s169
                $region50: #{simple_diffusion_forward.13} parent=46 // loop_header_branch
                  %230 = sbr.rel (%p228) target = $region54
                $region51: #{simple_diffusion_forward.13} parent=46 // loop_body
                  %v234 = vld [vmem:[%s232] sm:$0xff]
                  %235 = vst [vmem:[%s233] sm:$0xff] %v234
                  %v236 = vld [vmem:[%s232 + $0x18] sm:$0xff]
                  %237 = vst [vmem:[%s233 + $0x8] sm:$0xff] %v236
                  %v238 = vld [vmem:[%s232 + $0x30] sm:$0xff]
                  %239 = vst [vmem:[%s233 + $0x10] sm:$0xff] %v238
                  %v240 = vld [vmem:[%s232 + $0x48] sm:$0xff]
                  %241 = vst [vmem:[%s233 + $0x18] sm:$0xff] %v240
                  %v242 = vld [vmem:[%s232 + $0x60] sm:$0xff]
                  %243 = vst [vmem:[%s233 + $0x20] sm:$0xff] %v242
                  %v244 = vld [vmem:[%s232 + $0x78] sm:$0xff]
                  %245 = vst [vmem:[%s233 + $0x28] sm:$0xff] %v244
                  %v246 = vld [vmem:[%s232 + $0x90] sm:$0xff]
                  %247 = vst [vmem:[%s233 + $0x30] sm:$0xff] %v246
                  %v248 = vld [vmem:[%s232 + $0xa8] sm:$0xff]
                  %249 = vst [vmem:[%s233 + $0x38] sm:$0xff] %v248
                  %v250 = vld [vmem:[%s232 + $0xc0] sm:$0xff]
                  %251 = vst [vmem:[%s233 + $0x40] sm:$0xff] %v250
                  %v252 = vld [vmem:[%s232 + $0xd8] sm:$0xff]
                  %253 = vst [vmem:[%s233 + $0x48] sm:$0xff] %v252
                  %v254 = vld [vmem:[%s232 + $0xf0] sm:$0xff]
                  %255 = vst [vmem:[%s233 + $0x50] sm:$0xff] %v254
                  %v256 = vld [vmem:[%s232 + $0x108] sm:$0xff]
                  %257 = vst [vmem:[%s233 + $0x58] sm:$0xff] %v256
                  %v258 = vld [vmem:[%s232 + $0x120] sm:$0xff]
                  %259 = vst [vmem:[%s233 + $0x60] sm:$0xff] %v258
                  %v260 = vld [vmem:[%s232 + $0x138] sm:$0xff]
                  %261 = vst [vmem:[%s233 + $0x68] sm:$0xff] %v260
                  %v262 = vld [vmem:[%s232 + $0x150] sm:$0xff]
                  %263 = vst [vmem:[%s233 + $0x70] sm:$0xff] %v262
                  %v264 = vld [vmem:[%s232 + $0x168] sm:$0xff]
                  %265 = vst [vmem:[%s233 + $0x78] sm:$0xff] %v264
                $region52: #{simple_diffusion_forward.13} parent=46 // loop_footer
                  %s231 = sadd.s32 1, %s227
                $region53: #{simple_diffusion_forward.13} parent=46 // loop_footer_branch
                  %226 = sbr.rel target = $region49
                $region54: #{simple_diffusion_forward.13} parent=46 // loop_exit
                  _
              $region47: #{simple_diffusion_forward.13} parent=31 // pred_fallthru
                _
              // Predicated region
              $region55: #{simple_diffusion_forward.13} parent=31 // pred_check
                _
              $region56: #{simple_diffusion_forward.13} parent=31 // pred_check_branch
                %267 = sbr.rel target = $region58
              $region57: #{simple_diffusion_forward.13} parent=31 // pred_region
                _
              $region58: #{simple_diffusion_forward.13} parent=31 // pred_fallthru
                _
            $region32: #{simple_diffusion_forward.13} parent=27 // pred_fallthru
              _
            // Predicated region
            $region33: #{simple_diffusion_forward.13} parent=27 // pred_check
              _
            $region34: #{simple_diffusion_forward.13} parent=27 // pred_check_branch
              %181 = sbr.rel target = $region36
            $region35: #{simple_diffusion_forward.13} parent=27 // pred_region
              %s183 = ssub.s32 256, 1
              loop: start=0, step=1, limit=1
              $region37: #{simple_diffusion_forward.13} parent=35 // loop_pre_header
                _
              $region38: #{simple_diffusion_forward.13} parent=35 // loop_header
                %s185 = sphi 0, %s189
                %p186 = scmp.ge.s32.totalorder %s185, 1
                %s190 = sphi %s175, %s175
                %s191 = sphi %s169, %s169
              $region39: #{simple_diffusion_forward.13} parent=35 // loop_header_branch
                %188 = sbr.rel (%p186) target = $region43
              $region40: #{simple_diffusion_forward.13} parent=35 // loop_body
                %v192 = vld [vmem:[%s190] sm:%s183]
                %193 = vst [vmem:[%s191] sm:%s183] %v192
                %v194 = vld [vmem:[%s190 + $0x18] sm:%s183]
                %195 = vst [vmem:[%s191 + $0x8] sm:%s183] %v194
                %v196 = vld [vmem:[%s190 + $0x30] sm:%s183]
                %197 = vst [vmem:[%s191 + $0x10] sm:%s183] %v196
                %v198 = vld [vmem:[%s190 + $0x48] sm:%s183]
                %199 = vst [vmem:[%s191 + $0x18] sm:%s183] %v198
                %v200 = vld [vmem:[%s190 + $0x60] sm:%s183]
                %201 = vst [vmem:[%s191 + $0x20] sm:%s183] %v200
                %v202 = vld [vmem:[%s190 + $0x78] sm:%s183]
                %203 = vst [vmem:[%s191 + $0x28] sm:%s183] %v202
                %v204 = vld [vmem:[%s190 + $0x90] sm:%s183]
                %205 = vst [vmem:[%s191 + $0x30] sm:%s183] %v204
                %v206 = vld [vmem:[%s190 + $0xa8] sm:%s183]
                %207 = vst [vmem:[%s191 + $0x38] sm:%s183] %v206
                %v208 = vld [vmem:[%s190 + $0xc0] sm:%s183]
                %209 = vst [vmem:[%s191 + $0x40] sm:%s183] %v208
                %v210 = vld [vmem:[%s190 + $0xd8] sm:%s183]
                %211 = vst [vmem:[%s191 + $0x48] sm:%s183] %v210
                %v212 = vld [vmem:[%s190 + $0xf0] sm:%s183]
                %213 = vst [vmem:[%s191 + $0x50] sm:%s183] %v212
                %v214 = vld [vmem:[%s190 + $0x108] sm:%s183]
                %215 = vst [vmem:[%s191 + $0x58] sm:%s183] %v214
                %v216 = vld [vmem:[%s190 + $0x120] sm:%s183]
                %217 = vst [vmem:[%s191 + $0x60] sm:%s183] %v216
                %v218 = vld [vmem:[%s190 + $0x138] sm:%s183]
                %219 = vst [vmem:[%s191 + $0x68] sm:%s183] %v218
                %v220 = vld [vmem:[%s190 + $0x150] sm:%s183]
                %221 = vst [vmem:[%s191 + $0x70] sm:%s183] %v220
                %v222 = vld [vmem:[%s190 + $0x168] sm:%s183]
                %223 = vst [vmem:[%s191 + $0x78] sm:%s183] %v222
              $region41: #{simple_diffusion_forward.13} parent=35 // loop_footer
                %s189 = sadd.s32 1, %s185
              $region42: #{simple_diffusion_forward.13} parent=35 // loop_footer_branch
                %184 = sbr.rel target = $region38
              $region43: #{simple_diffusion_forward.13} parent=35 // loop_exit
                _
            $region36: #{simple_diffusion_forward.13} parent=27 // pred_fallthru
              _
          $region28: #{simple_diffusion_forward.13} parent=23 // pred_fallthru
            _
          %268 = vnop
        $region24: #{simple_diffusion_forward.13} parent=19 // pred_fallthru
          _
        // Predicated region
        $region59: #{simple_diffusion_forward.13} parent=19 // pred_check
          %p269 = pneg %p78
        $region60: #{simple_diffusion_forward.13} parent=19 // pred_check_branch
          %271 = sbr.rel (%p269) target = $region62
        $region61: #{simple_diffusion_forward.13} parent=19 // pred_region
          %s272 = smul.u32 32, %s18
          %p273 = scmp.lt.s32.totalorder %s272, 95
          %s274 = scalar_select %p273, %s272, 95
          %p275 = scmp.lt.s32.totalorder %s17, 0
          %s276 = scalar_select %p275, %s17, 0
          %s277 = sadd.s32 %s276, %s274
          %s278 = smul.addr %s277, 4
          %s279 = scalar_lea.vmem %s1, %s278
          %s280 = smul.u32 32, %s18
        $region62: #{simple_diffusion_forward.13} parent=19 // pred_fallthru
          _
      $region20: #{simple_diffusion_forward.13} parent=5 // pred_fallthru
        _
      %p281 = scmp.le.s32.totalorder 1, %s9
      %p282 = scmp.lt.s32.totalorder %s9, 4
      %p283 = pnand %p281, %p282
      %p284 = pneg %p283
      // Predicated region
      $region63: #{simple_diffusion_forward.13} parent=5 // pred_check
        _
      $region64: #{simple_diffusion_forward.13} parent=5 // pred_check_branch
        %286 = sbr.rel (%p283) target = $region66
      $region65: #{simple_diffusion_forward.13} parent=5 // pred_region
        %s287 = ssub.s32 %s9, 1
        %s288 = sand.u32 %s43, 1
        %s289 = sand.u32 %s43, 1
        %s290 = smul.addr %s289, 128
        %s291 = scalar_lea.vmem [#allocation3], %s290
        // Predicated region
        $region67: #{simple_diffusion_forward.13} parent=65 // pred_check
          %p292 = pneg %p56
        $region68: #{simple_diffusion_forward.13} parent=65 // pred_check_branch
          %294 = sbr.rel (%p292) target = $region70
        $region69: #{simple_diffusion_forward.13} parent=65 // pred_region
          _
        $region70: #{simple_diffusion_forward.13} parent=65 // pred_fallthru
          _
        %s295 = sand.u32 %s43, 1
        %s296 = sand.u32 %s43, 1
        %s297 = smul.addr %s296, 128
        %s298 = scalar_lea.vmem [#allocation3], %s297
        %p299 = pneg %p56
        %p300 = pneg %p53
        %s301 = smul.u32 32, %s21
        %p302 = scmp.lt.s32.totalorder %s301, 95
        %s303 = scalar_select %p302, %s301, 95
        %p304 = scmp.lt.s32.totalorder %s20, 0
        %s305 = scalar_select %p304, %s20, 0
        %s306 = sadd.s32 %s305, %s303
        %s307 = smul.addr %s306, 4
        %s308 = scalar_lea.vmem %s1, %s307
        %p309 = pneg %p84
        %p310 = pneg %p81
        %p311 = scmp.lt.s32.totalorder %s20, 0
        %s312 = scalar_select %p311, %s20, 0
        %s313 = scalar_lea.vmem %s2, %s312
        %p314 = pneg %p110
        %p315 = pneg %p107
        %p316 = pneg %p138
        %p317 = pneg %p135
        %s318 = smul.u32 16, %s19
        %p319 = scmp.lt.s32.totalorder %s318, 15
        %s320 = scalar_select %p319, %s318, 15
        %p321 = scmp.lt.s32.totalorder %s20, 0
        %s322 = scalar_select %p321, %s20, 0
        %s323 = sadd.s32 %s322, %s320
        %s324 = smul.addr %s323, 8
        %s325 = scalar_lea.vmem %s3, %s324
        %s326 = smul.u32 16, %s19
        %s327 = smul.u32 2, %s21
        %s328 = smul.u32 32, %s21
        %p329 = scmp.lt.s32.totalorder %s328, 95
        %s330 = scalar_select %p329, %s328, 95
        %p331 = scmp.lt.s32.totalorder %s20, 0
        %s332 = scalar_select %p331, %s20, 0
        %s333 = sadd.s32 %s332, %s330
        %s334 = smul.addr %s333, 4
        %s335 = scalar_lea.vmem %s1, %s334
        %s336 = smul.u32 32, %s21
        %p337 = scmp.lt.s32.totalorder %s20, 0
        %s338 = scalar_select %p337, %s20, 0
        %s339 = scalar_lea.vmem %s2, %s338
        %s340 = smul.u32 16, %s19
        %p341 = scmp.lt.s32.totalorder %s340, 15
        %s342 = scalar_select %p341, %s340, 15
        %p343 = scmp.lt.s32.totalorder %s20, 0
        %s344 = scalar_select %p343, %s20, 0
        %s345 = sadd.s32 %s344, %s342
        %s346 = smul.addr %s345, 8
        %s347 = scalar_lea.vmem %s3, %s346
        %s348 = smul.u32 16, %s19
        %p350 = scmp.eq.s32.totalorder %s21, 0
        // Predicated region
        $region71: #{simple_diffusion_forward.13} parent=65 // pred_check
          %p351 = pneg %p350
        $region72: #{simple_diffusion_forward.13} parent=65 // pred_check_branch
          %353 = sbr.rel (%p351) target = $region74
        $region73: #{simple_diffusion_forward.13} parent=65 // pred_region
          %354 = vst [vmem:[#allocation2] sm:$0xff] 0.0
          %355 = vst [vmem:[#allocation2 + $0x8] sm:$0xff] 0.0
          %356 = vst [vmem:[#allocation2 + $0x10] sm:$0xff] 0.0
          %357 = vst [vmem:[#allocation2 + $0x18] sm:$0xff] 0.0
          %358 = vst [vmem:[#allocation2 + $0x20] sm:$0xff] 0.0
          %359 = vst [vmem:[#allocation2 + $0x28] sm:$0xff] 0.0
          %360 = vst [vmem:[#allocation2 + $0x30] sm:$0xff] 0.0
          %361 = vst [vmem:[#allocation2 + $0x38] sm:$0xff] 0.0
          %362 = vst [vmem:[#allocation2 + $0x40] sm:$0xff] 0.0
          %363 = vst [vmem:[#allocation2 + $0x48] sm:$0xff] 0.0
          %364 = vst [vmem:[#allocation2 + $0x50] sm:$0xff] 0.0
          %365 = vst [vmem:[#allocation2 + $0x58] sm:$0xff] 0.0
          %366 = vst [vmem:[#allocation2 + $0x60] sm:$0xff] 0.0
          %367 = vst [vmem:[#allocation2 + $0x68] sm:$0xff] 0.0
          %368 = vst [vmem:[#allocation2 + $0x70] sm:$0xff] 0.0
          %369 = vst [vmem:[#allocation2 + $0x78] sm:$0xff] 0.0
        $region74: #{simple_diffusion_forward.13} parent=65 // pred_fallthru
          _
        %v370 = vld [vmem:[#allocation2] sm:$0xff]
        %v371 = vld [vmem:[#allocation2 + $0x8] sm:$0xff]
        %v372 = vld [vmem:[#allocation2 + $0x10] sm:$0xff]
        %v373 = vld [vmem:[#allocation2 + $0x18] sm:$0xff]
        %v374 = vld [vmem:[#allocation2 + $0x20] sm:$0xff]
        %v375 = vld [vmem:[#allocation2 + $0x28] sm:$0xff]
        %v376 = vld [vmem:[#allocation2 + $0x30] sm:$0xff]
        %v377 = vld [vmem:[#allocation2 + $0x38] sm:$0xff]
        %v378 = vld [vmem:[#allocation2 + $0x40] sm:$0xff]
        %v379 = vld [vmem:[#allocation2 + $0x48] sm:$0xff]
        %v380 = vld [vmem:[#allocation2 + $0x50] sm:$0xff]
        %v381 = vld [vmem:[#allocation2 + $0x58] sm:$0xff]
        %v382 = vld [vmem:[#allocation2 + $0x60] sm:$0xff]
        %v383 = vld [vmem:[#allocation2 + $0x68] sm:$0xff]
        %v384 = vld [vmem:[#allocation2 + $0x70] sm:$0xff]
        %v385 = vld [vmem:[#allocation2 + $0x78] sm:$0xff]
        %v386 = vld [vmem:[%s291] sm:$0xff]
        %v387 = vld [vmem:[%s291 + $0x8] sm:$0xff]
        %v388 = vld [vmem:[%s291 + $0x10] sm:$0xff]
        %v389 = vld [vmem:[%s291 + $0x18] sm:$0xff]
        %v390 = vld [vmem:[%s291 + $0x20] sm:$0xff]
        %v391 = vld [vmem:[%s291 + $0x28] sm:$0xff]
        %v392 = vld [vmem:[%s291 + $0x30] sm:$0xff]
        %v393 = vld [vmem:[%s291 + $0x38] sm:$0xff]
        %v394 = vld [vmem:[%s291 + $0x40] sm:$0xff]
        %v395 = vld [vmem:[%s291 + $0x48] sm:$0xff]
        %v396 = vld [vmem:[%s291 + $0x50] sm:$0xff]
        %v397 = vld [vmem:[%s291 + $0x58] sm:$0xff]
        %v398 = vld [vmem:[%s291 + $0x60] sm:$0xff]
        %v399 = vld [vmem:[%s291 + $0x68] sm:$0xff]
        %v400 = vld [vmem:[%s291 + $0x70] sm:$0xff]
        %v401 = vld [vmem:[%s291 + $0x78] sm:$0xff]
        %v402 = vld [vmem:[%s335] sm:$0xf]
        %v403 = vld [vmem:[%s335 + $0x4] sm:$0xf]
        %v404 = vld [vmem:[%s335 + $0x8] sm:$0xf]
        %v405 = vld [vmem:[%s335 + $0xc] sm:$0xf]
        %v406 = vld [vmem:[%s335 + $0x10] sm:$0xf]
        %v407 = vld [vmem:[%s335 + $0x14] sm:$0xf]
        %v408 = vld [vmem:[%s335 + $0x18] sm:$0xf]
        %v409 = vld [vmem:[%s335 + $0x1c] sm:$0xf]
        %v410 = vld [vmem:[%s335 + $0x20] sm:$0xf]
        %v411 = vld [vmem:[%s335 + $0x24] sm:$0xf]
        %v412 = vld [vmem:[%s335 + $0x28] sm:$0xf]
        %v413 = vld [vmem:[%s335 + $0x2c] sm:$0xf]
        %v414 = vld [vmem:[%s335 + $0x30] sm:$0xf]
        %v415 = vld [vmem:[%s335 + $0x34] sm:$0xf]
        %v416 = vld [vmem:[%s335 + $0x38] sm:$0xf]
        %v417 = vld [vmem:[%s335 + $0x3c] sm:$0xf]
        %v418 = vld [vmem:[%s335 + $0x40] sm:$0xf]
        %v419 = vld [vmem:[%s335 + $0x44] sm:$0xf]
        %v420 = vld [vmem:[%s335 + $0x48] sm:$0xf]
        %v421 = vld [vmem:[%s335 + $0x4c] sm:$0xf]
        %v422 = vld [vmem:[%s335 + $0x50] sm:$0xf]
        %v423 = vld [vmem:[%s335 + $0x54] sm:$0xf]
        %v424 = vld [vmem:[%s335 + $0x58] sm:$0xf]
        %v425 = vld [vmem:[%s335 + $0x5c] sm:$0xf]
        %v426 = vld [vmem:[%s335 + $0x60] sm:$0xf]
        %v427 = vld [vmem:[%s335 + $0x64] sm:$0xf]
        %v428 = vld [vmem:[%s335 + $0x68] sm:$0xf]
        %v429 = vld [vmem:[%s335 + $0x6c] sm:$0xf]
        %v430 = vld [vmem:[%s335 + $0x70] sm:$0xf]
        %v431 = vld [vmem:[%s335 + $0x74] sm:$0xf]
        %v432 = vld [vmem:[%s335 + $0x78] sm:$0xf]
        %v433 = vld [vmem:[%s335 + $0x7c] sm:$0xf]
        %v450 = vunpack.c.l.b16 %v386
        %v451 = vunpack.c.h.b16 %v386
        %v452 = vunpack.c.l.b16 %v387
        %v453 = vunpack.c.h.b16 %v387
        %v454 = vunpack.c.l.b16 %v388
        %v455 = vunpack.c.h.b16 %v388
        %v456 = vunpack.c.l.b16 %v389
        %v457 = vunpack.c.h.b16 %v389
        %v458 = vunpack.c.l.b16 %v390
        %v459 = vunpack.c.h.b16 %v390
        %v460 = vunpack.c.l.b16 %v391
        %v461 = vunpack.c.h.b16 %v391
        %v462 = vunpack.c.l.b16 %v392
        %v463 = vunpack.c.h.b16 %v392
        %v464 = vunpack.c.l.b16 %v393
        %v465 = vunpack.c.h.b16 %v393
        %v466 = vunpack.c.l.b16 %v394
        %v467 = vunpack.c.h.b16 %v394
        %v468 = vunpack.c.l.b16 %v395
        %v469 = vunpack.c.h.b16 %v395
        %v470 = vunpack.c.l.b16 %v396
        %v471 = vunpack.c.h.b16 %v396
        %v472 = vunpack.c.l.b16 %v397
        %v473 = vunpack.c.h.b16 %v397
        %v474 = vunpack.c.l.b16 %v398
        %v475 = vunpack.c.h.b16 %v398
        %v476 = vunpack.c.l.b16 %v399
        %v477 = vunpack.c.h.b16 %v399
        %v478 = vunpack.c.l.b16 %v400
        %v479 = vunpack.c.h.b16 %v400
        %v480 = vunpack.c.l.b16 %v401
        %v481 = vunpack.c.h.b16 %v401
        %v482 = vpack.c.b16 %v452, %v450
        %v483 = vpack.c.b16 %v453, %v451
        %v484 = vpack.c.b16 %v456, %v454
        %v485 = vpack.c.b16 %v457, %v455
        %v486 = vpack.c.b16 %v460, %v458
        %v487 = vpack.c.b16 %v461, %v459
        %v488 = vpack.c.b16 %v464, %v462
        %v489 = vpack.c.b16 %v465, %v463
        %v490 = vpack.c.b16 %v468, %v466
        %v491 = vpack.c.b16 %v469, %v467
        %v492 = vpack.c.b16 %v472, %v470
        %v493 = vpack.c.b16 %v473, %v471
        %v494 = vpack.c.b16 %v476, %v474
        %v495 = vpack.c.b16 %v477, %v475
        %v496 = vpack.c.b16 %v480, %v478
        %v497 = vpack.c.b16 %v481, %v479
        %v546 = vunpack.c.l.b16 %v402
        %v547 = vunpack.c.l.b16 %v403
        %v548 = vunpack.c.l.b16 %v404
        %v549 = vunpack.c.l.b16 %v405
        %v550 = vunpack.c.l.b16 %v406
        %v551 = vunpack.c.l.b16 %v407
        %v552 = vunpack.c.l.b16 %v408
        %v553 = vunpack.c.l.b16 %v409
        %v554 = vunpack.c.l.b16 %v410
        %v555 = vunpack.c.l.b16 %v411
        %v556 = vunpack.c.l.b16 %v412
        %v557 = vunpack.c.l.b16 %v413
        %v558 = vunpack.c.l.b16 %v414
        %v559 = vunpack.c.l.b16 %v415
        %v560 = vunpack.c.l.b16 %v416
        %v561 = vunpack.c.l.b16 %v417
        %v562 = vunpack.c.l.b16 %v418
        %v563 = vunpack.c.l.b16 %v419
        %v564 = vunpack.c.l.b16 %v420
        %v565 = vunpack.c.l.b16 %v421
        %v566 = vunpack.c.l.b16 %v422
        %v567 = vunpack.c.l.b16 %v423
        %v568 = vunpack.c.l.b16 %v424
        %v569 = vunpack.c.l.b16 %v425
        %v570 = vunpack.c.l.b16 %v426
        %v571 = vunpack.c.l.b16 %v427
        %v572 = vunpack.c.l.b16 %v428
        %v573 = vunpack.c.l.b16 %v429
        %v574 = vunpack.c.l.b16 %v430
        %v575 = vunpack.c.l.b16 %v431
        %v576 = vunpack.c.l.b16 %v432
        %v577 = vunpack.c.l.b16 %v433
        %v578 = vpack.c.b16 %v547, %v546
        %v579 = vpack.c.b16 %v549, %v548
        %v580 = vpack.c.b16 %v551, %v550
        %v581 = vpack.c.b16 %v553, %v552
        %v582 = vpack.c.b16 %v555, %v554
        %v583 = vpack.c.b16 %v557, %v556
        %v584 = vpack.c.b16 %v559, %v558
        %v585 = vpack.c.b16 %v561, %v560
        %v586 = vpack.c.b16 %v563, %v562
        %v587 = vpack.c.b16 %v565, %v564
        %v588 = vpack.c.b16 %v567, %v566
        %v589 = vpack.c.b16 %v569, %v568
        %v590 = vpack.c.b16 %v571, %v570
        %v591 = vpack.c.b16 %v573, %v572
        %v592 = vpack.c.b16 %v575, %v574
        %v593 = vpack.c.b16 %v577, %v576
        %610 = vmatprep.subr.bf16.mxu0 0
        %611 = vmatpush1.bf16.msra.mxu0 %v585
        %612 = vmatprep.subr.bf16.mxu0 0
        %613 = vmatpush1.bf16.msra.mxu0 %v584
        %614 = vmatprep.subr.bf16.mxu0 0
        %615 = vmatpush1.bf16.msra.mxu0 %v583
        %616 = vmatprep.subr.bf16.mxu0 0
        %617 = vmatpush1.bf16.msra.mxu0 %v582
        %618 = vmatprep.subr.bf16.mxu0 0
        %619 = vmatpush1.bf16.msra.mxu0 %v581
        %620 = vmatprep.subr.bf16.mxu0 0
        %621 = vmatpush1.bf16.msra.mxu0 %v580
        %622 = vmatprep.subr.bf16.mxu0 0
        %623 = vmatpush1.bf16.msra.mxu0 %v579
        %624 = vmatprep.subr.bf16.mxu0 0
        %625 = vmatpush1.bf16.msra.mxu0 %v578
        %626 = vmatprep.subr.bf16.mxu0 0
        %627 = vmatpush2.bf16.msra.mxu0 %v593
        %628 = vmatprep.subr.bf16.mxu0 0
        %629 = vmatpush2.bf16.msra.mxu0 %v592
        %630 = vmatprep.subr.bf16.mxu0 0
        %631 = vmatpush2.bf16.msra.mxu0 %v591
        %632 = vmatprep.subr.bf16.mxu0 0
        %633 = vmatpush2.bf16.msra.mxu0 %v590
        %634 = vmatprep.subr.bf16.mxu0 0
        %635 = vmatpush2.bf16.msra.mxu0 %v589
        %636 = vmatprep.subr.bf16.mxu0 0
        %637 = vmatpush2.bf16.msra.mxu0 %v588
        %638 = vmatprep.subr.bf16.mxu0 0
        %639 = vmatpush2.bf16.msra.mxu0 %v587
        %640 = vmatprep.subr.bf16.mxu0 0
        %641 = vmatpush2.bf16.msra.mxu0 %v586
        %642 = vmatprep.mubr.bf16.mxu0 %v483
        %643 = vmatmul.mubr.bf16.gmra.mxu0 %v482
        %v644 = vpop.f32.mrf.mxu0
        %v645 = vadd.f32 0.0, %v644
        %v646 = vpop.f32.mrf.mxu0
        %v647 = vpop.f32.mrf.mxu0
        %v648 = vadd.f32 0.0, %v647
        %v649 = vpop.f32.mrf.mxu0
        %650 = vmatprep.mubr.bf16.mxu0 %v485
        %651 = vmatmul.mubr.bf16.gmra.mxu0 %v484
        %v652 = vpop.f32.mrf.mxu0
        %v653 = vadd.f32 0.0, %v652
        %v654 = vpop.f32.mrf.mxu0
        %v655 = vpop.f32.mrf.mxu0
        %v656 = vadd.f32 0.0, %v655
        %v657 = vpop.f32.mrf.mxu0
        %658 = vmatprep.mubr.bf16.mxu0 %v487
        %659 = vmatmul.mubr.bf16.gmra.mxu0 %v486
        %v660 = vpop.f32.mrf.mxu0
        %v661 = vadd.f32 0.0, %v660
        %v662 = vpop.f32.mrf.mxu0
        %v663 = vpop.f32.mrf.mxu0
        %v664 = vadd.f32 0.0, %v663
        %v665 = vpop.f32.mrf.mxu0
        %666 = vmatprep.mubr.bf16.mxu0 %v489
        %667 = vmatmul.mubr.bf16.gmra.mxu0 %v488
        %v668 = vpop.f32.mrf.mxu0
        %v669 = vadd.f32 0.0, %v668
        %v670 = vpop.f32.mrf.mxu0
        %v671 = vpop.f32.mrf.mxu0
        %v672 = vadd.f32 0.0, %v671
        %v673 = vpop.f32.mrf.mxu0
        %674 = vmatprep.mubr.bf16.mxu0 %v491
        %675 = vmatmul.mubr.bf16.gmra.mxu0 %v490
        %v676 = vpop.f32.mrf.mxu0
        %v677 = vadd.f32 0.0, %v676
        %v678 = vpop.f32.mrf.mxu0
        %v679 = vpop.f32.mrf.mxu0
        %v680 = vadd.f32 0.0, %v679
        %v681 = vpop.f32.mrf.mxu0
        %682 = vmatprep.mubr.bf16.mxu0 %v493
        %683 = vmatmul.mubr.bf16.gmra.mxu0 %v492
        %v684 = vpop.f32.mrf.mxu0
        %v685 = vadd.f32 0.0, %v684
        %v686 = vpop.f32.mrf.mxu0
        %v687 = vpop.f32.mrf.mxu0
        %v688 = vadd.f32 0.0, %v687
        %v689 = vpop.f32.mrf.mxu0
        %690 = vmatprep.mubr.bf16.mxu0 %v495
        %691 = vmatmul.mubr.bf16.gmra.mxu0 %v494
        %v692 = vpop.f32.mrf.mxu0
        %v693 = vadd.f32 0.0, %v692
        %v694 = vpop.f32.mrf.mxu0
        %v695 = vpop.f32.mrf.mxu0
        %v696 = vadd.f32 0.0, %v695
        %v697 = vpop.f32.mrf.mxu0
        %698 = vmatprep.mubr.bf16.mxu0 %v497
        %699 = vmatmul.mubr.bf16.gmra.mxu0 %v496
        %v700 = vpop.f32.mrf.mxu0
        %v701 = vadd.f32 0.0, %v700
        %v702 = vpop.f32.mrf.mxu0
        %v703 = vpop.f32.mrf.mxu0
        %v704 = vadd.f32 0.0, %v703
        %v705 = vpop.f32.mrf.mxu0
        %706 = vdwg.mxu0
        %v707 = vadd.f32 %v370, %v645
        %v708 = vadd.f32 %v371, %v648
        %v709 = vadd.f32 %v372, %v653
        %v710 = vadd.f32 %v373, %v656
        %v711 = vadd.f32 %v374, %v661
        %v712 = vadd.f32 %v375, %v664
        %v713 = vadd.f32 %v376, %v669
        %v714 = vadd.f32 %v377, %v672
        %v715 = vadd.f32 %v378, %v677
        %v716 = vadd.f32 %v379, %v680
        %v717 = vadd.f32 %v380, %v685
        %v718 = vadd.f32 %v381, %v688
        %v719 = vadd.f32 %v382, %v693
        %v720 = vadd.f32 %v383, %v696
        %v721 = vadd.f32 %v384, %v701
        %v722 = vadd.f32 %v385, %v704
        %723 = vst [vmem:[#allocation2] sm:$0xff] %v707
        %724 = vst [vmem:[#allocation2 + $0x8] sm:$0xff] %v708
        %725 = vst [vmem:[#allocation2 + $0x10] sm:$0xff] %v709
        %726 = vst [vmem:[#allocation2 + $0x18] sm:$0xff] %v710
        %727 = vst [vmem:[#allocation2 + $0x20] sm:$0xff] %v711
        %728 = vst [vmem:[#allocation2 + $0x28] sm:$0xff] %v712
        %729 = vst [vmem:[#allocation2 + $0x30] sm:$0xff] %v713
        %730 = vst [vmem:[#allocation2 + $0x38] sm:$0xff] %v714
        %731 = vst [vmem:[#allocation2 + $0x40] sm:$0xff] %v715
        %732 = vst [vmem:[#allocation2 + $0x48] sm:$0xff] %v716
        %733 = vst [vmem:[#allocation2 + $0x50] sm:$0xff] %v717
        %734 = vst [vmem:[#allocation2 + $0x58] sm:$0xff] %v718
        %735 = vst [vmem:[#allocation2 + $0x60] sm:$0xff] %v719
        %736 = vst [vmem:[#allocation2 + $0x68] sm:$0xff] %v720
        %737 = vst [vmem:[#allocation2 + $0x70] sm:$0xff] %v721
        %738 = vst [vmem:[#allocation2 + $0x78] sm:$0xff] %v722
        %p739 = scmp.eq.s32.totalorder %s21, 2
        // Predicated region
        $region75: #{simple_diffusion_forward.13} parent=65 // pred_check
          %p740 = pneg %p739
        $region76: #{simple_diffusion_forward.13} parent=65 // pred_check_branch
          %742 = sbr.rel (%p740) target = $region78
        $region77: #{simple_diffusion_forward.13} parent=65 // pred_region
          %v743 = vld [vmem:[#allocation2] sm:$0xff]
          %v744 = vld [vmem:[#allocation2 + $0x8] sm:$0xff]
          %v745 = vld [vmem:[#allocation2 + $0x10] sm:$0xff]
          %v746 = vld [vmem:[#allocation2 + $0x18] sm:$0xff]
          %v747 = vld [vmem:[#allocation2 + $0x20] sm:$0xff]
          %v748 = vld [vmem:[#allocation2 + $0x28] sm:$0xff]
          %v749 = vld [vmem:[#allocation2 + $0x30] sm:$0xff]
          %v750 = vld [vmem:[#allocation2 + $0x38] sm:$0xff]
          %v751 = vld [vmem:[#allocation2 + $0x40] sm:$0xff]
          %v752 = vld [vmem:[#allocation2 + $0x48] sm:$0xff]
          %v753 = vld [vmem:[#allocation2 + $0x50] sm:$0xff]
          %v754 = vld [vmem:[#allocation2 + $0x58] sm:$0xff]
          %v755 = vld [vmem:[#allocation2 + $0x60] sm:$0xff]
          %v756 = vld [vmem:[#allocation2 + $0x68] sm:$0xff]
          %v757 = vld [vmem:[#allocation2 + $0x70] sm:$0xff]
          %v758 = vld [vmem:[#allocation2 + $0x78] sm:$0xff]
          %v759 = vld [vmem:[%s339] sm:$0x1]
          %v761 = vlaneseq
          %v762 = vshrl.u32 %v761, 7
          %v763 = vsub.s32 0, %v762
          %v764 = vrot.slane %v759, %v763
          %v766 = vadd.f32 %v743, %v764
          %v767 = vadd.f32 %v744, %v764
          %v768 = vadd.f32 %v745, %v764
          %v769 = vadd.f32 %v746, %v764
          %v770 = vadd.f32 %v747, %v764
          %v771 = vadd.f32 %v748, %v764
          %v772 = vadd.f32 %v749, %v764
          %v773 = vadd.f32 %v750, %v764
          %v774 = vadd.f32 %v751, %v764
          %v775 = vadd.f32 %v752, %v764
          %v776 = vadd.f32 %v753, %v764
          %v777 = vadd.f32 %v754, %v764
          %v778 = vadd.f32 %v755, %v764
          %v779 = vadd.f32 %v756, %v764
          %v780 = vadd.f32 %v757, %v764
          %v781 = vadd.f32 %v758, %v764
          %v782 = vmax.f32 %v766, 0.0
          %v783 = vmax.f32 %v767, 0.0
          %v784 = vmax.f32 %v768, 0.0
          %v785 = vmax.f32 %v769, 0.0
          %v786 = vmax.f32 %v770, 0.0
          %v787 = vmax.f32 %v771, 0.0
          %v788 = vmax.f32 %v772, 0.0
          %v789 = vmax.f32 %v773, 0.0
          %v790 = vmax.f32 %v774, 0.0
          %v791 = vmax.f32 %v775, 0.0
          %v792 = vmax.f32 %v776, 0.0
          %v793 = vmax.f32 %v777, 0.0
          %v794 = vmax.f32 %v778, 0.0
          %v795 = vmax.f32 %v779, 0.0
          %v796 = vmax.f32 %v780, 0.0
          %v797 = vmax.f32 %v781, 0.0
          %798 = vst [vmem:[%s347] sm:$0xff] %v782
          %799 = vst [vmem:[%s347 + $0x8] sm:$0xff] %v783
          %800 = vst [vmem:[%s347 + $0x10] sm:$0xff] %v784
          %801 = vst [vmem:[%s347 + $0x18] sm:$0xff] %v785
          %802 = vst [vmem:[%s347 + $0x20] sm:$0xff] %v786
          %803 = vst [vmem:[%s347 + $0x28] sm:$0xff] %v787
          %804 = vst [vmem:[%s347 + $0x30] sm:$0xff] %v788
          %805 = vst [vmem:[%s347 + $0x38] sm:$0xff] %v789
          %806 = vst [vmem:[%s347 + $0x40] sm:$0xff] %v790
          %807 = vst [vmem:[%s347 + $0x48] sm:$0xff] %v791
          %808 = vst [vmem:[%s347 + $0x50] sm:$0xff] %v792
          %809 = vst [vmem:[%s347 + $0x58] sm:$0xff] %v793
          %810 = vst [vmem:[%s347 + $0x60] sm:$0xff] %v794
          %811 = vst [vmem:[%s347 + $0x68] sm:$0xff] %v795
          %812 = vst [vmem:[%s347 + $0x70] sm:$0xff] %v796
          %813 = vst [vmem:[%s347 + $0x78] sm:$0xff] %v797
        $region78: #{simple_diffusion_forward.13} parent=65 // pred_fallthru
          _
        %s814 = smul.u32 16, %s19
        %p815 = scmp.lt.s32.totalorder %s814, 15
        %s816 = scalar_select %p815, %s814, 15
        %p817 = scmp.lt.s32.totalorder %s20, 0
        %s818 = scalar_select %p817, %s20, 0
        %s819 = sadd.s32 %s818, %s816
        %s820 = smul.addr %s819, 8
        %s821 = scalar_lea.vmem %s3, %s820
        // Predicated region
        $region79: #{simple_diffusion_forward.13} parent=65 // pred_check
          %p822 = pneg %p135
        $region80: #{simple_diffusion_forward.13} parent=65 // pred_check_branch
          %824 = sbr.rel (%p822) target = $region82
        $region81: #{simple_diffusion_forward.13} parent=65 // pred_region
          %s825 = smul.u32 16, %s19
        $region82: #{simple_diffusion_forward.13} parent=65 // pred_fallthru
          _
        // Predicated region
        $region83: #{simple_diffusion_forward.13} parent=65 // pred_check
          %p826 = pneg %p135
        $region84: #{simple_diffusion_forward.13} parent=65 // pred_check_branch
          %828 = sbr.rel (%p826) target = $region86
        $region85: #{simple_diffusion_forward.13} parent=65 // pred_region
          %s829 = smul.u32 16, %s19
          %p830 = scmp.lt.s32.totalorder %s829, 15
          %s831 = scalar_select %p830, %s829, 15
          %p832 = scmp.lt.s32.totalorder %s20, 0
          %s833 = scalar_select %p832, %s20, 0
          %s834 = sadd.s32 %s833, %s831
          %s835 = smul.addr %s834, 8
          %s836 = scalar_lea.vmem %s3, %s835
        $region86: #{simple_diffusion_forward.13} parent=65 // pred_fallthru
          _
      $region66: #{simple_diffusion_forward.13} parent=5 // pred_fallthru
        _
      %p837 = scmp.le.s32.totalorder 2, %s9
      // Predicated region
      $region87: #{simple_diffusion_forward.13} parent=5 // pred_check
        %p838 = pneg %p837
      $region88: #{simple_diffusion_forward.13} parent=5 // pred_check_branch
        %840 = sbr.rel (%p838) target = $region90
      $region89: #{simple_diffusion_forward.13} parent=5 // pred_region
        %s841 = ssub.s32 %s9, 2
      $region90: #{simple_diffusion_forward.13} parent=5 // pred_fallthru
        _
    $region6: #{simple_diffusion_forward.13} parent=1 // loop_footer
      %s13 = sadd.s32 1, %s9
    $region7: #{simple_diffusion_forward.13} parent=1 // loop_footer_branch
      %8 = sbr.rel target = $region3
    $region8: #{simple_diffusion_forward.13} parent=1 // loop_exit
      _

// kernel: simple_diffusion_forward.14
$region0: #{simple_diffusion_forward.14}
  #allocation0 [shape = 'u32[]', space=smem, size = 0x4, offset = 0x4, fixed_abs, tag = 'smem constant byte address 0x4 - core index']
  #allocation1 [shape = 'u32[144,128]{1,0:T(1,128)}', space=vmem, size = 0x12000, scoped, tag = 'internal scratch']
  #allocation2 [shape = 'f32[32,128]{1,0:T(8,128)}', space=vmem, size = 0x4000, scoped, tag = 'scratch operand']
  %s0 = inlined_call_operand.vmem [shape: bf16[32,1280], index: 0, kind: input, shape index: {}]
  %s1 = inlined_call_operand.vmem [shape: bf16[1280,256], index: 1, kind: input, shape index: {}]
  %s2 = inlined_call_operand.vmem [shape: f32[1,256], index: 2, kind: input, shape index: {}]
  %s3 = inlined_call_operand.vmem [shape: f32[32,256], index: 3, kind: output, shape index: {}]
  %s4 = sld [smem:[#allocation0]]
  $region166: #{simple_diffusion_forward.14} parent=0
    _
  %s6 = ssub.s32 1, %s4
  %s7 = scalar_select 0, %s6, %s4
  $region1: #{simple_diffusion_forward.14} parent=0
    #allocation3 [shape = 'u8[32768]{0}', space=vmem, size = 0x8000, scoped, tag = 'input window, operand 0']
    #allocation4 [shape = 'u8[131072]{0}', space=vmem, size = 0x20000, scoped, tag = 'input window, operand 1']
    #allocation5 [shape = 'u8[32768]{0}', space=vmem, size = 0x8000, scoped, tag = 'output window, operand 0']
    loop: start=0, step=1, limit=12
    $region2: #{simple_diffusion_forward.14} parent=1 // loop_pre_header
      _
    $region3: #{simple_diffusion_forward.14} parent=1 // loop_header
      %s9 = sphi 0, %s13
      %p10 = scmp.ge.s32.totalorder %s9, 12
      %s16 = sphi 0, %s35
      %s17 = sphi 0, %s31
      %s18 = sphi 0, %s27
      %s19 = sphi 0, %s16
      %s20 = sphi 0, %s17
      %s21 = sphi 0, %s18
      %s22 = sphi 0, %s19
      %s23 = sphi 0, %s20
      %s24 = sphi 0, %s21
      %s40 = sphi 0, %s42
      %s43 = sphi 0, %s40
      %s44 = sphi 0, %s43
      %s60 = sphi 0, %s44
      %s68 = sphi 0, %s70
      %s71 = sphi 0, %s68
      %s72 = sphi 0, %s71
      %s88 = sphi 0, %s72
      %s94 = sphi 0, %s96
      %s97 = sphi 0, %s94
      %s98 = sphi 0, %s97
      %s114 = sphi 0, %s98
      %s122 = sphi 0, %s124
      %s125 = sphi 0, %s122
      %s126 = sphi 0, %s125
      %s142 = sphi 0, %s126
    $region4: #{simple_diffusion_forward.14} parent=1 // loop_header_branch
      %12 = sbr.rel (%p10) target = $region8
    $region5: #{simple_diffusion_forward.14} parent=1 // loop_body
      %s14 = ssub.s32 %s9, 1
      %s15 = ssub.s32 %s9, 2
      %s25 = sadd.s32 1, %s18
      %p26 = scmp.ge.s32.totalorder %s25, 5
      %s27 = scalar_select %p26, 0, %s25
      %s28 = sadd.s32 1, %s17
      %s29 = scalar_select %p26, %s28, %s17
      %p30 = scmp.ge.s32.totalorder %s29, 2
      %s31 = scalar_select %p30, 0, %s29
      %s32 = sadd.s32 1, %s16
      %s33 = scalar_select %p30, %s32, %s16
      %p34 = scmp.ge.s32.totalorder %s33, 1
      %s35 = scalar_select %p34, 0, %s33
      %s36 = ssub.s32 %s16, %s35
      %s37 = ssub.s32 %s18, %s27
      %s38 = sor.u32 %s36, %s37
      %p39 = scmp.eq.s32.totalorder %s38, 0
      %s41 = sadd.s32 %s40, 1
      %s42 = scalar_select %p39, %s40, %s41
      %p45 = pneg %p39
      %p46 = scmp.eq.s32.totalorder %s9, 9
      %p47 = por %p45, %p46
      %p48 = scmp.ne.s32.totalorder %s40, %s43
      %p49 = scmp.eq.s32.totalorder %s9, 0
      %p50 = por %p48, %p49
      %p51 = scmp.ne.s32.totalorder %s40, %s43
      %p52 = scmp.eq.s32.totalorder %s14, 9
      %p53 = por %p51, %p52
      %p54 = scmp.ne.s32.totalorder %s43, %s44
      %p55 = scmp.eq.s32.totalorder %s14, 0
      %p56 = por %p54, %p55
      %p57 = scmp.ne.s32.totalorder %s43, %s44
      %p58 = scmp.eq.s32.totalorder %s15, 9
      %p59 = por %p57, %p58
      %p61 = scmp.ne.s32.totalorder %s44, %s60
      %p62 = scmp.eq.s32.totalorder %s15, 0
      %p63 = por %p61, %p62
      %s64 = ssub.s32 %s18, %s27
      %s65 = ssub.s32 %s17, %s31
      %s66 = sor.u32 %s64, %s65
      %p67 = scmp.eq.s32.totalorder %s66, 0
      %s69 = sadd.s32 %s68, 1
      %s70 = scalar_select %p67, %s68, %s69
      %p73 = pneg %p67
      %p74 = scmp.eq.s32.totalorder %s9, 9
      %p75 = por %p73, %p74
      %p76 = scmp.ne.s32.totalorder %s68, %s71
      %p77 = scmp.eq.s32.totalorder %s9, 0
      %p78 = por %p76, %p77
      %p79 = scmp.ne.s32.totalorder %s68, %s71
      %p80 = scmp.eq.s32.totalorder %s14, 9
      %p81 = por %p79, %p80
      %p82 = scmp.ne.s32.totalorder %s71, %s72
      %p83 = scmp.eq.s32.totalorder %s14, 0
      %p84 = por %p82, %p83
      %p85 = scmp.ne.s32.totalorder %s71, %s72
      %p86 = scmp.eq.s32.totalorder %s15, 9
      %p87 = por %p85, %p86
      %p89 = scmp.ne.s32.totalorder %s72, %s88
      %p90 = scmp.eq.s32.totalorder %s15, 0
      %p91 = por %p89, %p90
      %s92 = ssub.s32 %s17, %s31
      %p93 = scmp.eq.s32.totalorder %s92, 0
      %s95 = sadd.s32 %s94, 1
      %s96 = scalar_select %p93, %s94, %s95
      %p99 = pneg %p93
      %p100 = scmp.eq.s32.totalorder %s9, 9
      %p101 = por %p99, %p100
      %p102 = scmp.ne.s32.totalorder %s94, %s97
      %p103 = scmp.eq.s32.totalorder %s9, 0
      %p104 = por %p102, %p103
      %p105 = scmp.ne.s32.totalorder %s94, %s97
      %p106 = scmp.eq.s32.totalorder %s14, 9
      %p107 = por %p105, %p106
      %p108 = scmp.ne.s32.totalorder %s97, %s98
      %p109 = scmp.eq.s32.totalorder %s14, 0
      %p110 = por %p108, %p109
      %p111 = scmp.ne.s32.totalorder %s97, %s98
      %p112 = scmp.eq.s32.totalorder %s15, 9
      %p113 = por %p111, %p112
      %p115 = scmp.ne.s32.totalorder %s98, %s114
      %p116 = scmp.eq.s32.totalorder %s15, 0
      %p117 = por %p115, %p116
      %s118 = ssub.s32 %s16, %s35
      %s119 = ssub.s32 %s17, %s31
      %s120 = sor.u32 %s118, %s119
      %p121 = scmp.eq.s32.totalorder %s120, 0
      %s123 = sadd.s32 %s122, 1
      %s124 = scalar_select %p121, %s122, %s123
      %p127 = pneg %p121
      %p128 = scmp.eq.s32.totalorder %s9, 9
      %p129 = por %p127, %p128
      %p130 = scmp.ne.s32.totalorder %s122, %s125
      %p131 = scmp.eq.s32.totalorder %s9, 0
      %p132 = por %p130, %p131
      %p133 = scmp.ne.s32.totalorder %s122, %s125
      %p134 = scmp.eq.s32.totalorder %s14, 9
      %p135 = por %p133, %p134
      %p136 = scmp.ne.s32.totalorder %s125, %s126
      %p137 = scmp.eq.s32.totalorder %s14, 0
      %p138 = por %p136, %p137
      %p139 = scmp.ne.s32.totalorder %s125, %s126
      %p140 = scmp.eq.s32.totalorder %s15, 9
      %p141 = por %p139, %p140
      %p143 = scmp.ne.s32.totalorder %s126, %s142
      %p144 = scmp.eq.s32.totalorder %s15, 0
      %p145 = por %p143, %p144
      %p146 = scmp.le.s32.totalorder 1, %s9
      %p147 = scmp.lt.s32.totalorder %s9, 11
      %p148 = pnand %p146, %p147
      %p149 = pneg %p148
      // Predicated region
      $region9: #{simple_diffusion_forward.14} parent=5 // pred_check
        _
      $region10: #{simple_diffusion_forward.14} parent=5 // pred_check_branch
        %151 = sbr.rel (%p148) target = $region12
      $region11: #{simple_diffusion_forward.14} parent=5 // pred_region
        %s152 = ssub.s32 %s9, 1
      $region12: #{simple_diffusion_forward.14} parent=5 // pred_fallthru
        _
      %p153 = scmp.lt.s32.totalorder %s9, 10
      // Predicated region
      $region13: #{simple_diffusion_forward.14} parent=5 // pred_check
        %p154 = pneg %p153
      $region14: #{simple_diffusion_forward.14} parent=5 // pred_check_branch
        %156 = sbr.rel (%p154) target = $region16
      $region15: #{simple_diffusion_forward.14} parent=5 // pred_region
        // Predicated region
        $region17: #{simple_diffusion_forward.14} parent=15 // pred_check
          %p157 = pneg %p50
        $region18: #{simple_diffusion_forward.14} parent=15 // pred_check_branch
          %159 = sbr.rel (%p157) target = $region20
        $region19: #{simple_diffusion_forward.14} parent=15 // pred_region
          %s160 = sand.u32 %s40, 1
          %s161 = sand.u32 %s40, 1
          %s162 = smul.addr %s161, 32
          %s163 = scalar_lea.vmem [#allocation3], %s162
          %s164 = smul.u32 4, %s16
          %s165 = smul.u32 2, %s18
          %s166 = smul.addr %s164, 10
          %s167 = sadd.s32 %s165, %s166
          %s168 = smul.addr %s167, 4
          %s169 = scalar_lea.vmem %s0, %s168
          // Predicated region
          $region21: #{simple_diffusion_forward.14} parent=19 // pred_check
            _
          $region22: #{simple_diffusion_forward.14} parent=19 // pred_check_branch
            %171 = sbr.rel (0) target = $region24
          $region23: #{simple_diffusion_forward.14} parent=19 // pred_region
            // Predicated region
            $region25: #{simple_diffusion_forward.14} parent=23 // pred_check
              _
            $region26: #{simple_diffusion_forward.14} parent=23 // pred_check_branch
              %173 = sbr.rel (0) target = $region28
            $region27: #{simple_diffusion_forward.14} parent=23 // pred_region
              // Predicated region
              $region40: #{simple_diffusion_forward.14} parent=27 // pred_check
                _
              $region41: #{simple_diffusion_forward.14} parent=27 // pred_check_branch
                %195 = sbr.rel (0) target = $region43
              $region42: #{simple_diffusion_forward.14} parent=27 // pred_region
                loop: start=0, step=1, limit=1
                $region44: #{simple_diffusion_forward.14} parent=42 // loop_pre_header
                  _
                $region45: #{simple_diffusion_forward.14} parent=42 // loop_header
                  %s197 = sphi 0, %s201
                  %p198 = scmp.ge.s32.totalorder %s197, 1
                  %s202 = sphi %s169, %s169
                  %s203 = sphi %s163, %s163
                $region46: #{simple_diffusion_forward.14} parent=42 // loop_header_branch
                  %200 = sbr.rel (%p198) target = $region50
                $region47: #{simple_diffusion_forward.14} parent=42 // loop_body
                  %v204 = vld [vmem:[%s202] sm:$0xff]
                  %205 = vst [vmem:[%s203] sm:$0xff] %v204
                  %v206 = vld [vmem:[%s202 + $0x28] sm:$0xff]
                  %207 = vst [vmem:[%s203 + $0x8] sm:$0xff] %v206
                  %v208 = vld [vmem:[%s202 + $0x50] sm:$0xff]
                  %209 = vst [vmem:[%s203 + $0x10] sm:$0xff] %v208
                  %v210 = vld [vmem:[%s202 + $0x78] sm:$0xff]
                  %211 = vst [vmem:[%s203 + $0x18] sm:$0xff] %v210
                $region48: #{simple_diffusion_forward.14} parent=42 // loop_footer
                  %s201 = sadd.s32 1, %s197
                $region49: #{simple_diffusion_forward.14} parent=42 // loop_footer_branch
                  %196 = sbr.rel target = $region45
                $region50: #{simple_diffusion_forward.14} parent=42 // loop_exit
                  _
              $region43: #{simple_diffusion_forward.14} parent=27 // pred_fallthru
                _
              // Predicated region
              $region51: #{simple_diffusion_forward.14} parent=27 // pred_check
                _
              $region52: #{simple_diffusion_forward.14} parent=27 // pred_check_branch
                %213 = sbr.rel target = $region54
              $region53: #{simple_diffusion_forward.14} parent=27 // pred_region
                _
              $region54: #{simple_diffusion_forward.14} parent=27 // pred_fallthru
                _
            $region28: #{simple_diffusion_forward.14} parent=23 // pred_fallthru
              _
            // Predicated region
            $region29: #{simple_diffusion_forward.14} parent=23 // pred_check
              _
            $region30: #{simple_diffusion_forward.14} parent=23 // pred_check_branch
              %175 = sbr.rel target = $region32
            $region31: #{simple_diffusion_forward.14} parent=23 // pred_region
              %s177 = ssub.s32 256, 1
              loop: start=0, step=1, limit=1
              $region33: #{simple_diffusion_forward.14} parent=31 // loop_pre_header
                _
              $region34: #{simple_diffusion_forward.14} parent=31 // loop_header
                %s179 = sphi 0, %s183
                %p180 = scmp.ge.s32.totalorder %s179, 1
                %s184 = sphi %s169, %s169
                %s185 = sphi %s163, %s163
              $region35: #{simple_diffusion_forward.14} parent=31 // loop_header_branch
                %182 = sbr.rel (%p180) target = $region39
              $region36: #{simple_diffusion_forward.14} parent=31 // loop_body
                %v186 = vld [vmem:[%s184] sm:%s177]
                %187 = vst [vmem:[%s185] sm:%s177] %v186
                %v188 = vld [vmem:[%s184 + $0x28] sm:%s177]
                %189 = vst [vmem:[%s185 + $0x8] sm:%s177] %v188
                %v190 = vld [vmem:[%s184 + $0x50] sm:%s177]
                %191 = vst [vmem:[%s185 + $0x10] sm:%s177] %v190
                %v192 = vld [vmem:[%s184 + $0x78] sm:%s177]
                %193 = vst [vmem:[%s185 + $0x18] sm:%s177] %v192
              $region37: #{simple_diffusion_forward.14} parent=31 // loop_footer
                %s183 = sadd.s32 1, %s179
              $region38: #{simple_diffusion_forward.14} parent=31 // loop_footer_branch
                %178 = sbr.rel target = $region34
              $region39: #{simple_diffusion_forward.14} parent=31 // loop_exit
                _
            $region32: #{simple_diffusion_forward.14} parent=23 // pred_fallthru
              _
          $region24: #{simple_diffusion_forward.14} parent=19 // pred_fallthru
            _
          %214 = vnop
        $region20: #{simple_diffusion_forward.14} parent=15 // pred_fallthru
          _
        // Predicated region
        $region55: #{simple_diffusion_forward.14} parent=15 // pred_check
          %p215 = pneg %p78
        $region56: #{simple_diffusion_forward.14} parent=15 // pred_check_branch
          %217 = sbr.rel (%p215) target = $region58
        $region57: #{simple_diffusion_forward.14} parent=15 // pred_region
          %s218 = sand.u32 %s68, 1
          %s219 = sand.u32 %s68, 1
          %s220 = smul.addr %s219, 128
          %s221 = scalar_lea.vmem [#allocation4], %s220
          %s222 = smul.u32 32, %s18
          %s223 = smul.addr %s222, 2
          %s224 = sadd.s32 %s17, %s223
          %s225 = smul.addr %s224, 4
          %s226 = scalar_lea.vmem %s1, %s225
          // Predicated region
          $region59: #{simple_diffusion_forward.14} parent=57 // pred_check
            _
          $region60: #{simple_diffusion_forward.14} parent=57 // pred_check_branch
            %228 = sbr.rel (0) target = $region62
          $region61: #{simple_diffusion_forward.14} parent=57 // pred_region
            // Predicated region
            $region63: #{simple_diffusion_forward.14} parent=61 // pred_check
              _
            $region64: #{simple_diffusion_forward.14} parent=61 // pred_check_branch
              %230 = sbr.rel target = $region66
            $region65: #{simple_diffusion_forward.14} parent=61 // pred_region
              // Predicated region
              $region78: #{simple_diffusion_forward.14} parent=65 // pred_check
                _
              $region79: #{simple_diffusion_forward.14} parent=65 // pred_check_branch
                %308 = sbr.rel (0) target = $region81
              $region80: #{simple_diffusion_forward.14} parent=65 // pred_region
                loop: start=0, step=1, limit=1
                $region82: #{simple_diffusion_forward.14} parent=80 // loop_pre_header
                  _
                $region83: #{simple_diffusion_forward.14} parent=80 // loop_header
                  %s310 = sphi 0, %s314
                  %p311 = scmp.ge.s32.totalorder %s310, 1
                  %s315 = sphi %s226, %s226
                  %s316 = sphi %s221, %s221
                $region84: #{simple_diffusion_forward.14} parent=80 // loop_header_branch
                  %313 = sbr.rel (%p311) target = $region88
                $region85: #{simple_diffusion_forward.14} parent=80 // loop_body
                  _
                $region86: #{simple_diffusion_forward.14} parent=80 // loop_footer
                  %s314 = sadd.s32 1, %s310
                $region87: #{simple_diffusion_forward.14} parent=80 // loop_footer_branch
                  %309 = sbr.rel target = $region83
                $region88: #{simple_diffusion_forward.14} parent=80 // loop_exit
                  _
                %s318 = ssub.s32 16, 1
                loop: start=0, step=1, limit=1
                $region89: #{simple_diffusion_forward.14} parent=80 // loop_pre_header
                  _
                $region90: #{simple_diffusion_forward.14} parent=80 // loop_header
                  %s320 = sphi 0, %s324
                  %p321 = scmp.ge.s32.totalorder %s320, 1
                  %s325 = sphi %s226, %s226
                  %s326 = sphi %s221, %s221
                $region91: #{simple_diffusion_forward.14} parent=80 // loop_header_branch
                  %323 = sbr.rel (%p321) target = $region95
                $region92: #{simple_diffusion_forward.14} parent=80 // loop_body
                  %v327 = vld [vmem:[%s325] sm:%s318]
                  %328 = vst [vmem:[%s326] sm:%s318] %v327
                  %v329 = vld [vmem:[%s325 + $0x8] sm:%s318]
                  %330 = vst [vmem:[%s326 + $0x4] sm:%s318] %v329
                  %v331 = vld [vmem:[%s325 + $0x10] sm:%s318]
                  %332 = vst [vmem:[%s326 + $0x8] sm:%s318] %v331
                  %v333 = vld [vmem:[%s325 + $0x18] sm:%s318]
                  %334 = vst [vmem:[%s326 + $0xc] sm:%s318] %v333
                  %v335 = vld [vmem:[%s325 + $0x20] sm:%s318]
                  %336 = vst [vmem:[%s326 + $0x10] sm:%s318] %v335
                  %v337 = vld [vmem:[%s325 + $0x28] sm:%s318]
                  %338 = vst [vmem:[%s326 + $0x14] sm:%s318] %v337
                  %v339 = vld [vmem:[%s325 + $0x30] sm:%s318]
                  %340 = vst [vmem:[%s326 + $0x18] sm:%s318] %v339
                  %v341 = vld [vmem:[%s325 + $0x38] sm:%s318]
                  %342 = vst [vmem:[%s326 + $0x1c] sm:%s318] %v341
                  %v343 = vld [vmem:[%s325 + $0x40] sm:%s318]
                  %344 = vst [vmem:[%s326 + $0x20] sm:%s318] %v343
                  %v345 = vld [vmem:[%s325 + $0x48] sm:%s318]
                  %346 = vst [vmem:[%s326 + $0x24] sm:%s318] %v345
                  %v347 = vld [vmem:[%s325 + $0x50] sm:%s318]
                  %348 = vst [vmem:[%s326 + $0x28] sm:%s318] %v347
                  %v349 = vld [vmem:[%s325 + $0x58] sm:%s318]
                  %350 = vst [vmem:[%s326 + $0x2c] sm:%s318] %v349
                  %v351 = vld [vmem:[%s325 + $0x60] sm:%s318]
                  %352 = vst [vmem:[%s326 + $0x30] sm:%s318] %v351
                  %v353 = vld [vmem:[%s325 + $0x68] sm:%s318]
                  %354 = vst [vmem:[%s326 + $0x34] sm:%s318] %v353
                  %v355 = vld [vmem:[%s325 + $0x70] sm:%s318]
                  %356 = vst [vmem:[%s326 + $0x38] sm:%s318] %v355
                  %v357 = vld [vmem:[%s325 + $0x78] sm:%s318]
                  %358 = vst [vmem:[%s326 + $0x3c] sm:%s318] %v357
                  %v359 = vld [vmem:[%s325 + $0x80] sm:%s318]
                  %360 = vst [vmem:[%s326 + $0x40] sm:%s318] %v359
                  %v361 = vld [vmem:[%s325 + $0x88] sm:%s318]
                  %362 = vst [vmem:[%s326 + $0x44] sm:%s318] %v361
                  %v363 = vld [vmem:[%s325 + $0x90] sm:%s318]
                  %364 = vst [vmem:[%s326 + $0x48] sm:%s318] %v363
                  %v365 = vld [vmem:[%s325 + $0x98] sm:%s318]
                  %366 = vst [vmem:[%s326 + $0x4c] sm:%s318] %v365
                  %v367 = vld [vmem:[%s325 + $0xa0] sm:%s318]
                  %368 = vst [vmem:[%s326 + $0x50] sm:%s318] %v367
                  %v369 = vld [vmem:[%s325 + $0xa8] sm:%s318]
                  %370 = vst [vmem:[%s326 + $0x54] sm:%s318] %v369
                  %v371 = vld [vmem:[%s325 + $0xb0] sm:%s318]
                  %372 = vst [vmem:[%s326 + $0x58] sm:%s318] %v371
                  %v373 = vld [vmem:[%s325 + $0xb8] sm:%s318]
                  %374 = vst [vmem:[%s326 + $0x5c] sm:%s318] %v373
                  %v375 = vld [vmem:[%s325 + $0xc0] sm:%s318]
                  %376 = vst [vmem:[%s326 + $0x60] sm:%s318] %v375
                  %v377 = vld [vmem:[%s325 + $0xc8] sm:%s318]
                  %378 = vst [vmem:[%s326 + $0x64] sm:%s318] %v377
                  %v379 = vld [vmem:[%s325 + $0xd0] sm:%s318]
                  %380 = vst [vmem:[%s326 + $0x68] sm:%s318] %v379
                  %v381 = vld [vmem:[%s325 + $0xd8] sm:%s318]
                  %382 = vst [vmem:[%s326 + $0x6c] sm:%s318] %v381
                  %v383 = vld [vmem:[%s325 + $0xe0] sm:%s318]
                  %384 = vst [vmem:[%s326 + $0x70] sm:%s318] %v383
                  %v385 = vld [vmem:[%s325 + $0xe8] sm:%s318]
                  %386 = vst [vmem:[%s326 + $0x74] sm:%s318] %v385
                  %v387 = vld [vmem:[%s325 + $0xf0] sm:%s318]
                  %388 = vst [vmem:[%s326 + $0x78] sm:%s318] %v387
                  %v389 = vld [vmem:[%s325 + $0xf8] sm:%s318]
                  %390 = vst [vmem:[%s326 + $0x7c] sm:%s318] %v389
                $region93: #{simple_diffusion_forward.14} parent=80 // loop_footer
                  %s324 = sadd.s32 1, %s320
                $region94: #{simple_diffusion_forward.14} parent=80 // loop_footer_branch
                  %319 = sbr.rel target = $region90
                $region95: #{simple_diffusion_forward.14} parent=80 // loop_exit
                  _
              $region81: #{simple_diffusion_forward.14} parent=65 // pred_fallthru
                _
            $region66: #{simple_diffusion_forward.14} parent=61 // pred_fallthru
              _
            // Predicated region
            $region67: #{simple_diffusion_forward.14} parent=61 // pred_check
              _
            $region68: #{simple_diffusion_forward.14} parent=61 // pred_check_branch
              %232 = sbr.rel (0) target = $region70
            $region69: #{simple_diffusion_forward.14} parent=61 // pred_region
              %s234 = ssub.s32 16, 1
              loop: start=0, step=1, limit=1
              $region71: #{simple_diffusion_forward.14} parent=69 // loop_pre_header
                _
              $region72: #{simple_diffusion_forward.14} parent=69 // loop_header
                %s236 = sphi 0, %s240
                %p237 = scmp.ge.s32.totalorder %s236, 1
                %s241 = sphi %s226, %s226
                %s242 = sphi %s221, %s221
              $region73: #{simple_diffusion_forward.14} parent=69 // loop_header_branch
                %239 = sbr.rel (%p237) target = $region77
              $region74: #{simple_diffusion_forward.14} parent=69 // loop_body
                %v243 = vld [vmem:[%s241] sm:%s234]
                %244 = vst [vmem:[%s242] sm:%s234] %v243
                %v245 = vld [vmem:[%s241 + $0x8] sm:%s234]
                %246 = vst [vmem:[%s242 + $0x4] sm:%s234] %v245
                %v247 = vld [vmem:[%s241 + $0x10] sm:%s234]
                %248 = vst [vmem:[%s242 + $0x8] sm:%s234] %v247
                %v249 = vld [vmem:[%s241 + $0x18] sm:%s234]
                %250 = vst [vmem:[%s242 + $0xc] sm:%s234] %v249
                %v251 = vld [vmem:[%s241 + $0x20] sm:%s234]
                %252 = vst [vmem:[%s242 + $0x10] sm:%s234] %v251
                %v253 = vld [vmem:[%s241 + $0x28] sm:%s234]
                %254 = vst [vmem:[%s242 + $0x14] sm:%s234] %v253
                %v255 = vld [vmem:[%s241 + $0x30] sm:%s234]
                %256 = vst [vmem:[%s242 + $0x18] sm:%s234] %v255
                %v257 = vld [vmem:[%s241 + $0x38] sm:%s234]
                %258 = vst [vmem:[%s242 + $0x1c] sm:%s234] %v257
                %v259 = vld [vmem:[%s241 + $0x40] sm:%s234]
                %260 = vst [vmem:[%s242 + $0x20] sm:%s234] %v259
                %v261 = vld [vmem:[%s241 + $0x48] sm:%s234]
                %262 = vst [vmem:[%s242 + $0x24] sm:%s234] %v261
                %v263 = vld [vmem:[%s241 + $0x50] sm:%s234]
                %264 = vst [vmem:[%s242 + $0x28] sm:%s234] %v263
                %v265 = vld [vmem:[%s241 + $0x58] sm:%s234]
                %266 = vst [vmem:[%s242 + $0x2c] sm:%s234] %v265
                %v267 = vld [vmem:[%s241 + $0x60] sm:%s234]
                %268 = vst [vmem:[%s242 + $0x30] sm:%s234] %v267
                %v269 = vld [vmem:[%s241 + $0x68] sm:%s234]
                %270 = vst [vmem:[%s242 + $0x34] sm:%s234] %v269
                %v271 = vld [vmem:[%s241 + $0x70] sm:%s234]
                %272 = vst [vmem:[%s242 + $0x38] sm:%s234] %v271
                %v273 = vld [vmem:[%s241 + $0x78] sm:%s234]
                %274 = vst [vmem:[%s242 + $0x3c] sm:%s234] %v273
                %v275 = vld [vmem:[%s241 + $0x80] sm:%s234]
                %276 = vst [vmem:[%s242 + $0x40] sm:%s234] %v275
                %v277 = vld [vmem:[%s241 + $0x88] sm:%s234]
                %278 = vst [vmem:[%s242 + $0x44] sm:%s234] %v277
                %v279 = vld [vmem:[%s241 + $0x90] sm:%s234]
                %280 = vst [vmem:[%s242 + $0x48] sm:%s234] %v279
                %v281 = vld [vmem:[%s241 + $0x98] sm:%s234]
                %282 = vst [vmem:[%s242 + $0x4c] sm:%s234] %v281
                %v283 = vld [vmem:[%s241 + $0xa0] sm:%s234]
                %284 = vst [vmem:[%s242 + $0x50] sm:%s234] %v283
                %v285 = vld [vmem:[%s241 + $0xa8] sm:%s234]
                %286 = vst [vmem:[%s242 + $0x54] sm:%s234] %v285
                %v287 = vld [vmem:[%s241 + $0xb0] sm:%s234]
                %288 = vst [vmem:[%s242 + $0x58] sm:%s234] %v287
                %v289 = vld [vmem:[%s241 + $0xb8] sm:%s234]
                %290 = vst [vmem:[%s242 + $0x5c] sm:%s234] %v289
                %v291 = vld [vmem:[%s241 + $0xc0] sm:%s234]
                %292 = vst [vmem:[%s242 + $0x60] sm:%s234] %v291
                %v293 = vld [vmem:[%s241 + $0xc8] sm:%s234]
                %294 = vst [vmem:[%s242 + $0x64] sm:%s234] %v293
                %v295 = vld [vmem:[%s241 + $0xd0] sm:%s234]
                %296 = vst [vmem:[%s242 + $0x68] sm:%s234] %v295
                %v297 = vld [vmem:[%s241 + $0xd8] sm:%s234]
                %298 = vst [vmem:[%s242 + $0x6c] sm:%s234] %v297
                %v299 = vld [vmem:[%s241 + $0xe0] sm:%s234]
                %300 = vst [vmem:[%s242 + $0x70] sm:%s234] %v299
                %v301 = vld [vmem:[%s241 + $0xe8] sm:%s234]
                %302 = vst [vmem:[%s242 + $0x74] sm:%s234] %v301
                %v303 = vld [vmem:[%s241 + $0xf0] sm:%s234]
                %304 = vst [vmem:[%s242 + $0x78] sm:%s234] %v303
                %v305 = vld [vmem:[%s241 + $0xf8] sm:%s234]
                %306 = vst [vmem:[%s242 + $0x7c] sm:%s234] %v305
              $region75: #{simple_diffusion_forward.14} parent=69 // loop_footer
                %s240 = sadd.s32 1, %s236
              $region76: #{simple_diffusion_forward.14} parent=69 // loop_footer_branch
                %235 = sbr.rel target = $region72
              $region77: #{simple_diffusion_forward.14} parent=69 // loop_exit
                _
            $region70: #{simple_diffusion_forward.14} parent=61 // pred_fallthru
              _
          $region62: #{simple_diffusion_forward.14} parent=57 // pred_fallthru
            _
          %391 = vnop
        $region58: #{simple_diffusion_forward.14} parent=15 // pred_fallthru
          _
        // Predicated region
        $region96: #{simple_diffusion_forward.14} parent=15 // pred_check
          %p392 = pneg %p104
        $region97: #{simple_diffusion_forward.14} parent=15 // pred_check_branch
          %394 = sbr.rel (%p392) target = $region99
        $region98: #{simple_diffusion_forward.14} parent=15 // pred_region
          %p395 = scmp.lt.s32.totalorder %s17, 1
          %s396 = scalar_select %p395, %s17, 1
          %s397 = scalar_lea.vmem %s2, %s396
        $region99: #{simple_diffusion_forward.14} parent=15 // pred_fallthru
          _
      $region16: #{simple_diffusion_forward.14} parent=5 // pred_fallthru
        _
      %p398 = scmp.le.s32.totalorder 1, %s9
      %p399 = scmp.lt.s32.totalorder %s9, 11
      %p400 = pnand %p398, %p399
      %p401 = pneg %p400
      // Predicated region
      $region100: #{simple_diffusion_forward.14} parent=5 // pred_check
        _
      $region101: #{simple_diffusion_forward.14} parent=5 // pred_check_branch
        %403 = sbr.rel (%p400) target = $region103
      $region102: #{simple_diffusion_forward.14} parent=5 // pred_region
        %s404 = ssub.s32 %s9, 1
        %s405 = sand.u32 %s43, 1
        %s406 = sand.u32 %s43, 1
        %s407 = smul.addr %s406, 32
        %s408 = scalar_lea.vmem [#allocation3], %s407
        // Predicated region
        $region104: #{simple_diffusion_forward.14} parent=102 // pred_check
          %p409 = pneg %p56
        $region105: #{simple_diffusion_forward.14} parent=102 // pred_check_branch
          %411 = sbr.rel (%p409) target = $region107
        $region106: #{simple_diffusion_forward.14} parent=102 // pred_region
          _
        $region107: #{simple_diffusion_forward.14} parent=102 // pred_fallthru
          _
        %s412 = sand.u32 %s71, 1
        %s413 = sand.u32 %s71, 1
        %s414 = smul.addr %s413, 128
        %s415 = scalar_lea.vmem [#allocation4], %s414
        // Predicated region
        $region108: #{simple_diffusion_forward.14} parent=102 // pred_check
          %p416 = pneg %p84
        $region109: #{simple_diffusion_forward.14} parent=102 // pred_check_branch
          %418 = sbr.rel (%p416) target = $region111
        $region110: #{simple_diffusion_forward.14} parent=102 // pred_region
          _
        $region111: #{simple_diffusion_forward.14} parent=102 // pred_fallthru
          _
        %s419 = sand.u32 %s43, 1
        %s420 = sand.u32 %s43, 1
        %s421 = smul.addr %s420, 32
        %s422 = scalar_lea.vmem [#allocation3], %s421
        %p423 = pneg %p56
        %p424 = pneg %p53
        %s425 = sand.u32 %s71, 1
        %s426 = sand.u32 %s71, 1
        %s427 = smul.addr %s426, 128
        %s428 = scalar_lea.vmem [#allocation4], %s427
        %p429 = pneg %p84
        %p430 = pneg %p81
        %p431 = scmp.lt.s32.totalorder %s20, 1
        %s432 = scalar_select %p431, %s20, 1
        %s433 = scalar_lea.vmem %s2, %s432
        %p434 = pneg %p110
        %p435 = pneg %p107
        %p436 = pneg %p138
        %p437 = pneg %p135
        %s438 = sand.u32 %s125, 1
        %s439 = sand.u32 %s125, 1
        %s440 = smul.addr %s439, 32
        %s441 = scalar_lea.vmem [#allocation5], %s440
        %s442 = smul.u32 4, %s19
        %s443 = smul.u32 2, %s21
        %s444 = smul.u32 32, %s21
        %p445 = scmp.lt.s32.totalorder %s20, 1
        %s446 = scalar_select %p445, %s20, 1
        %s447 = scalar_lea.vmem %s2, %s446
        %s448 = smul.u32 4, %s19
        %p450 = scmp.eq.s32.totalorder %s21, 0
        // Predicated region
        $region112: #{simple_diffusion_forward.14} parent=102 // pred_check
          %p451 = pneg %p450
        $region113: #{simple_diffusion_forward.14} parent=102 // pred_check_branch
          %453 = sbr.rel (%p451) target = $region115
        $region114: #{simple_diffusion_forward.14} parent=102 // pred_region
          %454 = vst [vmem:[#allocation2] sm:$0xff] 0.0
          %455 = vst [vmem:[#allocation2 + $0x8] sm:$0xff] 0.0
          %456 = vst [vmem:[#allocation2 + $0x10] sm:$0xff] 0.0
          %457 = vst [vmem:[#allocation2 + $0x18] sm:$0xff] 0.0
        $region115: #{simple_diffusion_forward.14} parent=102 // pred_fallthru
          _
        %v458 = vld [vmem:[#allocation2] sm:$0xff]
        %v459 = vld [vmem:[#allocation2 + $0x8] sm:$0xff]
        %v460 = vld [vmem:[#allocation2 + $0x10] sm:$0xff]
        %v461 = vld [vmem:[#allocation2 + $0x18] sm:$0xff]
        %v462 = vld [vmem:[%s408] sm:$0xff]
        %v463 = vld [vmem:[%s408 + $0x8] sm:$0xff]
        %v464 = vld [vmem:[%s408 + $0x10] sm:$0xff]
        %v465 = vld [vmem:[%s408 + $0x18] sm:$0xff]
        %v466 = vld [vmem:[%s415] sm:$0xf]
        %v467 = vld [vmem:[%s415 + $0x4] sm:$0xf]
        %v468 = vld [vmem:[%s415 + $0x8] sm:$0xf]
        %v469 = vld [vmem:[%s415 + $0xc] sm:$0xf]
        %v470 = vld [vmem:[%s415 + $0x10] sm:$0xf]
        %v471 = vld [vmem:[%s415 + $0x14] sm:$0xf]
        %v472 = vld [vmem:[%s415 + $0x18] sm:$0xf]
        %v473 = vld [vmem:[%s415 + $0x1c] sm:$0xf]
        %v474 = vld [vmem:[%s415 + $0x20] sm:$0xf]
        %v475 = vld [vmem:[%s415 + $0x24] sm:$0xf]
        %v476 = vld [vmem:[%s415 + $0x28] sm:$0xf]
        %v477 = vld [vmem:[%s415 + $0x2c] sm:$0xf]
        %v478 = vld [vmem:[%s415 + $0x30] sm:$0xf]
        %v479 = vld [vmem:[%s415 + $0x34] sm:$0xf]
        %v480 = vld [vmem:[%s415 + $0x38] sm:$0xf]
        %v481 = vld [vmem:[%s415 + $0x3c] sm:$0xf]
        %v482 = vld [vmem:[%s415 + $0x40] sm:$0xf]
        %v483 = vld [vmem:[%s415 + $0x44] sm:$0xf]
        %v484 = vld [vmem:[%s415 + $0x48] sm:$0xf]
        %v485 = vld [vmem:[%s415 + $0x4c] sm:$0xf]
        %v486 = vld [vmem:[%s415 + $0x50] sm:$0xf]
        %v487 = vld [vmem:[%s415 + $0x54] sm:$0xf]
        %v488 = vld [vmem:[%s415 + $0x58] sm:$0xf]
        %v489 = vld [vmem:[%s415 + $0x5c] sm:$0xf]
        %v490 = vld [vmem:[%s415 + $0x60] sm:$0xf]
        %v491 = vld [vmem:[%s415 + $0x64] sm:$0xf]
        %v492 = vld [vmem:[%s415 + $0x68] sm:$0xf]
        %v493 = vld [vmem:[%s415 + $0x6c] sm:$0xf]
        %v494 = vld [vmem:[%s415 + $0x70] sm:$0xf]
        %v495 = vld [vmem:[%s415 + $0x74] sm:$0xf]
        %v496 = vld [vmem:[%s415 + $0x78] sm:$0xf]
        %v497 = vld [vmem:[%s415 + $0x7c] sm:$0xf]
        %v502 = vunpack.c.l.b16 %v462
        %v503 = vunpack.c.h.b16 %v462
        %v504 = vunpack.c.l.b16 %v463
        %v505 = vunpack.c.h.b16 %v463
        %v506 = vunpack.c.l.b16 %v464
        %v507 = vunpack.c.h.b16 %v464
        %v508 = vunpack.c.l.b16 %v465
        %v509 = vunpack.c.h.b16 %v465
        %v510 = vpack.c.b16 %v504, %v502
        %v511 = vpack.c.b16 %v505, %v503
        %v512 = vpack.c.b16 %v508, %v506
        %v513 = vpack.c.b16 %v509, %v507
        %v550 = vunpack.c.l.b16 %v466
        %v551 = vunpack.c.l.b16 %v467
        %v552 = vunpack.c.l.b16 %v468
        %v553 = vunpack.c.l.b16 %v469
        %v554 = vunpack.c.l.b16 %v470
        %v555 = vunpack.c.l.b16 %v471
        %v556 = vunpack.c.l.b16 %v472
        %v557 = vunpack.c.l.b16 %v473
        %v558 = vunpack.c.l.b16 %v474
        %v559 = vunpack.c.l.b16 %v475
        %v560 = vunpack.c.l.b16 %v476
        %v561 = vunpack.c.l.b16 %v477
        %v562 = vunpack.c.l.b16 %v478
        %v563 = vunpack.c.l.b16 %v479
        %v564 = vunpack.c.l.b16 %v480
        %v565 = vunpack.c.l.b16 %v481
        %v566 = vunpack.c.l.b16 %v482
        %v567 = vunpack.c.l.b16 %v483
        %v568 = vunpack.c.l.b16 %v484
        %v569 = vunpack.c.l.b16 %v485
        %v570 = vunpack.c.l.b16 %v486
        %v571 = vunpack.c.l.b16 %v487
        %v572 = vunpack.c.l.b16 %v488
        %v573 = vunpack.c.l.b16 %v489
        %v574 = vunpack.c.l.b16 %v490
        %v575 = vunpack.c.l.b16 %v491
        %v576 = vunpack.c.l.b16 %v492
        %v577 = vunpack.c.l.b16 %v493
        %v578 = vunpack.c.l.b16 %v494
        %v579 = vunpack.c.l.b16 %v495
        %v580 = vunpack.c.l.b16 %v496
        %v581 = vunpack.c.l.b16 %v497
        %v582 = vpack.c.b16 %v551, %v550
        %v583 = vpack.c.b16 %v553, %v552
        %v584 = vpack.c.b16 %v555, %v554
        %v585 = vpack.c.b16 %v557, %v556
        %v586 = vpack.c.b16 %v559, %v558
        %v587 = vpack.c.b16 %v561, %v560
        %v588 = vpack.c.b16 %v563, %v562
        %v589 = vpack.c.b16 %v565, %v564
        %v590 = vpack.c.b16 %v567, %v566
        %v591 = vpack.c.b16 %v569, %v568
        %v592 = vpack.c.b16 %v571, %v570
        %v593 = vpack.c.b16 %v573, %v572
        %v594 = vpack.c.b16 %v575, %v574
        %v595 = vpack.c.b16 %v577, %v576
        %v596 = vpack.c.b16 %v579, %v578
        %v597 = vpack.c.b16 %v581, %v580
        %614 = vmatprep.subr.bf16.mxu0 0
        %615 = vmatpush1.bf16.msra.mxu0 %v589
        %616 = vmatprep.subr.bf16.mxu0 0
        %617 = vmatpush1.bf16.msra.mxu0 %v588
        %618 = vmatprep.subr.bf16.mxu0 0
        %619 = vmatpush1.bf16.msra.mxu0 %v587
        %620 = vmatprep.subr.bf16.mxu0 0
        %621 = vmatpush1.bf16.msra.mxu0 %v586
        %622 = vmatprep.subr.bf16.mxu0 0
        %623 = vmatpush1.bf16.msra.mxu0 %v585
        %624 = vmatprep.subr.bf16.mxu0 0
        %625 = vmatpush1.bf16.msra.mxu0 %v584
        %626 = vmatprep.subr.bf16.mxu0 0
        %627 = vmatpush1.bf16.msra.mxu0 %v583
        %628 = vmatprep.subr.bf16.mxu0 0
        %629 = vmatpush1.bf16.msra.mxu0 %v582
        %630 = vmatprep.subr.bf16.mxu0 0
        %631 = vmatpush2.bf16.msra.mxu0 %v597
        %632 = vmatprep.subr.bf16.mxu0 0
        %633 = vmatpush2.bf16.msra.mxu0 %v596
        %634 = vmatprep.subr.bf16.mxu0 0
        %635 = vmatpush2.bf16.msra.mxu0 %v595
        %636 = vmatprep.subr.bf16.mxu0 0
        %637 = vmatpush2.bf16.msra.mxu0 %v594
        %638 = vmatprep.subr.bf16.mxu0 0
        %639 = vmatpush2.bf16.msra.mxu0 %v593
        %640 = vmatprep.subr.bf16.mxu0 0
        %641 = vmatpush2.bf16.msra.mxu0 %v592
        %642 = vmatprep.subr.bf16.mxu0 0
        %643 = vmatpush2.bf16.msra.mxu0 %v591
        %644 = vmatprep.subr.bf16.mxu0 0
        %645 = vmatpush2.bf16.msra.mxu0 %v590
        %646 = vmatprep.mubr.bf16.mxu0 %v511
        %647 = vmatmul.mubr.bf16.gmra.mxu0 %v510
        %v648 = vpop.f32.mrf.mxu0
        %v649 = vadd.f32 0.0, %v648
        %v650 = vpop.f32.mrf.mxu0
        %v651 = vpop.f32.mrf.mxu0
        %v652 = vadd.f32 0.0, %v651
        %v653 = vpop.f32.mrf.mxu0
        %654 = vmatprep.mubr.bf16.mxu0 %v513
        %655 = vmatmul.mubr.bf16.gmra.mxu0 %v512
        %v656 = vpop.f32.mrf.mxu0
        %v657 = vadd.f32 0.0, %v656
        %v658 = vpop.f32.mrf.mxu0
        %v659 = vpop.f32.mrf.mxu0
        %v660 = vadd.f32 0.0, %v659
        %v661 = vpop.f32.mrf.mxu0
        %662 = vdwg.mxu0
        %v663 = vadd.f32 %v458, %v649
        %v664 = vadd.f32 %v459, %v652
        %v665 = vadd.f32 %v460, %v657
        %v666 = vadd.f32 %v461, %v660
        %667 = vst [vmem:[#allocation2] sm:$0xff] %v663
        %668 = vst [vmem:[#allocation2 + $0x8] sm:$0xff] %v664
        %669 = vst [vmem:[#allocation2 + $0x10] sm:$0xff] %v665
        %670 = vst [vmem:[#allocation2 + $0x18] sm:$0xff] %v666
        %p671 = scmp.eq.s32.totalorder %s21, 4
        // Predicated region
        $region116: #{simple_diffusion_forward.14} parent=102 // pred_check
          %p672 = pneg %p671
        $region117: #{simple_diffusion_forward.14} parent=102 // pred_check_branch
          %674 = sbr.rel (%p672) target = $region119
        $region118: #{simple_diffusion_forward.14} parent=102 // pred_region
          %v675 = vld [vmem:[#allocation2] sm:$0xff]
          %v676 = vld [vmem:[#allocation2 + $0x8] sm:$0xff]
          %v677 = vld [vmem:[#allocation2 + $0x10] sm:$0xff]
          %v678 = vld [vmem:[#allocation2 + $0x18] sm:$0xff]
          %v679 = vld [vmem:[%s447] sm:$0x1]
          %v681 = vlaneseq
          %v682 = vshrl.u32 %v681, 7
          %v683 = vsub.s32 0, %v682
          %v684 = vrot.slane %v679, %v683
          %v686 = vadd.f32 %v675, %v684
          %v687 = vadd.f32 %v676, %v684
          %v688 = vadd.f32 %v677, %v684
          %v689 = vadd.f32 %v678, %v684
          %v690 = vmax.f32 %v686, 0.0
          %v691 = vmax.f32 %v687, 0.0
          %v692 = vmax.f32 %v688, 0.0
          %v693 = vmax.f32 %v689, 0.0
          %694 = vst [vmem:[%s441] sm:$0xff] %v690
          %695 = vst [vmem:[%s441 + $0x8] sm:$0xff] %v691
          %696 = vst [vmem:[%s441 + $0x10] sm:$0xff] %v692
          %697 = vst [vmem:[%s441 + $0x18] sm:$0xff] %v693
        $region119: #{simple_diffusion_forward.14} parent=102 // pred_fallthru
          _
        %s698 = sand.u32 %s125, 1
        %s699 = sand.u32 %s125, 1
        %s700 = smul.addr %s699, 32
        %s701 = scalar_lea.vmem [#allocation5], %s700
        // Predicated region
        $region120: #{simple_diffusion_forward.14} parent=102 // pred_check
          %p702 = pneg %p135
        $region121: #{simple_diffusion_forward.14} parent=102 // pred_check_branch
          %704 = sbr.rel (%p702) target = $region123
        $region122: #{simple_diffusion_forward.14} parent=102 // pred_region
          %s705 = smul.u32 4, %s19
          %s706 = smul.addr %s705, 2
          %s707 = sadd.s32 %s20, %s706
          %s708 = smul.addr %s707, 8
          %s709 = scalar_lea.vmem %s3, %s708
          // Predicated region
          $region124: #{simple_diffusion_forward.14} parent=122 // pred_check
            _
          $region125: #{simple_diffusion_forward.14} parent=122 // pred_check_branch
            %711 = sbr.rel (0) target = $region127
          $region126: #{simple_diffusion_forward.14} parent=122 // pred_region
            // Predicated region
            $region128: #{simple_diffusion_forward.14} parent=126 // pred_check
              _
            $region129: #{simple_diffusion_forward.14} parent=126 // pred_check_branch
              %713 = sbr.rel (0) target = $region131
            $region130: #{simple_diffusion_forward.14} parent=126 // pred_region
              // Predicated region
              $region143: #{simple_diffusion_forward.14} parent=130 // pred_check
                _
              $region144: #{simple_diffusion_forward.14} parent=130 // pred_check_branch
                %735 = sbr.rel (0) target = $region146
              $region145: #{simple_diffusion_forward.14} parent=130 // pred_region
                loop: start=0, step=1, limit=1
                $region147: #{simple_diffusion_forward.14} parent=145 // loop_pre_header
                  _
                $region148: #{simple_diffusion_forward.14} parent=145 // loop_header
                  %s737 = sphi 0, %s741
                  %p738 = scmp.ge.s32.totalorder %s737, 1
                  %s742 = sphi %s701, %s701
                  %s743 = sphi %s709, %s709
                $region149: #{simple_diffusion_forward.14} parent=145 // loop_header_branch
                  %740 = sbr.rel (%p738) target = $region153
                $region150: #{simple_diffusion_forward.14} parent=145 // loop_body
                  %v744 = vld [vmem:[%s742] sm:$0xff]
                  %745 = vst [vmem:[%s743] sm:$0xff] %v744
                  %v746 = vld [vmem:[%s742 + $0x8] sm:$0xff]
                  %747 = vst [vmem:[%s743 + $0x10] sm:$0xff] %v746
                  %v748 = vld [vmem:[%s742 + $0x10] sm:$0xff]
                  %749 = vst [vmem:[%s743 + $0x20] sm:$0xff] %v748
                  %v750 = vld [vmem:[%s742 + $0x18] sm:$0xff]
                  %751 = vst [vmem:[%s743 + $0x30] sm:$0xff] %v750
                $region151: #{simple_diffusion_forward.14} parent=145 // loop_footer
                  %s741 = sadd.s32 1, %s737
                $region152: #{simple_diffusion_forward.14} parent=145 // loop_footer_branch
                  %736 = sbr.rel target = $region148
                $region153: #{simple_diffusion_forward.14} parent=145 // loop_exit
                  _
              $region146: #{simple_diffusion_forward.14} parent=130 // pred_fallthru
                _
              // Predicated region
              $region154: #{simple_diffusion_forward.14} parent=130 // pred_check
                _
              $region155: #{simple_diffusion_forward.14} parent=130 // pred_check_branch
                %753 = sbr.rel target = $region157
              $region156: #{simple_diffusion_forward.14} parent=130 // pred_region
                _
              $region157: #{simple_diffusion_forward.14} parent=130 // pred_fallthru
                _
            $region131: #{simple_diffusion_forward.14} parent=126 // pred_fallthru
              _
            // Predicated region
            $region132: #{simple_diffusion_forward.14} parent=126 // pred_check
              _
            $region133: #{simple_diffusion_forward.14} parent=126 // pred_check_branch
              %715 = sbr.rel target = $region135
            $region134: #{simple_diffusion_forward.14} parent=126 // pred_region
              %s717 = ssub.s32 256, 1
              loop: start=0, step=1, limit=1
              $region136: #{simple_diffusion_forward.14} parent=134 // loop_pre_header
                _
              $region137: #{simple_diffusion_forward.14} parent=134 // loop_header
                %s719 = sphi 0, %s723
                %p720 = scmp.ge.s32.totalorder %s719, 1
                %s724 = sphi %s701, %s701
                %s725 = sphi %s709, %s709
              $region138: #{simple_diffusion_forward.14} parent=134 // loop_header_branch
                %722 = sbr.rel (%p720) target = $region142
              $region139: #{simple_diffusion_forward.14} parent=134 // loop_body
                %v726 = vld [vmem:[%s724] sm:%s717]
                %727 = vst [vmem:[%s725] sm:%s717] %v726
                %v728 = vld [vmem:[%s724 + $0x8] sm:%s717]
                %729 = vst [vmem:[%s725 + $0x10] sm:%s717] %v728
                %v730 = vld [vmem:[%s724 + $0x10] sm:%s717]
                %731 = vst [vmem:[%s725 + $0x20] sm:%s717] %v730
                %v732 = vld [vmem:[%s724 + $0x18] sm:%s717]
                %733 = vst [vmem:[%s725 + $0x30] sm:%s717] %v732
              $region140: #{simple_diffusion_forward.14} parent=134 // loop_footer
                %s723 = sadd.s32 1, %s719
              $region141: #{simple_diffusion_forward.14} parent=134 // loop_footer_branch
                %718 = sbr.rel target = $region137
              $region142: #{simple_diffusion_forward.14} parent=134 // loop_exit
                _
            $region135: #{simple_diffusion_forward.14} parent=126 // pred_fallthru
              _
          $region127: #{simple_diffusion_forward.14} parent=122 // pred_fallthru
            _
          %754 = vnop
        $region123: #{simple_diffusion_forward.14} parent=102 // pred_fallthru
          _
      $region103: #{simple_diffusion_forward.14} parent=5 // pred_fallthru
        _
      %p755 = scmp.le.s32.totalorder 2, %s9
      // Predicated region
      $region158: #{simple_diffusion_forward.14} parent=5 // pred_check
        %p756 = pneg %p755
      $region159: #{simple_diffusion_forward.14} parent=5 // pred_check_branch
        %758 = sbr.rel (%p756) target = $region161
      $region160: #{simple_diffusion_forward.14} parent=5 // pred_region
        %s759 = ssub.s32 %s9, 2
        // Predicated region
        $region162: #{simple_diffusion_forward.14} parent=160 // pred_check
          %p760 = pneg %p141
        $region163: #{simple_diffusion_forward.14} parent=160 // pred_check_branch
          %762 = sbr.rel (%p760) target = $region165
        $region164: #{simple_diffusion_forward.14} parent=160 // pred_region
          %s763 = sand.u32 %s126, 1
          %s764 = sand.u32 %s126, 1
          %s765 = smul.addr %s764, 32
          %s766 = scalar_lea.vmem [#allocation5], %s765
        $region165: #{simple_diffusion_forward.14} parent=160 // pred_fallthru
          _
      $region161: #{simple_diffusion_forward.14} parent=5 // pred_fallthru
        _
    $region6: #{simple_diffusion_forward.14} parent=1 // loop_footer
      %s13 = sadd.s32 1, %s9
    $region7: #{simple_diffusion_forward.14} parent=1 // loop_footer_branch
      %8 = sbr.rel target = $region3
    $region8: #{simple_diffusion_forward.14} parent=1 // loop_exit
      _

// kernel: simple_diffusion_forward.15
$region0: #{simple_diffusion_forward.15}
  #allocation0 [shape = 'u32[]', space=smem, size = 0x4, offset = 0x4, fixed_abs, tag = 'smem constant byte address 0x4 - core index']
  #allocation1 [shape = 'u32[144,128]{1,0:T(1,128)}', space=vmem, size = 0x12000, scoped, tag = 'internal scratch']
  #allocation2 [shape = 'f32[32,128]{1,0:T(8,128)}', space=vmem, size = 0x4000, scoped, tag = 'scratch operand']
  %s0 = inlined_call_operand.vmem [shape: bf16[32,1024], index: 0, kind: input, shape index: {}]
  %s1 = inlined_call_operand.vmem [shape: bf16[1024,128], index: 1, kind: input, shape index: {}]
  %s2 = inlined_call_operand.vmem [shape: f32[1,128], index: 2, kind: input, shape index: {}]
  %s3 = inlined_call_operand.vmem [shape: f32[32,128], index: 3, kind: output, shape index: {}]
  %s4 = sld [smem:[#allocation0]]
  $region91: #{simple_diffusion_forward.15} parent=0
    _
  %s6 = ssub.s32 1, %s4
  %s7 = scalar_select 0, %s6, %s4
  $region1: #{simple_diffusion_forward.15} parent=0
    #allocation3 [shape = 'u8[32768]{0}', space=vmem, size = 0x8000, scoped, tag = 'input window, operand 0']
    loop: start=0, step=1, limit=6
    $region2: #{simple_diffusion_forward.15} parent=1 // loop_pre_header
      _
    $region3: #{simple_diffusion_forward.15} parent=1 // loop_header
      %s9 = sphi 0, %s13
      %p10 = scmp.ge.s32.totalorder %s9, 6
      %s16 = sphi 0, %s35
      %s17 = sphi 0, %s31
      %s18 = sphi 0, %s27
      %s19 = sphi 0, %s16
      %s20 = sphi 0, %s17
      %s21 = sphi 0, %s18
      %s22 = sphi 0, %s19
      %s23 = sphi 0, %s20
      %s24 = sphi 0, %s21
      %s40 = sphi 0, %s42
      %s43 = sphi 0, %s40
      %s44 = sphi 0, %s43
      %s60 = sphi 0, %s44
      %s68 = sphi 0, %s70
      %s71 = sphi 0, %s68
      %s72 = sphi 0, %s71
      %s88 = sphi 0, %s72
      %s94 = sphi 0, %s96
      %s97 = sphi 0, %s94
      %s98 = sphi 0, %s97
      %s114 = sphi 0, %s98
      %s122 = sphi 0, %s124
      %s125 = sphi 0, %s122
      %s126 = sphi 0, %s125
      %s142 = sphi 0, %s126
    $region4: #{simple_diffusion_forward.15} parent=1 // loop_header_branch
      %12 = sbr.rel (%p10) target = $region8
    $region5: #{simple_diffusion_forward.15} parent=1 // loop_body
      %s14 = ssub.s32 %s9, 1
      %s15 = ssub.s32 %s9, 2
      %s25 = sadd.s32 1, %s18
      %p26 = scmp.ge.s32.totalorder %s25, 4
      %s27 = scalar_select %p26, 0, %s25
      %s28 = sadd.s32 1, %s17
      %s29 = scalar_select %p26, %s28, %s17
      %p30 = scmp.ge.s32.totalorder %s29, 1
      %s31 = scalar_select %p30, 0, %s29
      %s32 = sadd.s32 1, %s16
      %s33 = scalar_select %p30, %s32, %s16
      %p34 = scmp.ge.s32.totalorder %s33, 1
      %s35 = scalar_select %p34, 0, %s33
      %s36 = ssub.s32 %s16, %s35
      %s37 = ssub.s32 %s18, %s27
      %s38 = sor.u32 %s36, %s37
      %p39 = scmp.eq.s32.totalorder %s38, 0
      %s41 = sadd.s32 %s40, 1
      %s42 = scalar_select %p39, %s40, %s41
      %p45 = pneg %p39
      %p46 = scmp.eq.s32.totalorder %s9, 3
      %p47 = por %p45, %p46
      %p48 = scmp.ne.s32.totalorder %s40, %s43
      %p49 = scmp.eq.s32.totalorder %s9, 0
      %p50 = por %p48, %p49
      %p51 = scmp.ne.s32.totalorder %s40, %s43
      %p52 = scmp.eq.s32.totalorder %s14, 3
      %p53 = por %p51, %p52
      %p54 = scmp.ne.s32.totalorder %s43, %s44
      %p55 = scmp.eq.s32.totalorder %s14, 0
      %p56 = por %p54, %p55
      %p57 = scmp.ne.s32.totalorder %s43, %s44
      %p58 = scmp.eq.s32.totalorder %s15, 3
      %p59 = por %p57, %p58
      %p61 = scmp.ne.s32.totalorder %s44, %s60
      %p62 = scmp.eq.s32.totalorder %s15, 0
      %p63 = por %p61, %p62
      %s64 = ssub.s32 %s18, %s27
      %s65 = ssub.s32 %s17, %s31
      %s66 = sor.u32 %s64, %s65
      %p67 = scmp.eq.s32.totalorder %s66, 0
      %s69 = sadd.s32 %s68, 1
      %s70 = scalar_select %p67, %s68, %s69
      %p73 = pneg %p67
      %p74 = scmp.eq.s32.totalorder %s9, 3
      %p75 = por %p73, %p74
      %p76 = scmp.ne.s32.totalorder %s68, %s71
      %p77 = scmp.eq.s32.totalorder %s9, 0
      %p78 = por %p76, %p77
      %p79 = scmp.ne.s32.totalorder %s68, %s71
      %p80 = scmp.eq.s32.totalorder %s14, 3
      %p81 = por %p79, %p80
      %p82 = scmp.ne.s32.totalorder %s71, %s72
      %p83 = scmp.eq.s32.totalorder %s14, 0
      %p84 = por %p82, %p83
      %p85 = scmp.ne.s32.totalorder %s71, %s72
      %p86 = scmp.eq.s32.totalorder %s15, 3
      %p87 = por %p85, %p86
      %p89 = scmp.ne.s32.totalorder %s72, %s88
      %p90 = scmp.eq.s32.totalorder %s15, 0
      %p91 = por %p89, %p90
      %s92 = ssub.s32 %s17, %s31
      %p93 = scmp.eq.s32.totalorder %s92, 0
      %s95 = sadd.s32 %s94, 1
      %s96 = scalar_select %p93, %s94, %s95
      %p99 = pneg %p93
      %p100 = scmp.eq.s32.totalorder %s9, 3
      %p101 = por %p99, %p100
      %p102 = scmp.ne.s32.totalorder %s94, %s97
      %p103 = scmp.eq.s32.totalorder %s9, 0
      %p104 = por %p102, %p103
      %p105 = scmp.ne.s32.totalorder %s94, %s97
      %p106 = scmp.eq.s32.totalorder %s14, 3
      %p107 = por %p105, %p106
      %p108 = scmp.ne.s32.totalorder %s97, %s98
      %p109 = scmp.eq.s32.totalorder %s14, 0
      %p110 = por %p108, %p109
      %p111 = scmp.ne.s32.totalorder %s97, %s98
      %p112 = scmp.eq.s32.totalorder %s15, 3
      %p113 = por %p111, %p112
      %p115 = scmp.ne.s32.totalorder %s98, %s114
      %p116 = scmp.eq.s32.totalorder %s15, 0
      %p117 = por %p115, %p116
      %s118 = ssub.s32 %s16, %s35
      %s119 = ssub.s32 %s17, %s31
      %s120 = sor.u32 %s118, %s119
      %p121 = scmp.eq.s32.totalorder %s120, 0
      %s123 = sadd.s32 %s122, 1
      %s124 = scalar_select %p121, %s122, %s123
      %p127 = pneg %p121
      %p128 = scmp.eq.s32.totalorder %s9, 3
      %p129 = por %p127, %p128
      %p130 = scmp.ne.s32.totalorder %s122, %s125
      %p131 = scmp.eq.s32.totalorder %s9, 0
      %p132 = por %p130, %p131
      %p133 = scmp.ne.s32.totalorder %s122, %s125
      %p134 = scmp.eq.s32.totalorder %s14, 3
      %p135 = por %p133, %p134
      %p136 = scmp.ne.s32.totalorder %s125, %s126
      %p137 = scmp.eq.s32.totalorder %s14, 0
      %p138 = por %p136, %p137
      %p139 = scmp.ne.s32.totalorder %s125, %s126
      %p140 = scmp.eq.s32.totalorder %s15, 3
      %p141 = por %p139, %p140
      %p143 = scmp.ne.s32.totalorder %s126, %s142
      %p144 = scmp.eq.s32.totalorder %s15, 0
      %p145 = por %p143, %p144
      %p146 = scmp.le.s32.totalorder 1, %s9
      %p147 = scmp.lt.s32.totalorder %s9, 5
      %p148 = pnand %p146, %p147
      %p149 = pneg %p148
      // Predicated region
      $region9: #{simple_diffusion_forward.15} parent=5 // pred_check
        _
      $region10: #{simple_diffusion_forward.15} parent=5 // pred_check_branch
        %151 = sbr.rel (%p148) target = $region12
      $region11: #{simple_diffusion_forward.15} parent=5 // pred_region
        %s152 = ssub.s32 %s9, 1
        // Predicated region
        $region13: #{simple_diffusion_forward.15} parent=11 // pred_check
          %p153 = pneg %p110
        $region14: #{simple_diffusion_forward.15} parent=11 // pred_check_branch
          %155 = sbr.rel (%p153) target = $region16
        $region15: #{simple_diffusion_forward.15} parent=11 // pred_region
          %p156 = scmp.lt.s32.totalorder %s20, 0
          %s157 = scalar_select %p156, %s20, 0
          %s158 = scalar_lea.vmem %s2, %s157
        $region16: #{simple_diffusion_forward.15} parent=11 // pred_fallthru
          _
      $region12: #{simple_diffusion_forward.15} parent=5 // pred_fallthru
        _
      %p159 = scmp.lt.s32.totalorder %s9, 4
      // Predicated region
      $region17: #{simple_diffusion_forward.15} parent=5 // pred_check
        %p160 = pneg %p159
      $region18: #{simple_diffusion_forward.15} parent=5 // pred_check_branch
        %162 = sbr.rel (%p160) target = $region20
      $region19: #{simple_diffusion_forward.15} parent=5 // pred_region
        // Predicated region
        $region21: #{simple_diffusion_forward.15} parent=19 // pred_check
          %p163 = pneg %p50
        $region22: #{simple_diffusion_forward.15} parent=19 // pred_check_branch
          %165 = sbr.rel (%p163) target = $region24
        $region23: #{simple_diffusion_forward.15} parent=19 // pred_region
          %s166 = sand.u32 %s40, 1
          %s167 = sand.u32 %s40, 1
          %s168 = smul.addr %s167, 32
          %s169 = scalar_lea.vmem [#allocation3], %s168
          %s170 = smul.u32 4, %s16
          %s171 = smul.u32 2, %s18
          %s172 = smul.addr %s170, 8
          %s173 = sadd.s32 %s171, %s172
          %s174 = smul.addr %s173, 4
          %s175 = scalar_lea.vmem %s0, %s174
          // Predicated region
          $region25: #{simple_diffusion_forward.15} parent=23 // pred_check
            _
          $region26: #{simple_diffusion_forward.15} parent=23 // pred_check_branch
            %177 = sbr.rel (0) target = $region28
          $region27: #{simple_diffusion_forward.15} parent=23 // pred_region
            // Predicated region
            $region29: #{simple_diffusion_forward.15} parent=27 // pred_check
              _
            $region30: #{simple_diffusion_forward.15} parent=27 // pred_check_branch
              %179 = sbr.rel (0) target = $region32
            $region31: #{simple_diffusion_forward.15} parent=27 // pred_region
              // Predicated region
              $region44: #{simple_diffusion_forward.15} parent=31 // pred_check
                _
              $region45: #{simple_diffusion_forward.15} parent=31 // pred_check_branch
                %201 = sbr.rel (0) target = $region47
              $region46: #{simple_diffusion_forward.15} parent=31 // pred_region
                loop: start=0, step=1, limit=1
                $region48: #{simple_diffusion_forward.15} parent=46 // loop_pre_header
                  _
                $region49: #{simple_diffusion_forward.15} parent=46 // loop_header
                  %s203 = sphi 0, %s207
                  %p204 = scmp.ge.s32.totalorder %s203, 1
                  %s208 = sphi %s175, %s175
                  %s209 = sphi %s169, %s169
                $region50: #{simple_diffusion_forward.15} parent=46 // loop_header_branch
                  %206 = sbr.rel (%p204) target = $region54
                $region51: #{simple_diffusion_forward.15} parent=46 // loop_body
                  %v210 = vld [vmem:[%s208] sm:$0xff]
                  %211 = vst [vmem:[%s209] sm:$0xff] %v210
                  %v212 = vld [vmem:[%s208 + $0x20] sm:$0xff]
                  %213 = vst [vmem:[%s209 + $0x8] sm:$0xff] %v212
                  %v214 = vld [vmem:[%s208 + $0x40] sm:$0xff]
                  %215 = vst [vmem:[%s209 + $0x10] sm:$0xff] %v214
                  %v216 = vld [vmem:[%s208 + $0x60] sm:$0xff]
                  %217 = vst [vmem:[%s209 + $0x18] sm:$0xff] %v216
                $region52: #{simple_diffusion_forward.15} parent=46 // loop_footer
                  %s207 = sadd.s32 1, %s203
                $region53: #{simple_diffusion_forward.15} parent=46 // loop_footer_branch
                  %202 = sbr.rel target = $region49
                $region54: #{simple_diffusion_forward.15} parent=46 // loop_exit
                  _
              $region47: #{simple_diffusion_forward.15} parent=31 // pred_fallthru
                _
              // Predicated region
              $region55: #{simple_diffusion_forward.15} parent=31 // pred_check
                _
              $region56: #{simple_diffusion_forward.15} parent=31 // pred_check_branch
                %219 = sbr.rel target = $region58
              $region57: #{simple_diffusion_forward.15} parent=31 // pred_region
                _
              $region58: #{simple_diffusion_forward.15} parent=31 // pred_fallthru
                _
            $region32: #{simple_diffusion_forward.15} parent=27 // pred_fallthru
              _
            // Predicated region
            $region33: #{simple_diffusion_forward.15} parent=27 // pred_check
              _
            $region34: #{simple_diffusion_forward.15} parent=27 // pred_check_branch
              %181 = sbr.rel target = $region36
            $region35: #{simple_diffusion_forward.15} parent=27 // pred_region
              %s183 = ssub.s32 256, 1
              loop: start=0, step=1, limit=1
              $region37: #{simple_diffusion_forward.15} parent=35 // loop_pre_header
                _
              $region38: #{simple_diffusion_forward.15} parent=35 // loop_header
                %s185 = sphi 0, %s189
                %p186 = scmp.ge.s32.totalorder %s185, 1
                %s190 = sphi %s175, %s175
                %s191 = sphi %s169, %s169
              $region39: #{simple_diffusion_forward.15} parent=35 // loop_header_branch
                %188 = sbr.rel (%p186) target = $region43
              $region40: #{simple_diffusion_forward.15} parent=35 // loop_body
                %v192 = vld [vmem:[%s190] sm:%s183]
                %193 = vst [vmem:[%s191] sm:%s183] %v192
                %v194 = vld [vmem:[%s190 + $0x20] sm:%s183]
                %195 = vst [vmem:[%s191 + $0x8] sm:%s183] %v194
                %v196 = vld [vmem:[%s190 + $0x40] sm:%s183]
                %197 = vst [vmem:[%s191 + $0x10] sm:%s183] %v196
                %v198 = vld [vmem:[%s190 + $0x60] sm:%s183]
                %199 = vst [vmem:[%s191 + $0x18] sm:%s183] %v198
              $region41: #{simple_diffusion_forward.15} parent=35 // loop_footer
                %s189 = sadd.s32 1, %s185
              $region42: #{simple_diffusion_forward.15} parent=35 // loop_footer_branch
                %184 = sbr.rel target = $region38
              $region43: #{simple_diffusion_forward.15} parent=35 // loop_exit
                _
            $region36: #{simple_diffusion_forward.15} parent=27 // pred_fallthru
              _
          $region28: #{simple_diffusion_forward.15} parent=23 // pred_fallthru
            _
          %220 = vnop
        $region24: #{simple_diffusion_forward.15} parent=19 // pred_fallthru
          _
        // Predicated region
        $region59: #{simple_diffusion_forward.15} parent=19 // pred_check
          %p221 = pneg %p78
        $region60: #{simple_diffusion_forward.15} parent=19 // pred_check_branch
          %223 = sbr.rel (%p221) target = $region62
        $region61: #{simple_diffusion_forward.15} parent=19 // pred_region
          %s224 = smul.u32 32, %s18
          %p225 = scmp.lt.s32.totalorder %s224, 127
          %s226 = scalar_select %p225, %s224, 127
          %p227 = scmp.lt.s32.totalorder %s17, 0
          %s228 = scalar_select %p227, %s17, 0
          %s229 = sadd.s32 %s228, %s226
          %s230 = smul.addr %s229, 4
          %s231 = scalar_lea.vmem %s1, %s230
          %s232 = smul.u32 32, %s18
        $region62: #{simple_diffusion_forward.15} parent=19 // pred_fallthru
          _
      $region20: #{simple_diffusion_forward.15} parent=5 // pred_fallthru
        _
      %p233 = scmp.le.s32.totalorder 1, %s9
      %p234 = scmp.lt.s32.totalorder %s9, 5
      %p235 = pnand %p233, %p234
      %p236 = pneg %p235
      // Predicated region
      $region63: #{simple_diffusion_forward.15} parent=5 // pred_check
        _
      $region64: #{simple_diffusion_forward.15} parent=5 // pred_check_branch
        %238 = sbr.rel (%p235) target = $region66
      $region65: #{simple_diffusion_forward.15} parent=5 // pred_region
        %s239 = ssub.s32 %s9, 1
        %s240 = sand.u32 %s43, 1
        %s241 = sand.u32 %s43, 1
        %s242 = smul.addr %s241, 32
        %s243 = scalar_lea.vmem [#allocation3], %s242
        // Predicated region
        $region67: #{simple_diffusion_forward.15} parent=65 // pred_check
          %p244 = pneg %p56
        $region68: #{simple_diffusion_forward.15} parent=65 // pred_check_branch
          %246 = sbr.rel (%p244) target = $region70
        $region69: #{simple_diffusion_forward.15} parent=65 // pred_region
          _
        $region70: #{simple_diffusion_forward.15} parent=65 // pred_fallthru
          _
        %s247 = sand.u32 %s43, 1
        %s248 = sand.u32 %s43, 1
        %s249 = smul.addr %s248, 32
        %s250 = scalar_lea.vmem [#allocation3], %s249
        %p251 = pneg %p56
        %p252 = pneg %p53
        %s253 = smul.u32 32, %s21
        %p254 = scmp.lt.s32.totalorder %s253, 127
        %s255 = scalar_select %p254, %s253, 127
        %p256 = scmp.lt.s32.totalorder %s20, 0
        %s257 = scalar_select %p256, %s20, 0
        %s258 = sadd.s32 %s257, %s255
        %s259 = smul.addr %s258, 4
        %s260 = scalar_lea.vmem %s1, %s259
        %p261 = pneg %p84
        %p262 = pneg %p81
        %p263 = scmp.lt.s32.totalorder %s20, 0
        %s264 = scalar_select %p263, %s20, 0
        %s265 = scalar_lea.vmem %s2, %s264
        %p266 = pneg %p110
        %p267 = pneg %p107
        %p268 = pneg %p138
        %p269 = pneg %p135
        %s270 = smul.u32 4, %s19
        %p271 = scmp.lt.s32.totalorder %s270, 3
        %s272 = scalar_select %p271, %s270, 3
        %p273 = scmp.lt.s32.totalorder %s20, 0
        %s274 = scalar_select %p273, %s20, 0
        %s275 = sadd.s32 %s274, %s272
        %s276 = smul.addr %s275, 8
        %s277 = scalar_lea.vmem %s3, %s276
        %s278 = smul.u32 4, %s19
        %s279 = smul.u32 2, %s21
        %s280 = smul.u32 32, %s21
        %p281 = scmp.lt.s32.totalorder %s280, 127
        %s282 = scalar_select %p281, %s280, 127
        %p283 = scmp.lt.s32.totalorder %s20, 0
        %s284 = scalar_select %p283, %s20, 0
        %s285 = sadd.s32 %s284, %s282
        %s286 = smul.addr %s285, 4
        %s287 = scalar_lea.vmem %s1, %s286
        %s288 = smul.u32 32, %s21
        %p289 = scmp.lt.s32.totalorder %s20, 0
        %s290 = scalar_select %p289, %s20, 0
        %s291 = scalar_lea.vmem %s2, %s290
        %s292 = smul.u32 4, %s19
        %p293 = scmp.lt.s32.totalorder %s292, 3
        %s294 = scalar_select %p293, %s292, 3
        %p295 = scmp.lt.s32.totalorder %s20, 0
        %s296 = scalar_select %p295, %s20, 0
        %s297 = sadd.s32 %s296, %s294
        %s298 = smul.addr %s297, 8
        %s299 = scalar_lea.vmem %s3, %s298
        %s300 = smul.u32 4, %s19
        %p302 = scmp.eq.s32.totalorder %s21, 0
        // Predicated region
        $region71: #{simple_diffusion_forward.15} parent=65 // pred_check
          %p303 = pneg %p302
        $region72: #{simple_diffusion_forward.15} parent=65 // pred_check_branch
          %305 = sbr.rel (%p303) target = $region74
        $region73: #{simple_diffusion_forward.15} parent=65 // pred_region
          %306 = vst [vmem:[#allocation2] sm:$0xff] 0.0
          %307 = vst [vmem:[#allocation2 + $0x8] sm:$0xff] 0.0
          %308 = vst [vmem:[#allocation2 + $0x10] sm:$0xff] 0.0
          %309 = vst [vmem:[#allocation2 + $0x18] sm:$0xff] 0.0
        $region74: #{simple_diffusion_forward.15} parent=65 // pred_fallthru
          _
        %v310 = vld [vmem:[#allocation2] sm:$0xff]
        %v311 = vld [vmem:[#allocation2 + $0x8] sm:$0xff]
        %v312 = vld [vmem:[#allocation2 + $0x10] sm:$0xff]
        %v313 = vld [vmem:[#allocation2 + $0x18] sm:$0xff]
        %v314 = vld [vmem:[%s243] sm:$0xff]
        %v315 = vld [vmem:[%s243 + $0x8] sm:$0xff]
        %v316 = vld [vmem:[%s243 + $0x10] sm:$0xff]
        %v317 = vld [vmem:[%s243 + $0x18] sm:$0xff]
        %v318 = vld [vmem:[%s287] sm:$0xf]
        %v319 = vld [vmem:[%s287 + $0x4] sm:$0xf]
        %v320 = vld [vmem:[%s287 + $0x8] sm:$0xf]
        %v321 = vld [vmem:[%s287 + $0xc] sm:$0xf]
        %v322 = vld [vmem:[%s287 + $0x10] sm:$0xf]
        %v323 = vld [vmem:[%s287 + $0x14] sm:$0xf]
        %v324 = vld [vmem:[%s287 + $0x18] sm:$0xf]
        %v325 = vld [vmem:[%s287 + $0x1c] sm:$0xf]
        %v326 = vld [vmem:[%s287 + $0x20] sm:$0xf]
        %v327 = vld [vmem:[%s287 + $0x24] sm:$0xf]
        %v328 = vld [vmem:[%s287 + $0x28] sm:$0xf]
        %v329 = vld [vmem:[%s287 + $0x2c] sm:$0xf]
        %v330 = vld [vmem:[%s287 + $0x30] sm:$0xf]
        %v331 = vld [vmem:[%s287 + $0x34] sm:$0xf]
        %v332 = vld [vmem:[%s287 + $0x38] sm:$0xf]
        %v333 = vld [vmem:[%s287 + $0x3c] sm:$0xf]
        %v334 = vld [vmem:[%s287 + $0x40] sm:$0xf]
        %v335 = vld [vmem:[%s287 + $0x44] sm:$0xf]
        %v336 = vld [vmem:[%s287 + $0x48] sm:$0xf]
        %v337 = vld [vmem:[%s287 + $0x4c] sm:$0xf]
        %v338 = vld [vmem:[%s287 + $0x50] sm:$0xf]
        %v339 = vld [vmem:[%s287 + $0x54] sm:$0xf]
        %v340 = vld [vmem:[%s287 + $0x58] sm:$0xf]
        %v341 = vld [vmem:[%s287 + $0x5c] sm:$0xf]
        %v342 = vld [vmem:[%s287 + $0x60] sm:$0xf]
        %v343 = vld [vmem:[%s287 + $0x64] sm:$0xf]
        %v344 = vld [vmem:[%s287 + $0x68] sm:$0xf]
        %v345 = vld [vmem:[%s287 + $0x6c] sm:$0xf]
        %v346 = vld [vmem:[%s287 + $0x70] sm:$0xf]
        %v347 = vld [vmem:[%s287 + $0x74] sm:$0xf]
        %v348 = vld [vmem:[%s287 + $0x78] sm:$0xf]
        %v349 = vld [vmem:[%s287 + $0x7c] sm:$0xf]
        %v354 = vunpack.c.l.b16 %v314
        %v355 = vunpack.c.h.b16 %v314
        %v356 = vunpack.c.l.b16 %v315
        %v357 = vunpack.c.h.b16 %v315
        %v358 = vunpack.c.l.b16 %v316
        %v359 = vunpack.c.h.b16 %v316
        %v360 = vunpack.c.l.b16 %v317
        %v361 = vunpack.c.h.b16 %v317
        %v362 = vpack.c.b16 %v356, %v354
        %v363 = vpack.c.b16 %v357, %v355
        %v364 = vpack.c.b16 %v360, %v358
        %v365 = vpack.c.b16 %v361, %v359
        %v402 = vunpack.c.l.b16 %v318
        %v403 = vunpack.c.l.b16 %v319
        %v404 = vunpack.c.l.b16 %v320
        %v405 = vunpack.c.l.b16 %v321
        %v406 = vunpack.c.l.b16 %v322
        %v407 = vunpack.c.l.b16 %v323
        %v408 = vunpack.c.l.b16 %v324
        %v409 = vunpack.c.l.b16 %v325
        %v410 = vunpack.c.l.b16 %v326
        %v411 = vunpack.c.l.b16 %v327
        %v412 = vunpack.c.l.b16 %v328
        %v413 = vunpack.c.l.b16 %v329
        %v414 = vunpack.c.l.b16 %v330
        %v415 = vunpack.c.l.b16 %v331
        %v416 = vunpack.c.l.b16 %v332
        %v417 = vunpack.c.l.b16 %v333
        %v418 = vunpack.c.l.b16 %v334
        %v419 = vunpack.c.l.b16 %v335
        %v420 = vunpack.c.l.b16 %v336
        %v421 = vunpack.c.l.b16 %v337
        %v422 = vunpack.c.l.b16 %v338
        %v423 = vunpack.c.l.b16 %v339
        %v424 = vunpack.c.l.b16 %v340
        %v425 = vunpack.c.l.b16 %v341
        %v426 = vunpack.c.l.b16 %v342
        %v427 = vunpack.c.l.b16 %v343
        %v428 = vunpack.c.l.b16 %v344
        %v429 = vunpack.c.l.b16 %v345
        %v430 = vunpack.c.l.b16 %v346
        %v431 = vunpack.c.l.b16 %v347
        %v432 = vunpack.c.l.b16 %v348
        %v433 = vunpack.c.l.b16 %v349
        %v434 = vpack.c.b16 %v403, %v402
        %v435 = vpack.c.b16 %v405, %v404
        %v436 = vpack.c.b16 %v407, %v406
        %v437 = vpack.c.b16 %v409, %v408
        %v438 = vpack.c.b16 %v411, %v410
        %v439 = vpack.c.b16 %v413, %v412
        %v440 = vpack.c.b16 %v415, %v414
        %v441 = vpack.c.b16 %v417, %v416
        %v442 = vpack.c.b16 %v419, %v418
        %v443 = vpack.c.b16 %v421, %v420
        %v444 = vpack.c.b16 %v423, %v422
        %v445 = vpack.c.b16 %v425, %v424
        %v446 = vpack.c.b16 %v427, %v426
        %v447 = vpack.c.b16 %v429, %v428
        %v448 = vpack.c.b16 %v431, %v430
        %v449 = vpack.c.b16 %v433, %v432
        %466 = vmatprep.subr.bf16.mxu0 0
        %467 = vmatpush1.bf16.msra.mxu0 %v441
        %468 = vmatprep.subr.bf16.mxu0 0
        %469 = vmatpush1.bf16.msra.mxu0 %v440
        %470 = vmatprep.subr.bf16.mxu0 0
        %471 = vmatpush1.bf16.msra.mxu0 %v439
        %472 = vmatprep.subr.bf16.mxu0 0
        %473 = vmatpush1.bf16.msra.mxu0 %v438
        %474 = vmatprep.subr.bf16.mxu0 0
        %475 = vmatpush1.bf16.msra.mxu0 %v437
        %476 = vmatprep.subr.bf16.mxu0 0
        %477 = vmatpush1.bf16.msra.mxu0 %v436
        %478 = vmatprep.subr.bf16.mxu0 0
        %479 = vmatpush1.bf16.msra.mxu0 %v435
        %480 = vmatprep.subr.bf16.mxu0 0
        %481 = vmatpush1.bf16.msra.mxu0 %v434
        %482 = vmatprep.subr.bf16.mxu0 0
        %483 = vmatpush2.bf16.msra.mxu0 %v449
        %484 = vmatprep.subr.bf16.mxu0 0
        %485 = vmatpush2.bf16.msra.mxu0 %v448
        %486 = vmatprep.subr.bf16.mxu0 0
        %487 = vmatpush2.bf16.msra.mxu0 %v447
        %488 = vmatprep.subr.bf16.mxu0 0
        %489 = vmatpush2.bf16.msra.mxu0 %v446
        %490 = vmatprep.subr.bf16.mxu0 0
        %491 = vmatpush2.bf16.msra.mxu0 %v445
        %492 = vmatprep.subr.bf16.mxu0 0
        %493 = vmatpush2.bf16.msra.mxu0 %v444
        %494 = vmatprep.subr.bf16.mxu0 0
        %495 = vmatpush2.bf16.msra.mxu0 %v443
        %496 = vmatprep.subr.bf16.mxu0 0
        %497 = vmatpush2.bf16.msra.mxu0 %v442
        %498 = vmatprep.mubr.bf16.mxu0 %v363
        %499 = vmatmul.mubr.bf16.gmra.mxu0 %v362
        %v500 = vpop.f32.mrf.mxu0
        %v501 = vadd.f32 0.0, %v500
        %v502 = vpop.f32.mrf.mxu0
        %v503 = vpop.f32.mrf.mxu0
        %v504 = vadd.f32 0.0, %v503
        %v505 = vpop.f32.mrf.mxu0
        %506 = vmatprep.mubr.bf16.mxu0 %v365
        %507 = vmatmul.mubr.bf16.gmra.mxu0 %v364
        %v508 = vpop.f32.mrf.mxu0
        %v509 = vadd.f32 0.0, %v508
        %v510 = vpop.f32.mrf.mxu0
        %v511 = vpop.f32.mrf.mxu0
        %v512 = vadd.f32 0.0, %v511
        %v513 = vpop.f32.mrf.mxu0
        %514 = vdwg.mxu0
        %v515 = vadd.f32 %v310, %v501
        %v516 = vadd.f32 %v311, %v504
        %v517 = vadd.f32 %v312, %v509
        %v518 = vadd.f32 %v313, %v512
        %519 = vst [vmem:[#allocation2] sm:$0xff] %v515
        %520 = vst [vmem:[#allocation2 + $0x8] sm:$0xff] %v516
        %521 = vst [vmem:[#allocation2 + $0x10] sm:$0xff] %v517
        %522 = vst [vmem:[#allocation2 + $0x18] sm:$0xff] %v518
        %p523 = scmp.eq.s32.totalorder %s21, 3
        // Predicated region
        $region75: #{simple_diffusion_forward.15} parent=65 // pred_check
          %p524 = pneg %p523
        $region76: #{simple_diffusion_forward.15} parent=65 // pred_check_branch
          %526 = sbr.rel (%p524) target = $region78
        $region77: #{simple_diffusion_forward.15} parent=65 // pred_region
          %v527 = vld [vmem:[#allocation2] sm:$0xff]
          %v528 = vld [vmem:[#allocation2 + $0x8] sm:$0xff]
          %v529 = vld [vmem:[#allocation2 + $0x10] sm:$0xff]
          %v530 = vld [vmem:[#allocation2 + $0x18] sm:$0xff]
          %v531 = vld [vmem:[%s291] sm:$0x1]
          %v533 = vlaneseq
          %v534 = vshrl.u32 %v533, 7
          %v535 = vsub.s32 0, %v534
          %v536 = vrot.slane %v531, %v535
          %v538 = vadd.f32 %v527, %v536
          %v539 = vadd.f32 %v528, %v536
          %v540 = vadd.f32 %v529, %v536
          %v541 = vadd.f32 %v530, %v536
          %v542 = vmax.f32 %v538, 0.0
          %v543 = vmax.f32 %v539, 0.0
          %v544 = vmax.f32 %v540, 0.0
          %v545 = vmax.f32 %v541, 0.0
          %546 = vst [vmem:[%s299] sm:$0xff] %v542
          %547 = vst [vmem:[%s299 + $0x8] sm:$0xff] %v543
          %548 = vst [vmem:[%s299 + $0x10] sm:$0xff] %v544
          %549 = vst [vmem:[%s299 + $0x18] sm:$0xff] %v545
        $region78: #{simple_diffusion_forward.15} parent=65 // pred_fallthru
          _
        %s550 = smul.u32 4, %s19
        %p551 = scmp.lt.s32.totalorder %s550, 3
        %s552 = scalar_select %p551, %s550, 3
        %p553 = scmp.lt.s32.totalorder %s20, 0
        %s554 = scalar_select %p553, %s20, 0
        %s555 = sadd.s32 %s554, %s552
        %s556 = smul.addr %s555, 8
        %s557 = scalar_lea.vmem %s3, %s556
        // Predicated region
        $region79: #{simple_diffusion_forward.15} parent=65 // pred_check
          %p558 = pneg %p135
        $region80: #{simple_diffusion_forward.15} parent=65 // pred_check_branch
          %560 = sbr.rel (%p558) target = $region82
        $region81: #{simple_diffusion_forward.15} parent=65 // pred_region
          %s561 = smul.u32 4, %s19
        $region82: #{simple_diffusion_forward.15} parent=65 // pred_fallthru
          _
        // Predicated region
        $region83: #{simple_diffusion_forward.15} parent=65 // pred_check
          %p562 = pneg %p135
        $region84: #{simple_diffusion_forward.15} parent=65 // pred_check_branch
          %564 = sbr.rel (%p562) target = $region86
        $region85: #{simple_diffusion_forward.15} parent=65 // pred_region
          %s565 = smul.u32 4, %s19
          %p566 = scmp.lt.s32.totalorder %s565, 3
          %s567 = scalar_select %p566, %s565, 3
          %p568 = scmp.lt.s32.totalorder %s20, 0
          %s569 = scalar_select %p568, %s20, 0
          %s570 = sadd.s32 %s569, %s567
          %s571 = smul.addr %s570, 8
          %s572 = scalar_lea.vmem %s3, %s571
        $region86: #{simple_diffusion_forward.15} parent=65 // pred_fallthru
          _
      $region66: #{simple_diffusion_forward.15} parent=5 // pred_fallthru
        _
      %p573 = scmp.le.s32.totalorder 2, %s9
      // Predicated region
      $region87: #{simple_diffusion_forward.15} parent=5 // pred_check
        %p574 = pneg %p573
      $region88: #{simple_diffusion_forward.15} parent=5 // pred_check_branch
        %576 = sbr.rel (%p574) target = $region90
      $region89: #{simple_diffusion_forward.15} parent=5 // pred_region
        %s577 = ssub.s32 %s9, 2
      $region90: #{simple_diffusion_forward.15} parent=5 // pred_fallthru
        _
    $region6: #{simple_diffusion_forward.15} parent=1 // loop_footer
      %s13 = sadd.s32 1, %s9
    $region7: #{simple_diffusion_forward.15} parent=1 // loop_footer_branch
      %8 = sbr.rel target = $region3
    $region8: #{simple_diffusion_forward.15} parent=1 // loop_exit
      _

// kernel: simple_diffusion_forward.19
$region0: #{simple_diffusion_forward.19}
  #allocation0 [shape = 'u32[]', space=smem, size = 0x4, offset = 0x4, fixed_abs, tag = 'smem constant byte address 0x4 - core index']
  #allocation1 [shape = 'u32[144,128]{1,0:T(1,128)}', space=vmem, size = 0x12000, scoped, tag = 'internal scratch']
  #allocation2 [shape = 'f32[128,128]{1,0:T(8,128)}', space=vmem, size = 0x10000, scoped, tag = 'scratch operand']
  %s0 = inlined_call_operand.vmem [shape: bf16[128,512], index: 0, kind: input, shape index: {}]
  %s1 = inlined_call_operand.vmem [shape: bf16[512,128], index: 1, kind: input, shape index: {}]
  %s2 = inlined_call_operand.vmem [shape: f32[1,128], index: 2, kind: input, shape index: {}]
  %s3 = inlined_call_operand.vmem [shape: f32[128,128], index: 3, kind: output, shape index: {}]
  %s4 = sld [smem:[#allocation0]]
  $region91: #{simple_diffusion_forward.19} parent=0
    _
  %s6 = ssub.s32 1, %s4
  %s7 = scalar_select 0, %s6, %s4
  $region1: #{simple_diffusion_forward.19} parent=0
    #allocation3 [shape = 'u8[131072]{0}', space=vmem, size = 0x20000, scoped, tag = 'input window, operand 0']
    loop: start=0, step=1, limit=4
    $region2: #{simple_diffusion_forward.19} parent=1 // loop_pre_header
      _
    $region3: #{simple_diffusion_forward.19} parent=1 // loop_header
      %s9 = sphi 0, %s13
      %p10 = scmp.ge.s32.totalorder %s9, 4
      %s16 = sphi 0, %s35
      %s17 = sphi 0, %s31
      %s18 = sphi 0, %s27
      %s19 = sphi 0, %s16
      %s20 = sphi 0, %s17
      %s21 = sphi 0, %s18
      %s22 = sphi 0, %s19
      %s23 = sphi 0, %s20
      %s24 = sphi 0, %s21
      %s40 = sphi 0, %s42
      %s43 = sphi 0, %s40
      %s44 = sphi 0, %s43
      %s60 = sphi 0, %s44
      %s68 = sphi 0, %s70
      %s71 = sphi 0, %s68
      %s72 = sphi 0, %s71
      %s88 = sphi 0, %s72
      %s94 = sphi 0, %s96
      %s97 = sphi 0, %s94
      %s98 = sphi 0, %s97
      %s114 = sphi 0, %s98
      %s122 = sphi 0, %s124
      %s125 = sphi 0, %s122
      %s126 = sphi 0, %s125
      %s142 = sphi 0, %s126
    $region4: #{simple_diffusion_forward.19} parent=1 // loop_header_branch
      %12 = sbr.rel (%p10) target = $region8
    $region5: #{simple_diffusion_forward.19} parent=1 // loop_body
      %s14 = ssub.s32 %s9, 1
      %s15 = ssub.s32 %s9, 2
      %s25 = sadd.s32 1, %s18
      %p26 = scmp.ge.s32.totalorder %s25, 2
      %s27 = scalar_select %p26, 0, %s25
      %s28 = sadd.s32 1, %s17
      %s29 = scalar_select %p26, %s28, %s17
      %p30 = scmp.ge.s32.totalorder %s29, 1
      %s31 = scalar_select %p30, 0, %s29
      %s32 = sadd.s32 1, %s16
      %s33 = scalar_select %p30, %s32, %s16
      %p34 = scmp.ge.s32.totalorder %s33, 1
      %s35 = scalar_select %p34, 0, %s33
      %s36 = ssub.s32 %s16, %s35
      %s37 = ssub.s32 %s18, %s27
      %s38 = sor.u32 %s36, %s37
      %p39 = scmp.eq.s32.totalorder %s38, 0
      %s41 = sadd.s32 %s40, 1
      %s42 = scalar_select %p39, %s40, %s41
      %p45 = pneg %p39
      %p46 = scmp.eq.s32.totalorder %s9, 1
      %p47 = por %p45, %p46
      %p48 = scmp.ne.s32.totalorder %s40, %s43
      %p49 = scmp.eq.s32.totalorder %s9, 0
      %p50 = por %p48, %p49
      %p51 = scmp.ne.s32.totalorder %s40, %s43
      %p52 = scmp.eq.s32.totalorder %s14, 1
      %p53 = por %p51, %p52
      %p54 = scmp.ne.s32.totalorder %s43, %s44
      %p55 = scmp.eq.s32.totalorder %s14, 0
      %p56 = por %p54, %p55
      %p57 = scmp.ne.s32.totalorder %s43, %s44
      %p58 = scmp.eq.s32.totalorder %s15, 1
      %p59 = por %p57, %p58
      %p61 = scmp.ne.s32.totalorder %s44, %s60
      %p62 = scmp.eq.s32.totalorder %s15, 0
      %p63 = por %p61, %p62
      %s64 = ssub.s32 %s18, %s27
      %s65 = ssub.s32 %s17, %s31
      %s66 = sor.u32 %s64, %s65
      %p67 = scmp.eq.s32.totalorder %s66, 0
      %s69 = sadd.s32 %s68, 1
      %s70 = scalar_select %p67, %s68, %s69
      %p73 = pneg %p67
      %p74 = scmp.eq.s32.totalorder %s9, 1
      %p75 = por %p73, %p74
      %p76 = scmp.ne.s32.totalorder %s68, %s71
      %p77 = scmp.eq.s32.totalorder %s9, 0
      %p78 = por %p76, %p77
      %p79 = scmp.ne.s32.totalorder %s68, %s71
      %p80 = scmp.eq.s32.totalorder %s14, 1
      %p81 = por %p79, %p80
      %p82 = scmp.ne.s32.totalorder %s71, %s72
      %p83 = scmp.eq.s32.totalorder %s14, 0
      %p84 = por %p82, %p83
      %p85 = scmp.ne.s32.totalorder %s71, %s72
      %p86 = scmp.eq.s32.totalorder %s15, 1
      %p87 = por %p85, %p86
      %p89 = scmp.ne.s32.totalorder %s72, %s88
      %p90 = scmp.eq.s32.totalorder %s15, 0
      %p91 = por %p89, %p90
      %s92 = ssub.s32 %s17, %s31
      %p93 = scmp.eq.s32.totalorder %s92, 0
      %s95 = sadd.s32 %s94, 1
      %s96 = scalar_select %p93, %s94, %s95
      %p99 = pneg %p93
      %p100 = scmp.eq.s32.totalorder %s9, 1
      %p101 = por %p99, %p100
      %p102 = scmp.ne.s32.totalorder %s94, %s97
      %p103 = scmp.eq.s32.totalorder %s9, 0
      %p104 = por %p102, %p103
      %p105 = scmp.ne.s32.totalorder %s94, %s97
      %p106 = scmp.eq.s32.totalorder %s14, 1
      %p107 = por %p105, %p106
      %p108 = scmp.ne.s32.totalorder %s97, %s98
      %p109 = scmp.eq.s32.totalorder %s14, 0
      %p110 = por %p108, %p109
      %p111 = scmp.ne.s32.totalorder %s97, %s98
      %p112 = scmp.eq.s32.totalorder %s15, 1
      %p113 = por %p111, %p112
      %p115 = scmp.ne.s32.totalorder %s98, %s114
      %p116 = scmp.eq.s32.totalorder %s15, 0
      %p117 = por %p115, %p116
      %s118 = ssub.s32 %s16, %s35
      %s119 = ssub.s32 %s17, %s31
      %s120 = sor.u32 %s118, %s119
      %p121 = scmp.eq.s32.totalorder %s120, 0
      %s123 = sadd.s32 %s122, 1
      %s124 = scalar_select %p121, %s122, %s123
      %p127 = pneg %p121
      %p128 = scmp.eq.s32.totalorder %s9, 1
      %p129 = por %p127, %p128
      %p130 = scmp.ne.s32.totalorder %s122, %s125
      %p131 = scmp.eq.s32.totalorder %s9, 0
      %p132 = por %p130, %p131
      %p133 = scmp.ne.s32.totalorder %s122, %s125
      %p134 = scmp.eq.s32.totalorder %s14, 1
      %p135 = por %p133, %p134
      %p136 = scmp.ne.s32.totalorder %s125, %s126
      %p137 = scmp.eq.s32.totalorder %s14, 0
      %p138 = por %p136, %p137
      %p139 = scmp.ne.s32.totalorder %s125, %s126
      %p140 = scmp.eq.s32.totalorder %s15, 1
      %p141 = por %p139, %p140
      %p143 = scmp.ne.s32.totalorder %s126, %s142
      %p144 = scmp.eq.s32.totalorder %s15, 0
      %p145 = por %p143, %p144
      %p146 = scmp.le.s32.totalorder 1, %s9
      %p147 = scmp.lt.s32.totalorder %s9, 3
      %p148 = pnand %p146, %p147
      %p149 = pneg %p148
      // Predicated region
      $region9: #{simple_diffusion_forward.19} parent=5 // pred_check
        _
      $region10: #{simple_diffusion_forward.19} parent=5 // pred_check_branch
        %151 = sbr.rel (%p148) target = $region12
      $region11: #{simple_diffusion_forward.19} parent=5 // pred_region
        %s152 = ssub.s32 %s9, 1
        // Predicated region
        $region13: #{simple_diffusion_forward.19} parent=11 // pred_check
          %p153 = pneg %p110
        $region14: #{simple_diffusion_forward.19} parent=11 // pred_check_branch
          %155 = sbr.rel (%p153) target = $region16
        $region15: #{simple_diffusion_forward.19} parent=11 // pred_region
          %p156 = scmp.lt.s32.totalorder %s20, 0
          %s157 = scalar_select %p156, %s20, 0
          %s158 = scalar_lea.vmem %s2, %s157
        $region16: #{simple_diffusion_forward.19} parent=11 // pred_fallthru
          _
      $region12: #{simple_diffusion_forward.19} parent=5 // pred_fallthru
        _
      %p159 = scmp.lt.s32.totalorder %s9, 2
      // Predicated region
      $region17: #{simple_diffusion_forward.19} parent=5 // pred_check
        %p160 = pneg %p159
      $region18: #{simple_diffusion_forward.19} parent=5 // pred_check_branch
        %162 = sbr.rel (%p160) target = $region20
      $region19: #{simple_diffusion_forward.19} parent=5 // pred_region
        // Predicated region
        $region21: #{simple_diffusion_forward.19} parent=19 // pred_check
          %p163 = pneg %p50
        $region22: #{simple_diffusion_forward.19} parent=19 // pred_check_branch
          %165 = sbr.rel (%p163) target = $region24
        $region23: #{simple_diffusion_forward.19} parent=19 // pred_region
          %s166 = sand.u32 %s40, 1
          %s167 = sand.u32 %s40, 1
          %s168 = smul.addr %s167, 128
          %s169 = scalar_lea.vmem [#allocation3], %s168
          %s170 = smul.u32 16, %s16
          %s171 = smul.u32 2, %s18
          %s172 = smul.addr %s170, 4
          %s173 = sadd.s32 %s171, %s172
          %s174 = smul.addr %s173, 4
          %s175 = scalar_lea.vmem %s0, %s174
          // Predicated region
          $region25: #{simple_diffusion_forward.19} parent=23 // pred_check
            _
          $region26: #{simple_diffusion_forward.19} parent=23 // pred_check_branch
            %177 = sbr.rel (0) target = $region28
          $region27: #{simple_diffusion_forward.19} parent=23 // pred_region
            // Predicated region
            $region29: #{simple_diffusion_forward.19} parent=27 // pred_check
              _
            $region30: #{simple_diffusion_forward.19} parent=27 // pred_check_branch
              %179 = sbr.rel (0) target = $region32
            $region31: #{simple_diffusion_forward.19} parent=27 // pred_region
              // Predicated region
              $region44: #{simple_diffusion_forward.19} parent=31 // pred_check
                _
              $region45: #{simple_diffusion_forward.19} parent=31 // pred_check_branch
                %225 = sbr.rel (0) target = $region47
              $region46: #{simple_diffusion_forward.19} parent=31 // pred_region
                loop: start=0, step=1, limit=1
                $region48: #{simple_diffusion_forward.19} parent=46 // loop_pre_header
                  _
                $region49: #{simple_diffusion_forward.19} parent=46 // loop_header
                  %s227 = sphi 0, %s231
                  %p228 = scmp.ge.s32.totalorder %s227, 1
                  %s232 = sphi %s175, %s175
                  %s233 = sphi %s169, %s169
                $region50: #{simple_diffusion_forward.19} parent=46 // loop_header_branch
                  %230 = sbr.rel (%p228) target = $region54
                $region51: #{simple_diffusion_forward.19} parent=46 // loop_body
                  %v234 = vld [vmem:[%s232] sm:$0xff]
                  %235 = vst [vmem:[%s233] sm:$0xff] %v234
                  %v236 = vld [vmem:[%s232 + $0x10] sm:$0xff]
                  %237 = vst [vmem:[%s233 + $0x8] sm:$0xff] %v236
                  %v238 = vld [vmem:[%s232 + $0x20] sm:$0xff]
                  %239 = vst [vmem:[%s233 + $0x10] sm:$0xff] %v238
                  %v240 = vld [vmem:[%s232 + $0x30] sm:$0xff]
                  %241 = vst [vmem:[%s233 + $0x18] sm:$0xff] %v240
                  %v242 = vld [vmem:[%s232 + $0x40] sm:$0xff]
                  %243 = vst [vmem:[%s233 + $0x20] sm:$0xff] %v242
                  %v244 = vld [vmem:[%s232 + $0x50] sm:$0xff]
                  %245 = vst [vmem:[%s233 + $0x28] sm:$0xff] %v244
                  %v246 = vld [vmem:[%s232 + $0x60] sm:$0xff]
                  %247 = vst [vmem:[%s233 + $0x30] sm:$0xff] %v246
                  %v248 = vld [vmem:[%s232 + $0x70] sm:$0xff]
                  %249 = vst [vmem:[%s233 + $0x38] sm:$0xff] %v248
                  %v250 = vld [vmem:[%s232 + $0x80] sm:$0xff]
                  %251 = vst [vmem:[%s233 + $0x40] sm:$0xff] %v250
                  %v252 = vld [vmem:[%s232 + $0x90] sm:$0xff]
                  %253 = vst [vmem:[%s233 + $0x48] sm:$0xff] %v252
                  %v254 = vld [vmem:[%s232 + $0xa0] sm:$0xff]
                  %255 = vst [vmem:[%s233 + $0x50] sm:$0xff] %v254
                  %v256 = vld [vmem:[%s232 + $0xb0] sm:$0xff]
                  %257 = vst [vmem:[%s233 + $0x58] sm:$0xff] %v256
                  %v258 = vld [vmem:[%s232 + $0xc0] sm:$0xff]
                  %259 = vst [vmem:[%s233 + $0x60] sm:$0xff] %v258
                  %v260 = vld [vmem:[%s232 + $0xd0] sm:$0xff]
                  %261 = vst [vmem:[%s233 + $0x68] sm:$0xff] %v260
                  %v262 = vld [vmem:[%s232 + $0xe0] sm:$0xff]
                  %263 = vst [vmem:[%s233 + $0x70] sm:$0xff] %v262
                  %v264 = vld [vmem:[%s232 + $0xf0] sm:$0xff]
                  %265 = vst [vmem:[%s233 + $0x78] sm:$0xff] %v264
                $region52: #{simple_diffusion_forward.19} parent=46 // loop_footer
                  %s231 = sadd.s32 1, %s227
                $region53: #{simple_diffusion_forward.19} parent=46 // loop_footer_branch
                  %226 = sbr.rel target = $region49
                $region54: #{simple_diffusion_forward.19} parent=46 // loop_exit
                  _
              $region47: #{simple_diffusion_forward.19} parent=31 // pred_fallthru
                _
              // Predicated region
              $region55: #{simple_diffusion_forward.19} parent=31 // pred_check
                _
              $region56: #{simple_diffusion_forward.19} parent=31 // pred_check_branch
                %267 = sbr.rel target = $region58
              $region57: #{simple_diffusion_forward.19} parent=31 // pred_region
                _
              $region58: #{simple_diffusion_forward.19} parent=31 // pred_fallthru
                _
            $region32: #{simple_diffusion_forward.19} parent=27 // pred_fallthru
              _
            // Predicated region
            $region33: #{simple_diffusion_forward.19} parent=27 // pred_check
              _
            $region34: #{simple_diffusion_forward.19} parent=27 // pred_check_branch
              %181 = sbr.rel target = $region36
            $region35: #{simple_diffusion_forward.19} parent=27 // pred_region
              %s183 = ssub.s32 256, 1
              loop: start=0, step=1, limit=1
              $region37: #{simple_diffusion_forward.19} parent=35 // loop_pre_header
                _
              $region38: #{simple_diffusion_forward.19} parent=35 // loop_header
                %s185 = sphi 0, %s189
                %p186 = scmp.ge.s32.totalorder %s185, 1
                %s190 = sphi %s175, %s175
                %s191 = sphi %s169, %s169
              $region39: #{simple_diffusion_forward.19} parent=35 // loop_header_branch
                %188 = sbr.rel (%p186) target = $region43
              $region40: #{simple_diffusion_forward.19} parent=35 // loop_body
                %v192 = vld [vmem:[%s190] sm:%s183]
                %193 = vst [vmem:[%s191] sm:%s183] %v192
                %v194 = vld [vmem:[%s190 + $0x10] sm:%s183]
                %195 = vst [vmem:[%s191 + $0x8] sm:%s183] %v194
                %v196 = vld [vmem:[%s190 + $0x20] sm:%s183]
                %197 = vst [vmem:[%s191 + $0x10] sm:%s183] %v196
                %v198 = vld [vmem:[%s190 + $0x30] sm:%s183]
                %199 = vst [vmem:[%s191 + $0x18] sm:%s183] %v198
                %v200 = vld [vmem:[%s190 + $0x40] sm:%s183]
                %201 = vst [vmem:[%s191 + $0x20] sm:%s183] %v200
                %v202 = vld [vmem:[%s190 + $0x50] sm:%s183]
                %203 = vst [vmem:[%s191 + $0x28] sm:%s183] %v202
                %v204 = vld [vmem:[%s190 + $0x60] sm:%s183]
                %205 = vst [vmem:[%s191 + $0x30] sm:%s183] %v204
                %v206 = vld [vmem:[%s190 + $0x70] sm:%s183]
                %207 = vst [vmem:[%s191 + $0x38] sm:%s183] %v206
                %v208 = vld [vmem:[%s190 + $0x80] sm:%s183]
                %209 = vst [vmem:[%s191 + $0x40] sm:%s183] %v208
                %v210 = vld [vmem:[%s190 + $0x90] sm:%s183]
                %211 = vst [vmem:[%s191 + $0x48] sm:%s183] %v210
                %v212 = vld [vmem:[%s190 + $0xa0] sm:%s183]
                %213 = vst [vmem:[%s191 + $0x50] sm:%s183] %v212
                %v214 = vld [vmem:[%s190 + $0xb0] sm:%s183]
                %215 = vst [vmem:[%s191 + $0x58] sm:%s183] %v214
                %v216 = vld [vmem:[%s190 + $0xc0] sm:%s183]
                %217 = vst [vmem:[%s191 + $0x60] sm:%s183] %v216
                %v218 = vld [vmem:[%s190 + $0xd0] sm:%s183]
                %219 = vst [vmem:[%s191 + $0x68] sm:%s183] %v218
                %v220 = vld [vmem:[%s190 + $0xe0] sm:%s183]
                %221 = vst [vmem:[%s191 + $0x70] sm:%s183] %v220
                %v222 = vld [vmem:[%s190 + $0xf0] sm:%s183]
                %223 = vst [vmem:[%s191 + $0x78] sm:%s183] %v222
              $region41: #{simple_diffusion_forward.19} parent=35 // loop_footer
                %s189 = sadd.s32 1, %s185
              $region42: #{simple_diffusion_forward.19} parent=35 // loop_footer_branch
                %184 = sbr.rel target = $region38
              $region43: #{simple_diffusion_forward.19} parent=35 // loop_exit
                _
            $region36: #{simple_diffusion_forward.19} parent=27 // pred_fallthru
              _
          $region28: #{simple_diffusion_forward.19} parent=23 // pred_fallthru
            _
          %268 = vnop
        $region24: #{simple_diffusion_forward.19} parent=19 // pred_fallthru
          _
        // Predicated region
        $region59: #{simple_diffusion_forward.19} parent=19 // pred_check
          %p269 = pneg %p78
        $region60: #{simple_diffusion_forward.19} parent=19 // pred_check_branch
          %271 = sbr.rel (%p269) target = $region62
        $region61: #{simple_diffusion_forward.19} parent=19 // pred_region
          %s272 = smul.u32 32, %s18
          %p273 = scmp.lt.s32.totalorder %s272, 63
          %s274 = scalar_select %p273, %s272, 63
          %p275 = scmp.lt.s32.totalorder %s17, 0
          %s276 = scalar_select %p275, %s17, 0
          %s277 = sadd.s32 %s276, %s274
          %s278 = smul.addr %s277, 4
          %s279 = scalar_lea.vmem %s1, %s278
          %s280 = smul.u32 32, %s18
        $region62: #{simple_diffusion_forward.19} parent=19 // pred_fallthru
          _
      $region20: #{simple_diffusion_forward.19} parent=5 // pred_fallthru
        _
      %p281 = scmp.le.s32.totalorder 1, %s9
      %p282 = scmp.lt.s32.totalorder %s9, 3
      %p283 = pnand %p281, %p282
      %p284 = pneg %p283
      // Predicated region
      $region63: #{simple_diffusion_forward.19} parent=5 // pred_check
        _
      $region64: #{simple_diffusion_forward.19} parent=5 // pred_check_branch
        %286 = sbr.rel (%p283) target = $region66
      $region65: #{simple_diffusion_forward.19} parent=5 // pred_region
        %s287 = ssub.s32 %s9, 1
        %s288 = sand.u32 %s43, 1
        %s289 = sand.u32 %s43, 1
        %s290 = smul.addr %s289, 128
        %s291 = scalar_lea.vmem [#allocation3], %s290
        // Predicated region
        $region67: #{simple_diffusion_forward.19} parent=65 // pred_check
          %p292 = pneg %p56
        $region68: #{simple_diffusion_forward.19} parent=65 // pred_check_branch
          %294 = sbr.rel (%p292) target = $region70
        $region69: #{simple_diffusion_forward.19} parent=65 // pred_region
          _
        $region70: #{simple_diffusion_forward.19} parent=65 // pred_fallthru
          _
        %s295 = sand.u32 %s43, 1
        %s296 = sand.u32 %s43, 1
        %s297 = smul.addr %s296, 128
        %s298 = scalar_lea.vmem [#allocation3], %s297
        %p299 = pneg %p56
        %p300 = pneg %p53
        %s301 = smul.u32 32, %s21
        %p302 = scmp.lt.s32.totalorder %s301, 63
        %s303 = scalar_select %p302, %s301, 63
        %p304 = scmp.lt.s32.totalorder %s20, 0
        %s305 = scalar_select %p304, %s20, 0
        %s306 = sadd.s32 %s305, %s303
        %s307 = smul.addr %s306, 4
        %s308 = scalar_lea.vmem %s1, %s307
        %p309 = pneg %p84
        %p310 = pneg %p81
        %p311 = scmp.lt.s32.totalorder %s20, 0
        %s312 = scalar_select %p311, %s20, 0
        %s313 = scalar_lea.vmem %s2, %s312
        %p314 = pneg %p110
        %p315 = pneg %p107
        %p316 = pneg %p138
        %p317 = pneg %p135
        %s318 = smul.u32 16, %s19
        %p319 = scmp.lt.s32.totalorder %s318, 15
        %s320 = scalar_select %p319, %s318, 15
        %p321 = scmp.lt.s32.totalorder %s20, 0
        %s322 = scalar_select %p321, %s20, 0
        %s323 = sadd.s32 %s322, %s320
        %s324 = smul.addr %s323, 8
        %s325 = scalar_lea.vmem %s3, %s324
        %s326 = smul.u32 16, %s19
        %s327 = smul.u32 2, %s21
        %s328 = smul.u32 32, %s21
        %p329 = scmp.lt.s32.totalorder %s328, 63
        %s330 = scalar_select %p329, %s328, 63
        %p331 = scmp.lt.s32.totalorder %s20, 0
        %s332 = scalar_select %p331, %s20, 0
        %s333 = sadd.s32 %s332, %s330
        %s334 = smul.addr %s333, 4
        %s335 = scalar_lea.vmem %s1, %s334
        %s336 = smul.u32 32, %s21
        %p337 = scmp.lt.s32.totalorder %s20, 0
        %s338 = scalar_select %p337, %s20, 0
        %s339 = scalar_lea.vmem %s2, %s338
        %s340 = smul.u32 16, %s19
        %p341 = scmp.lt.s32.totalorder %s340, 15
        %s342 = scalar_select %p341, %s340, 15
        %p343 = scmp.lt.s32.totalorder %s20, 0
        %s344 = scalar_select %p343, %s20, 0
        %s345 = sadd.s32 %s344, %s342
        %s346 = smul.addr %s345, 8
        %s347 = scalar_lea.vmem %s3, %s346
        %s348 = smul.u32 16, %s19
        %p350 = scmp.eq.s32.totalorder %s21, 0
        // Predicated region
        $region71: #{simple_diffusion_forward.19} parent=65 // pred_check
          %p351 = pneg %p350
        $region72: #{simple_diffusion_forward.19} parent=65 // pred_check_branch
          %353 = sbr.rel (%p351) target = $region74
        $region73: #{simple_diffusion_forward.19} parent=65 // pred_region
          %354 = vst [vmem:[#allocation2] sm:$0xff] 0.0
          %355 = vst [vmem:[#allocation2 + $0x8] sm:$0xff] 0.0
          %356 = vst [vmem:[#allocation2 + $0x10] sm:$0xff] 0.0
          %357 = vst [vmem:[#allocation2 + $0x18] sm:$0xff] 0.0
          %358 = vst [vmem:[#allocation2 + $0x20] sm:$0xff] 0.0
          %359 = vst [vmem:[#allocation2 + $0x28] sm:$0xff] 0.0
          %360 = vst [vmem:[#allocation2 + $0x30] sm:$0xff] 0.0
          %361 = vst [vmem:[#allocation2 + $0x38] sm:$0xff] 0.0
          %362 = vst [vmem:[#allocation2 + $0x40] sm:$0xff] 0.0
          %363 = vst [vmem:[#allocation2 + $0x48] sm:$0xff] 0.0
          %364 = vst [vmem:[#allocation2 + $0x50] sm:$0xff] 0.0
          %365 = vst [vmem:[#allocation2 + $0x58] sm:$0xff] 0.0
          %366 = vst [vmem:[#allocation2 + $0x60] sm:$0xff] 0.0
          %367 = vst [vmem:[#allocation2 + $0x68] sm:$0xff] 0.0
          %368 = vst [vmem:[#allocation2 + $0x70] sm:$0xff] 0.0
          %369 = vst [vmem:[#allocation2 + $0x78] sm:$0xff] 0.0
        $region74: #{simple_diffusion_forward.19} parent=65 // pred_fallthru
          _
        %v370 = vld [vmem:[#allocation2] sm:$0xff]
        %v371 = vld [vmem:[#allocation2 + $0x8] sm:$0xff]
        %v372 = vld [vmem:[#allocation2 + $0x10] sm:$0xff]
        %v373 = vld [vmem:[#allocation2 + $0x18] sm:$0xff]
        %v374 = vld [vmem:[#allocation2 + $0x20] sm:$0xff]
        %v375 = vld [vmem:[#allocation2 + $0x28] sm:$0xff]
        %v376 = vld [vmem:[#allocation2 + $0x30] sm:$0xff]
        %v377 = vld [vmem:[#allocation2 + $0x38] sm:$0xff]
        %v378 = vld [vmem:[#allocation2 + $0x40] sm:$0xff]
        %v379 = vld [vmem:[#allocation2 + $0x48] sm:$0xff]
        %v380 = vld [vmem:[#allocation2 + $0x50] sm:$0xff]
        %v381 = vld [vmem:[#allocation2 + $0x58] sm:$0xff]
        %v382 = vld [vmem:[#allocation2 + $0x60] sm:$0xff]
        %v383 = vld [vmem:[#allocation2 + $0x68] sm:$0xff]
        %v384 = vld [vmem:[#allocation2 + $0x70] sm:$0xff]
        %v385 = vld [vmem:[#allocation2 + $0x78] sm:$0xff]
        %v386 = vld [vmem:[%s291] sm:$0xff]
        %v387 = vld [vmem:[%s291 + $0x8] sm:$0xff]
        %v388 = vld [vmem:[%s291 + $0x10] sm:$0xff]
        %v389 = vld [vmem:[%s291 + $0x18] sm:$0xff]
        %v390 = vld [vmem:[%s291 + $0x20] sm:$0xff]
        %v391 = vld [vmem:[%s291 + $0x28] sm:$0xff]
        %v392 = vld [vmem:[%s291 + $0x30] sm:$0xff]
        %v393 = vld [vmem:[%s291 + $0x38] sm:$0xff]
        %v394 = vld [vmem:[%s291 + $0x40] sm:$0xff]
        %v395 = vld [vmem:[%s291 + $0x48] sm:$0xff]
        %v396 = vld [vmem:[%s291 + $0x50] sm:$0xff]
        %v397 = vld [vmem:[%s291 + $0x58] sm:$0xff]
        %v398 = vld [vmem:[%s291 + $0x60] sm:$0xff]
        %v399 = vld [vmem:[%s291 + $0x68] sm:$0xff]
        %v400 = vld [vmem:[%s291 + $0x70] sm:$0xff]
        %v401 = vld [vmem:[%s291 + $0x78] sm:$0xff]
        %v402 = vld [vmem:[%s335] sm:$0xf]
        %v403 = vld [vmem:[%s335 + $0x4] sm:$0xf]
        %v404 = vld [vmem:[%s335 + $0x8] sm:$0xf]
        %v405 = vld [vmem:[%s335 + $0xc] sm:$0xf]
        %v406 = vld [vmem:[%s335 + $0x10] sm:$0xf]
        %v407 = vld [vmem:[%s335 + $0x14] sm:$0xf]
        %v408 = vld [vmem:[%s335 + $0x18] sm:$0xf]
        %v409 = vld [vmem:[%s335 + $0x1c] sm:$0xf]
        %v410 = vld [vmem:[%s335 + $0x20] sm:$0xf]
        %v411 = vld [vmem:[%s335 + $0x24] sm:$0xf]
        %v412 = vld [vmem:[%s335 + $0x28] sm:$0xf]
        %v413 = vld [vmem:[%s335 + $0x2c] sm:$0xf]
        %v414 = vld [vmem:[%s335 + $0x30] sm:$0xf]
        %v415 = vld [vmem:[%s335 + $0x34] sm:$0xf]
        %v416 = vld [vmem:[%s335 + $0x38] sm:$0xf]
        %v417 = vld [vmem:[%s335 + $0x3c] sm:$0xf]
        %v418 = vld [vmem:[%s335 + $0x40] sm:$0xf]
        %v419 = vld [vmem:[%s335 + $0x44] sm:$0xf]
        %v420 = vld [vmem:[%s335 + $0x48] sm:$0xf]
        %v421 = vld [vmem:[%s335 + $0x4c] sm:$0xf]
        %v422 = vld [vmem:[%s335 + $0x50] sm:$0xf]
        %v423 = vld [vmem:[%s335 + $0x54] sm:$0xf]
        %v424 = vld [vmem:[%s335 + $0x58] sm:$0xf]
        %v425 = vld [vmem:[%s335 + $0x5c] sm:$0xf]
        %v426 = vld [vmem:[%s335 + $0x60] sm:$0xf]
        %v427 = vld [vmem:[%s335 + $0x64] sm:$0xf]
        %v428 = vld [vmem:[%s335 + $0x68] sm:$0xf]
        %v429 = vld [vmem:[%s335 + $0x6c] sm:$0xf]
        %v430 = vld [vmem:[%s335 + $0x70] sm:$0xf]
        %v431 = vld [vmem:[%s335 + $0x74] sm:$0xf]
        %v432 = vld [vmem:[%s335 + $0x78] sm:$0xf]
        %v433 = vld [vmem:[%s335 + $0x7c] sm:$0xf]
        %v450 = vunpack.c.l.b16 %v386
        %v451 = vunpack.c.h.b16 %v386
        %v452 = vunpack.c.l.b16 %v387
        %v453 = vunpack.c.h.b16 %v387
        %v454 = vunpack.c.l.b16 %v388
        %v455 = vunpack.c.h.b16 %v388
        %v456 = vunpack.c.l.b16 %v389
        %v457 = vunpack.c.h.b16 %v389
        %v458 = vunpack.c.l.b16 %v390
        %v459 = vunpack.c.h.b16 %v390
        %v460 = vunpack.c.l.b16 %v391
        %v461 = vunpack.c.h.b16 %v391
        %v462 = vunpack.c.l.b16 %v392
        %v463 = vunpack.c.h.b16 %v392
        %v464 = vunpack.c.l.b16 %v393
        %v465 = vunpack.c.h.b16 %v393
        %v466 = vunpack.c.l.b16 %v394
        %v467 = vunpack.c.h.b16 %v394
        %v468 = vunpack.c.l.b16 %v395
        %v469 = vunpack.c.h.b16 %v395
        %v470 = vunpack.c.l.b16 %v396
        %v471 = vunpack.c.h.b16 %v396
        %v472 = vunpack.c.l.b16 %v397
        %v473 = vunpack.c.h.b16 %v397
        %v474 = vunpack.c.l.b16 %v398
        %v475 = vunpack.c.h.b16 %v398
        %v476 = vunpack.c.l.b16 %v399
        %v477 = vunpack.c.h.b16 %v399
        %v478 = vunpack.c.l.b16 %v400
        %v479 = vunpack.c.h.b16 %v400
        %v480 = vunpack.c.l.b16 %v401
        %v481 = vunpack.c.h.b16 %v401
        %v482 = vpack.c.b16 %v452, %v450
        %v483 = vpack.c.b16 %v453, %v451
        %v484 = vpack.c.b16 %v456, %v454
        %v485 = vpack.c.b16 %v457, %v455
        %v486 = vpack.c.b16 %v460, %v458
        %v487 = vpack.c.b16 %v461, %v459
        %v488 = vpack.c.b16 %v464, %v462
        %v489 = vpack.c.b16 %v465, %v463
        %v490 = vpack.c.b16 %v468, %v466
        %v491 = vpack.c.b16 %v469, %v467
        %v492 = vpack.c.b16 %v472, %v470
        %v493 = vpack.c.b16 %v473, %v471
        %v494 = vpack.c.b16 %v476, %v474
        %v495 = vpack.c.b16 %v477, %v475
        %v496 = vpack.c.b16 %v480, %v478
        %v497 = vpack.c.b16 %v481, %v479
        %v546 = vunpack.c.l.b16 %v402
        %v547 = vunpack.c.l.b16 %v403
        %v548 = vunpack.c.l.b16 %v404
        %v549 = vunpack.c.l.b16 %v405
        %v550 = vunpack.c.l.b16 %v406
        %v551 = vunpack.c.l.b16 %v407
        %v552 = vunpack.c.l.b16 %v408
        %v553 = vunpack.c.l.b16 %v409
        %v554 = vunpack.c.l.b16 %v410
        %v555 = vunpack.c.l.b16 %v411
        %v556 = vunpack.c.l.b16 %v412
        %v557 = vunpack.c.l.b16 %v413
        %v558 = vunpack.c.l.b16 %v414
        %v559 = vunpack.c.l.b16 %v415
        %v560 = vunpack.c.l.b16 %v416
        %v561 = vunpack.c.l.b16 %v417
        %v562 = vunpack.c.l.b16 %v418
        %v563 = vunpack.c.l.b16 %v419
        %v564 = vunpack.c.l.b16 %v420
        %v565 = vunpack.c.l.b16 %v421
        %v566 = vunpack.c.l.b16 %v422
        %v567 = vunpack.c.l.b16 %v423
        %v568 = vunpack.c.l.b16 %v424
        %v569 = vunpack.c.l.b16 %v425
        %v570 = vunpack.c.l.b16 %v426
        %v571 = vunpack.c.l.b16 %v427
        %v572 = vunpack.c.l.b16 %v428
        %v573 = vunpack.c.l.b16 %v429
        %v574 = vunpack.c.l.b16 %v430
        %v575 = vunpack.c.l.b16 %v431
        %v576 = vunpack.c.l.b16 %v432
        %v577 = vunpack.c.l.b16 %v433
        %v578 = vpack.c.b16 %v547, %v546
        %v579 = vpack.c.b16 %v549, %v548
        %v580 = vpack.c.b16 %v551, %v550
        %v581 = vpack.c.b16 %v553, %v552
        %v582 = vpack.c.b16 %v555, %v554
        %v583 = vpack.c.b16 %v557, %v556
        %v584 = vpack.c.b16 %v559, %v558
        %v585 = vpack.c.b16 %v561, %v560
        %v586 = vpack.c.b16 %v563, %v562
        %v587 = vpack.c.b16 %v565, %v564
        %v588 = vpack.c.b16 %v567, %v566
        %v589 = vpack.c.b16 %v569, %v568
        %v590 = vpack.c.b16 %v571, %v570
        %v591 = vpack.c.b16 %v573, %v572
        %v592 = vpack.c.b16 %v575, %v574
        %v593 = vpack.c.b16 %v577, %v576
        %610 = vmatprep.subr.bf16.mxu0 0
        %611 = vmatpush1.bf16.msra.mxu0 %v585
        %612 = vmatprep.subr.bf16.mxu0 0
        %613 = vmatpush1.bf16.msra.mxu0 %v584
        %614 = vmatprep.subr.bf16.mxu0 0
        %615 = vmatpush1.bf16.msra.mxu0 %v583
        %616 = vmatprep.subr.bf16.mxu0 0
        %617 = vmatpush1.bf16.msra.mxu0 %v582
        %618 = vmatprep.subr.bf16.mxu0 0
        %619 = vmatpush1.bf16.msra.mxu0 %v581
        %620 = vmatprep.subr.bf16.mxu0 0
        %621 = vmatpush1.bf16.msra.mxu0 %v580
        %622 = vmatprep.subr.bf16.mxu0 0
        %623 = vmatpush1.bf16.msra.mxu0 %v579
        %624 = vmatprep.subr.bf16.mxu0 0
        %625 = vmatpush1.bf16.msra.mxu0 %v578
        %626 = vmatprep.subr.bf16.mxu0 0
        %627 = vmatpush2.bf16.msra.mxu0 %v593
        %628 = vmatprep.subr.bf16.mxu0 0
        %629 = vmatpush2.bf16.msra.mxu0 %v592
        %630 = vmatprep.subr.bf16.mxu0 0
        %631 = vmatpush2.bf16.msra.mxu0 %v591
        %632 = vmatprep.subr.bf16.mxu0 0
        %633 = vmatpush2.bf16.msra.mxu0 %v590
        %634 = vmatprep.subr.bf16.mxu0 0
        %635 = vmatpush2.bf16.msra.mxu0 %v589
        %636 = vmatprep.subr.bf16.mxu0 0
        %637 = vmatpush2.bf16.msra.mxu0 %v588
        %638 = vmatprep.subr.bf16.mxu0 0
        %639 = vmatpush2.bf16.msra.mxu0 %v587
        %640 = vmatprep.subr.bf16.mxu0 0
        %641 = vmatpush2.bf16.msra.mxu0 %v586
        %642 = vmatprep.mubr.bf16.mxu0 %v483
        %643 = vmatmul.mubr.bf16.gmra.mxu0 %v482
        %v644 = vpop.f32.mrf.mxu0
        %v645 = vadd.f32 0.0, %v644
        %v646 = vpop.f32.mrf.mxu0
        %v647 = vpop.f32.mrf.mxu0
        %v648 = vadd.f32 0.0, %v647
        %v649 = vpop.f32.mrf.mxu0
        %650 = vmatprep.mubr.bf16.mxu0 %v485
        %651 = vmatmul.mubr.bf16.gmra.mxu0 %v484
        %v652 = vpop.f32.mrf.mxu0
        %v653 = vadd.f32 0.0, %v652
        %v654 = vpop.f32.mrf.mxu0
        %v655 = vpop.f32.mrf.mxu0
        %v656 = vadd.f32 0.0, %v655
        %v657 = vpop.f32.mrf.mxu0
        %658 = vmatprep.mubr.bf16.mxu0 %v487
        %659 = vmatmul.mubr.bf16.gmra.mxu0 %v486
        %v660 = vpop.f32.mrf.mxu0
        %v661 = vadd.f32 0.0, %v660
        %v662 = vpop.f32.mrf.mxu0
        %v663 = vpop.f32.mrf.mxu0
        %v664 = vadd.f32 0.0, %v663
        %v665 = vpop.f32.mrf.mxu0
        %666 = vmatprep.mubr.bf16.mxu0 %v489
        %667 = vmatmul.mubr.bf16.gmra.mxu0 %v488
        %v668 = vpop.f32.mrf.mxu0
        %v669 = vadd.f32 0.0, %v668
        %v670 = vpop.f32.mrf.mxu0
        %v671 = vpop.f32.mrf.mxu0
        %v672 = vadd.f32 0.0, %v671
        %v673 = vpop.f32.mrf.mxu0
        %674 = vmatprep.mubr.bf16.mxu0 %v491
        %675 = vmatmul.mubr.bf16.gmra.mxu0 %v490
        %v676 = vpop.f32.mrf.mxu0
        %v677 = vadd.f32 0.0, %v676
        %v678 = vpop.f32.mrf.mxu0
        %v679 = vpop.f32.mrf.mxu0
        %v680 = vadd.f32 0.0, %v679
        %v681 = vpop.f32.mrf.mxu0
        %682 = vmatprep.mubr.bf16.mxu0 %v493
        %683 = vmatmul.mubr.bf16.gmra.mxu0 %v492
        %v684 = vpop.f32.mrf.mxu0
        %v685 = vadd.f32 0.0, %v684
        %v686 = vpop.f32.mrf.mxu0
        %v687 = vpop.f32.mrf.mxu0
        %v688 = vadd.f32 0.0, %v687
        %v689 = vpop.f32.mrf.mxu0
        %690 = vmatprep.mubr.bf16.mxu0 %v495
        %691 = vmatmul.mubr.bf16.gmra.mxu0 %v494
        %v692 = vpop.f32.mrf.mxu0
        %v693 = vadd.f32 0.0, %v692
        %v694 = vpop.f32.mrf.mxu0
        %v695 = vpop.f32.mrf.mxu0
        %v696 = vadd.f32 0.0, %v695
        %v697 = vpop.f32.mrf.mxu0
        %698 = vmatprep.mubr.bf16.mxu0 %v497
        %699 = vmatmul.mubr.bf16.gmra.mxu0 %v496
        %v700 = vpop.f32.mrf.mxu0
        %v701 = vadd.f32 0.0, %v700
        %v702 = vpop.f32.mrf.mxu0
        %v703 = vpop.f32.mrf.mxu0
        %v704 = vadd.f32 0.0, %v703
        %v705 = vpop.f32.mrf.mxu0
        %706 = vdwg.mxu0
        %v707 = vadd.f32 %v370, %v645
        %v708 = vadd.f32 %v371, %v648
        %v709 = vadd.f32 %v372, %v653
        %v710 = vadd.f32 %v373, %v656
        %v711 = vadd.f32 %v374, %v661
        %v712 = vadd.f32 %v375, %v664
        %v713 = vadd.f32 %v376, %v669
        %v714 = vadd.f32 %v377, %v672
        %v715 = vadd.f32 %v378, %v677
        %v716 = vadd.f32 %v379, %v680
        %v717 = vadd.f32 %v380, %v685
        %v718 = vadd.f32 %v381, %v688
        %v719 = vadd.f32 %v382, %v693
        %v720 = vadd.f32 %v383, %v696
        %v721 = vadd.f32 %v384, %v701
        %v722 = vadd.f32 %v385, %v704
        %723 = vst [vmem:[#allocation2] sm:$0xff] %v707
        %724 = vst [vmem:[#allocation2 + $0x8] sm:$0xff] %v708
        %725 = vst [vmem:[#allocation2 + $0x10] sm:$0xff] %v709
        %726 = vst [vmem:[#allocation2 + $0x18] sm:$0xff] %v710
        %727 = vst [vmem:[#allocation2 + $0x20] sm:$0xff] %v711
        %728 = vst [vmem:[#allocation2 + $0x28] sm:$0xff] %v712
        %729 = vst [vmem:[#allocation2 + $0x30] sm:$0xff] %v713
        %730 = vst [vmem:[#allocation2 + $0x38] sm:$0xff] %v714
        %731 = vst [vmem:[#allocation2 + $0x40] sm:$0xff] %v715
        %732 = vst [vmem:[#allocation2 + $0x48] sm:$0xff] %v716
        %733 = vst [vmem:[#allocation2 + $0x50] sm:$0xff] %v717
        %734 = vst [vmem:[#allocation2 + $0x58] sm:$0xff] %v718
        %735 = vst [vmem:[#allocation2 + $0x60] sm:$0xff] %v719
        %736 = vst [vmem:[#allocation2 + $0x68] sm:$0xff] %v720
        %737 = vst [vmem:[#allocation2 + $0x70] sm:$0xff] %v721
        %738 = vst [vmem:[#allocation2 + $0x78] sm:$0xff] %v722
        %p739 = scmp.eq.s32.totalorder %s21, 1
        // Predicated region
        $region75: #{simple_diffusion_forward.19} parent=65 // pred_check
          %p740 = pneg %p739
        $region76: #{simple_diffusion_forward.19} parent=65 // pred_check_branch
          %742 = sbr.rel (%p740) target = $region78
        $region77: #{simple_diffusion_forward.19} parent=65 // pred_region
          %v743 = vld [vmem:[#allocation2] sm:$0xff]
          %v744 = vld [vmem:[#allocation2 + $0x8] sm:$0xff]
          %v745 = vld [vmem:[#allocation2 + $0x10] sm:$0xff]
          %v746 = vld [vmem:[#allocation2 + $0x18] sm:$0xff]
          %v747 = vld [vmem:[#allocation2 + $0x20] sm:$0xff]
          %v748 = vld [vmem:[#allocation2 + $0x28] sm:$0xff]
          %v749 = vld [vmem:[#allocation2 + $0x30] sm:$0xff]
          %v750 = vld [vmem:[#allocation2 + $0x38] sm:$0xff]
          %v751 = vld [vmem:[#allocation2 + $0x40] sm:$0xff]
          %v752 = vld [vmem:[#allocation2 + $0x48] sm:$0xff]
          %v753 = vld [vmem:[#allocation2 + $0x50] sm:$0xff]
          %v754 = vld [vmem:[#allocation2 + $0x58] sm:$0xff]
          %v755 = vld [vmem:[#allocation2 + $0x60] sm:$0xff]
          %v756 = vld [vmem:[#allocation2 + $0x68] sm:$0xff]
          %v757 = vld [vmem:[#allocation2 + $0x70] sm:$0xff]
          %v758 = vld [vmem:[#allocation2 + $0x78] sm:$0xff]
          %v759 = vld [vmem:[%s339] sm:$0x1]
          %v761 = vlaneseq
          %v762 = vshrl.u32 %v761, 7
          %v763 = vsub.s32 0, %v762
          %v764 = vrot.slane %v759, %v763
          %v766 = vadd.f32 %v743, %v764
          %v767 = vadd.f32 %v744, %v764
          %v768 = vadd.f32 %v745, %v764
          %v769 = vadd.f32 %v746, %v764
          %v770 = vadd.f32 %v747, %v764
          %v771 = vadd.f32 %v748, %v764
          %v772 = vadd.f32 %v749, %v764
          %v773 = vadd.f32 %v750, %v764
          %v774 = vadd.f32 %v751, %v764
          %v775 = vadd.f32 %v752, %v764
          %v776 = vadd.f32 %v753, %v764
          %v777 = vadd.f32 %v754, %v764
          %v778 = vadd.f32 %v755, %v764
          %v779 = vadd.f32 %v756, %v764
          %v780 = vadd.f32 %v757, %v764
          %v781 = vadd.f32 %v758, %v764
          %v782 = vmax.f32 %v766, 0.0
          %v783 = vmax.f32 %v767, 0.0
          %v784 = vmax.f32 %v768, 0.0
          %v785 = vmax.f32 %v769, 0.0
          %v786 = vmax.f32 %v770, 0.0
          %v787 = vmax.f32 %v771, 0.0
          %v788 = vmax.f32 %v772, 0.0
          %v789 = vmax.f32 %v773, 0.0
          %v790 = vmax.f32 %v774, 0.0
          %v791 = vmax.f32 %v775, 0.0
          %v792 = vmax.f32 %v776, 0.0
          %v793 = vmax.f32 %v777, 0.0
          %v794 = vmax.f32 %v778, 0.0
          %v795 = vmax.f32 %v779, 0.0
          %v796 = vmax.f32 %v780, 0.0
          %v797 = vmax.f32 %v781, 0.0
          %798 = vst [vmem:[%s347] sm:$0xff] %v782
          %799 = vst [vmem:[%s347 + $0x8] sm:$0xff] %v783
          %800 = vst [vmem:[%s347 + $0x10] sm:$0xff] %v784
          %801 = vst [vmem:[%s347 + $0x18] sm:$0xff] %v785
          %802 = vst [vmem:[%s347 + $0x20] sm:$0xff] %v786
          %803 = vst [vmem:[%s347 + $0x28] sm:$0xff] %v787
          %804 = vst [vmem:[%s347 + $0x30] sm:$0xff] %v788
          %805 = vst [vmem:[%s347 + $0x38] sm:$0xff] %v789
          %806 = vst [vmem:[%s347 + $0x40] sm:$0xff] %v790
          %807 = vst [vmem:[%s347 + $0x48] sm:$0xff] %v791
          %808 = vst [vmem:[%s347 + $0x50] sm:$0xff] %v792
          %809 = vst [vmem:[%s347 + $0x58] sm:$0xff] %v793
          %810 = vst [vmem:[%s347 + $0x60] sm:$0xff] %v794
          %811 = vst [vmem:[%s347 + $0x68] sm:$0xff] %v795
          %812 = vst [vmem:[%s347 + $0x70] sm:$0xff] %v796
          %813 = vst [vmem:[%s347 + $0x78] sm:$0xff] %v797
        $region78: #{simple_diffusion_forward.19} parent=65 // pred_fallthru
          _
        %s814 = smul.u32 16, %s19
        %p815 = scmp.lt.s32.totalorder %s814, 15
        %s816 = scalar_select %p815, %s814, 15
        %p817 = scmp.lt.s32.totalorder %s20, 0
        %s818 = scalar_select %p817, %s20, 0
        %s819 = sadd.s32 %s818, %s816
        %s820 = smul.addr %s819, 8
        %s821 = scalar_lea.vmem %s3, %s820
        // Predicated region
        $region79: #{simple_diffusion_forward.19} parent=65 // pred_check
          %p822 = pneg %p135
        $region80: #{simple_diffusion_forward.19} parent=65 // pred_check_branch
          %824 = sbr.rel (%p822) target = $region82
        $region81: #{simple_diffusion_forward.19} parent=65 // pred_region
          %s825 = smul.u32 16, %s19
        $region82: #{simple_diffusion_forward.19} parent=65 // pred_fallthru
          _
        // Predicated region
        $region83: #{simple_diffusion_forward.19} parent=65 // pred_check
          %p826 = pneg %p135
        $region84: #{simple_diffusion_forward.19} parent=65 // pred_check_branch
          %828 = sbr.rel (%p826) target = $region86
        $region85: #{simple_diffusion_forward.19} parent=65 // pred_region
          %s829 = smul.u32 16, %s19
          %p830 = scmp.lt.s32.totalorder %s829, 15
          %s831 = scalar_select %p830, %s829, 15
          %p832 = scmp.lt.s32.totalorder %s20, 0
          %s833 = scalar_select %p832, %s20, 0
          %s834 = sadd.s32 %s833, %s831
          %s835 = smul.addr %s834, 8
          %s836 = scalar_lea.vmem %s3, %s835
        $region86: #{simple_diffusion_forward.19} parent=65 // pred_fallthru
          _
      $region66: #{simple_diffusion_forward.19} parent=5 // pred_fallthru
        _
      %p837 = scmp.le.s32.totalorder 2, %s9
      // Predicated region
      $region87: #{simple_diffusion_forward.19} parent=5 // pred_check
        %p838 = pneg %p837
      $region88: #{simple_diffusion_forward.19} parent=5 // pred_check_branch
        %840 = sbr.rel (%p838) target = $region90
      $region89: #{simple_diffusion_forward.19} parent=5 // pred_region
        %s841 = ssub.s32 %s9, 2
      $region90: #{simple_diffusion_forward.19} parent=5 // pred_fallthru
        _
    $region6: #{simple_diffusion_forward.19} parent=1 // loop_footer
      %s13 = sadd.s32 1, %s9
    $region7: #{simple_diffusion_forward.19} parent=1 // loop_footer_branch
      %8 = sbr.rel target = $region3
    $region8: #{simple_diffusion_forward.19} parent=1 // loop_exit
      _

// kernel: simple_diffusion_forward.23
$region0: #{simple_diffusion_forward.23}
  #allocation0 [shape = 'u32[]', space=smem, size = 0x4, offset = 0x4, fixed_abs, tag = 'smem constant byte address 0x4 - core index']
  #allocation1 [shape = 'u32[144,128]{1,0:T(1,128)}', space=vmem, size = 0x12000, scoped, tag = 'internal scratch']
  #allocation2 [shape = 'f32[128,128]{1,0:T(8,128)}', space=vmem, size = 0x10000, scoped, tag = 'scratch operand']
  %s0 = inlined_call_operand.vmem [shape: bf16[512,768], index: 0, kind: input, shape index: {}]
  %s1 = inlined_call_operand.vmem [shape: bf16[768,128], index: 1, kind: input, shape index: {}]
  %s2 = inlined_call_operand.vmem [shape: f32[1,128], index: 2, kind: input, shape index: {}]
  %s3 = inlined_call_operand.vmem [shape: f32[512,128], index: 3, kind: output, shape index: {}]
  %s4 = sld [smem:[#allocation0]]
  $region91: #{simple_diffusion_forward.23} parent=0
    _
  %s6 = ssub.s32 1, %s4
  %s7 = scalar_select 0, %s6, %s4
  $region1: #{simple_diffusion_forward.23} parent=0
    #allocation3 [shape = 'u8[131072]{0}', space=vmem, size = 0x20000, scoped, tag = 'input window, operand 0']
    loop: start=0, step=1, limit=14
    $region2: #{simple_diffusion_forward.23} parent=1 // loop_pre_header
      _
    $region3: #{simple_diffusion_forward.23} parent=1 // loop_header
      %s9 = sphi 0, %s13
      %p10 = scmp.ge.s32.totalorder %s9, 14
      %s16 = sphi 0, %s35
      %s17 = sphi 0, %s31
      %s18 = sphi 0, %s27
      %s19 = sphi 0, %s16
      %s20 = sphi 0, %s17
      %s21 = sphi 0, %s18
      %s22 = sphi 0, %s19
      %s23 = sphi 0, %s20
      %s24 = sphi 0, %s21
      %s40 = sphi 0, %s42
      %s43 = sphi 0, %s40
      %s44 = sphi 0, %s43
      %s60 = sphi 0, %s44
      %s68 = sphi 0, %s70
      %s71 = sphi 0, %s68
      %s72 = sphi 0, %s71
      %s88 = sphi 0, %s72
      %s94 = sphi 0, %s96
      %s97 = sphi 0, %s94
      %s98 = sphi 0, %s97
      %s114 = sphi 0, %s98
      %s122 = sphi 0, %s124
      %s125 = sphi 0, %s122
      %s126 = sphi 0, %s125
      %s142 = sphi 0, %s126
    $region4: #{simple_diffusion_forward.23} parent=1 // loop_header_branch
      %12 = sbr.rel (%p10) target = $region8
    $region5: #{simple_diffusion_forward.23} parent=1 // loop_body
      %s14 = ssub.s32 %s9, 1
      %s15 = ssub.s32 %s9, 2
      %s25 = sadd.s32 1, %s18
      %p26 = scmp.ge.s32.totalorder %s25, 3
      %s27 = scalar_select %p26, 0, %s25
      %s28 = sadd.s32 1, %s17
      %s29 = scalar_select %p26, %s28, %s17
      %p30 = scmp.ge.s32.totalorder %s29, 1
      %s31 = scalar_select %p30, 0, %s29
      %s32 = sadd.s32 1, %s16
      %s33 = scalar_select %p30, %s32, %s16
      %p34 = scmp.ge.s32.totalorder %s33, 4
      %s35 = scalar_select %p34, 0, %s33
      %s36 = ssub.s32 %s16, %s35
      %s37 = ssub.s32 %s18, %s27
      %s38 = sor.u32 %s36, %s37
      %p39 = scmp.eq.s32.totalorder %s38, 0
      %s41 = sadd.s32 %s40, 1
      %s42 = scalar_select %p39, %s40, %s41
      %p45 = pneg %p39
      %p46 = scmp.eq.s32.totalorder %s9, 11
      %p47 = por %p45, %p46
      %p48 = scmp.ne.s32.totalorder %s40, %s43
      %p49 = scmp.eq.s32.totalorder %s9, 0
      %p50 = por %p48, %p49
      %p51 = scmp.ne.s32.totalorder %s40, %s43
      %p52 = scmp.eq.s32.totalorder %s14, 11
      %p53 = por %p51, %p52
      %p54 = scmp.ne.s32.totalorder %s43, %s44
      %p55 = scmp.eq.s32.totalorder %s14, 0
      %p56 = por %p54, %p55
      %p57 = scmp.ne.s32.totalorder %s43, %s44
      %p58 = scmp.eq.s32.totalorder %s15, 11
      %p59 = por %p57, %p58
      %p61 = scmp.ne.s32.totalorder %s44, %s60
      %p62 = scmp.eq.s32.totalorder %s15, 0
      %p63 = por %p61, %p62
      %s64 = ssub.s32 %s18, %s27
      %s65 = ssub.s32 %s17, %s31
      %s66 = sor.u32 %s64, %s65
      %p67 = scmp.eq.s32.totalorder %s66, 0
      %s69 = sadd.s32 %s68, 1
      %s70 = scalar_select %p67, %s68, %s69
      %p73 = pneg %p67
      %p74 = scmp.eq.s32.totalorder %s9, 11
      %p75 = por %p73, %p74
      %p76 = scmp.ne.s32.totalorder %s68, %s71
      %p77 = scmp.eq.s32.totalorder %s9, 0
      %p78 = por %p76, %p77
      %p79 = scmp.ne.s32.totalorder %s68, %s71
      %p80 = scmp.eq.s32.totalorder %s14, 11
      %p81 = por %p79, %p80
      %p82 = scmp.ne.s32.totalorder %s71, %s72
      %p83 = scmp.eq.s32.totalorder %s14, 0
      %p84 = por %p82, %p83
      %p85 = scmp.ne.s32.totalorder %s71, %s72
      %p86 = scmp.eq.s32.totalorder %s15, 11
      %p87 = por %p85, %p86
      %p89 = scmp.ne.s32.totalorder %s72, %s88
      %p90 = scmp.eq.s32.totalorder %s15, 0
      %p91 = por %p89, %p90
      %s92 = ssub.s32 %s17, %s31
      %p93 = scmp.eq.s32.totalorder %s92, 0
      %s95 = sadd.s32 %s94, 1
      %s96 = scalar_select %p93, %s94, %s95
      %p99 = pneg %p93
      %p100 = scmp.eq.s32.totalorder %s9, 11
      %p101 = por %p99, %p100
      %p102 = scmp.ne.s32.totalorder %s94, %s97
      %p103 = scmp.eq.s32.totalorder %s9, 0
      %p104 = por %p102, %p103
      %p105 = scmp.ne.s32.totalorder %s94, %s97
      %p106 = scmp.eq.s32.totalorder %s14, 11
      %p107 = por %p105, %p106
      %p108 = scmp.ne.s32.totalorder %s97, %s98
      %p109 = scmp.eq.s32.totalorder %s14, 0
      %p110 = por %p108, %p109
      %p111 = scmp.ne.s32.totalorder %s97, %s98
      %p112 = scmp.eq.s32.totalorder %s15, 11
      %p113 = por %p111, %p112
      %p115 = scmp.ne.s32.totalorder %s98, %s114
      %p116 = scmp.eq.s32.totalorder %s15, 0
      %p117 = por %p115, %p116
      %s118 = ssub.s32 %s16, %s35
      %s119 = ssub.s32 %s17, %s31
      %s120 = sor.u32 %s118, %s119
      %p121 = scmp.eq.s32.totalorder %s120, 0
      %s123 = sadd.s32 %s122, 1
      %s124 = scalar_select %p121, %s122, %s123
      %p127 = pneg %p121
      %p128 = scmp.eq.s32.totalorder %s9, 11
      %p129 = por %p127, %p128
      %p130 = scmp.ne.s32.totalorder %s122, %s125
      %p131 = scmp.eq.s32.totalorder %s9, 0
      %p132 = por %p130, %p131
      %p133 = scmp.ne.s32.totalorder %s122, %s125
      %p134 = scmp.eq.s32.totalorder %s14, 11
      %p135 = por %p133, %p134
      %p136 = scmp.ne.s32.totalorder %s125, %s126
      %p137 = scmp.eq.s32.totalorder %s14, 0
      %p138 = por %p136, %p137
      %p139 = scmp.ne.s32.totalorder %s125, %s126
      %p140 = scmp.eq.s32.totalorder %s15, 11
      %p141 = por %p139, %p140
      %p143 = scmp.ne.s32.totalorder %s126, %s142
      %p144 = scmp.eq.s32.totalorder %s15, 0
      %p145 = por %p143, %p144
      %p146 = scmp.le.s32.totalorder 1, %s9
      %p147 = scmp.lt.s32.totalorder %s9, 13
      %p148 = pnand %p146, %p147
      %p149 = pneg %p148
      // Predicated region
      $region9: #{simple_diffusion_forward.23} parent=5 // pred_check
        _
      $region10: #{simple_diffusion_forward.23} parent=5 // pred_check_branch
        %151 = sbr.rel (%p148) target = $region12
      $region11: #{simple_diffusion_forward.23} parent=5 // pred_region
        %s152 = ssub.s32 %s9, 1
        // Predicated region
        $region13: #{simple_diffusion_forward.23} parent=11 // pred_check
          %p153 = pneg %p110
        $region14: #{simple_diffusion_forward.23} parent=11 // pred_check_branch
          %155 = sbr.rel (%p153) target = $region16
        $region15: #{simple_diffusion_forward.23} parent=11 // pred_region
          %p156 = scmp.lt.s32.totalorder %s20, 0
          %s157 = scalar_select %p156, %s20, 0
          %s158 = scalar_lea.vmem %s2, %s157
        $region16: #{simple_diffusion_forward.23} parent=11 // pred_fallthru
          _
      $region12: #{simple_diffusion_forward.23} parent=5 // pred_fallthru
        _
      %p159 = scmp.lt.s32.totalorder %s9, 12
      // Predicated region
      $region17: #{simple_diffusion_forward.23} parent=5 // pred_check
        %p160 = pneg %p159
      $region18: #{simple_diffusion_forward.23} parent=5 // pred_check_branch
        %162 = sbr.rel (%p160) target = $region20
      $region19: #{simple_diffusion_forward.23} parent=5 // pred_region
        // Predicated region
        $region21: #{simple_diffusion_forward.23} parent=19 // pred_check
          %p163 = pneg %p50
        $region22: #{simple_diffusion_forward.23} parent=19 // pred_check_branch
          %165 = sbr.rel (%p163) target = $region24
        $region23: #{simple_diffusion_forward.23} parent=19 // pred_region
          %s166 = sand.u32 %s40, 1
          %s167 = sand.u32 %s40, 1
          %s168 = smul.addr %s167, 128
          %s169 = scalar_lea.vmem [#allocation3], %s168
          %s170 = smul.u32 16, %s16
          %s171 = smul.u32 2, %s18
          %s172 = smul.addr %s170, 6
          %s173 = sadd.s32 %s171, %s172
          %s174 = smul.addr %s173, 4
          %s175 = scalar_lea.vmem %s0, %s174
          // Predicated region
          $region25: #{simple_diffusion_forward.23} parent=23 // pred_check
            _
          $region26: #{simple_diffusion_forward.23} parent=23 // pred_check_branch
            %177 = sbr.rel (0) target = $region28
          $region27: #{simple_diffusion_forward.23} parent=23 // pred_region
            // Predicated region
            $region29: #{simple_diffusion_forward.23} parent=27 // pred_check
              _
            $region30: #{simple_diffusion_forward.23} parent=27 // pred_check_branch
              %179 = sbr.rel (0) target = $region32
            $region31: #{simple_diffusion_forward.23} parent=27 // pred_region
              // Predicated region
              $region44: #{simple_diffusion_forward.23} parent=31 // pred_check
                _
              $region45: #{simple_diffusion_forward.23} parent=31 // pred_check_branch
                %225 = sbr.rel (0) target = $region47
              $region46: #{simple_diffusion_forward.23} parent=31 // pred_region
                loop: start=0, step=1, limit=1
                $region48: #{simple_diffusion_forward.23} parent=46 // loop_pre_header
                  _
                $region49: #{simple_diffusion_forward.23} parent=46 // loop_header
                  %s227 = sphi 0, %s231
                  %p228 = scmp.ge.s32.totalorder %s227, 1
                  %s232 = sphi %s175, %s175
                  %s233 = sphi %s169, %s169
                $region50: #{simple_diffusion_forward.23} parent=46 // loop_header_branch
                  %230 = sbr.rel (%p228) target = $region54
                $region51: #{simple_diffusion_forward.23} parent=46 // loop_body
                  %v234 = vld [vmem:[%s232] sm:$0xff]
                  %235 = vst [vmem:[%s233] sm:$0xff] %v234
                  %v236 = vld [vmem:[%s232 + $0x18] sm:$0xff]
                  %237 = vst [vmem:[%s233 + $0x8] sm:$0xff] %v236
                  %v238 = vld [vmem:[%s232 + $0x30] sm:$0xff]
                  %239 = vst [vmem:[%s233 + $0x10] sm:$0xff] %v238
                  %v240 = vld [vmem:[%s232 + $0x48] sm:$0xff]
                  %241 = vst [vmem:[%s233 + $0x18] sm:$0xff] %v240
                  %v242 = vld [vmem:[%s232 + $0x60] sm:$0xff]
                  %243 = vst [vmem:[%s233 + $0x20] sm:$0xff] %v242
                  %v244 = vld [vmem:[%s232 + $0x78] sm:$0xff]
                  %245 = vst [vmem:[%s233 + $0x28] sm:$0xff] %v244
                  %v246 = vld [vmem:[%s232 + $0x90] sm:$0xff]
                  %247 = vst [vmem:[%s233 + $0x30] sm:$0xff] %v246
                  %v248 = vld [vmem:[%s232 + $0xa8] sm:$0xff]
                  %249 = vst [vmem:[%s233 + $0x38] sm:$0xff] %v248
                  %v250 = vld [vmem:[%s232 + $0xc0] sm:$0xff]
                  %251 = vst [vmem:[%s233 + $0x40] sm:$0xff] %v250
                  %v252 = vld [vmem:[%s232 + $0xd8] sm:$0xff]
                  %253 = vst [vmem:[%s233 + $0x48] sm:$0xff] %v252
                  %v254 = vld [vmem:[%s232 + $0xf0] sm:$0xff]
                  %255 = vst [vmem:[%s233 + $0x50] sm:$0xff] %v254
                  %v256 = vld [vmem:[%s232 + $0x108] sm:$0xff]
                  %257 = vst [vmem:[%s233 + $0x58] sm:$0xff] %v256
                  %v258 = vld [vmem:[%s232 + $0x120] sm:$0xff]
                  %259 = vst [vmem:[%s233 + $0x60] sm:$0xff] %v258
                  %v260 = vld [vmem:[%s232 + $0x138] sm:$0xff]
                  %261 = vst [vmem:[%s233 + $0x68] sm:$0xff] %v260
                  %v262 = vld [vmem:[%s232 + $0x150] sm:$0xff]
                  %263 = vst [vmem:[%s233 + $0x70] sm:$0xff] %v262
                  %v264 = vld [vmem:[%s232 + $0x168] sm:$0xff]
                  %265 = vst [vmem:[%s233 + $0x78] sm:$0xff] %v264
                $region52: #{simple_diffusion_forward.23} parent=46 // loop_footer
                  %s231 = sadd.s32 1, %s227
                $region53: #{simple_diffusion_forward.23} parent=46 // loop_footer_branch
                  %226 = sbr.rel target = $region49
                $region54: #{simple_diffusion_forward.23} parent=46 // loop_exit
                  _
              $region47: #{simple_diffusion_forward.23} parent=31 // pred_fallthru
                _
              // Predicated region
              $region55: #{simple_diffusion_forward.23} parent=31 // pred_check
                _
              $region56: #{simple_diffusion_forward.23} parent=31 // pred_check_branch
                %267 = sbr.rel target = $region58
              $region57: #{simple_diffusion_forward.23} parent=31 // pred_region
                _
              $region58: #{simple_diffusion_forward.23} parent=31 // pred_fallthru
                _
            $region32: #{simple_diffusion_forward.23} parent=27 // pred_fallthru
              _
            // Predicated region
            $region33: #{simple_diffusion_forward.23} parent=27 // pred_check
              _
            $region34: #{simple_diffusion_forward.23} parent=27 // pred_check_branch
              %181 = sbr.rel target = $region36
            $region35: #{simple_diffusion_forward.23} parent=27 // pred_region
              %s183 = ssub.s32 256, 1
              loop: start=0, step=1, limit=1
              $region37: #{simple_diffusion_forward.23} parent=35 // loop_pre_header
                _
              $region38: #{simple_diffusion_forward.23} parent=35 // loop_header
                %s185 = sphi 0, %s189
                %p186 = scmp.ge.s32.totalorder %s185, 1
                %s190 = sphi %s175, %s175
                %s191 = sphi %s169, %s169
              $region39: #{simple_diffusion_forward.23} parent=35 // loop_header_branch
                %188 = sbr.rel (%p186) target = $region43
              $region40: #{simple_diffusion_forward.23} parent=35 // loop_body
                %v192 = vld [vmem:[%s190] sm:%s183]
                %193 = vst [vmem:[%s191] sm:%s183] %v192
                %v194 = vld [vmem:[%s190 + $0x18] sm:%s183]
                %195 = vst [vmem:[%s191 + $0x8] sm:%s183] %v194
                %v196 = vld [vmem:[%s190 + $0x30] sm:%s183]
                %197 = vst [vmem:[%s191 + $0x10] sm:%s183] %v196
                %v198 = vld [vmem:[%s190 + $0x48] sm:%s183]
                %199 = vst [vmem:[%s191 + $0x18] sm:%s183] %v198
                %v200 = vld [vmem:[%s190 + $0x60] sm:%s183]
                %201 = vst [vmem:[%s191 + $0x20] sm:%s183] %v200
                %v202 = vld [vmem:[%s190 + $0x78] sm:%s183]
                %203 = vst [vmem:[%s191 + $0x28] sm:%s183] %v202
                %v204 = vld [vmem:[%s190 + $0x90] sm:%s183]
                %205 = vst [vmem:[%s191 + $0x30] sm:%s183] %v204
                %v206 = vld [vmem:[%s190 + $0xa8] sm:%s183]
                %207 = vst [vmem:[%s191 + $0x38] sm:%s183] %v206
                %v208 = vld [vmem:[%s190 + $0xc0] sm:%s183]
                %209 = vst [vmem:[%s191 + $0x40] sm:%s183] %v208
                %v210 = vld [vmem:[%s190 + $0xd8] sm:%s183]
                %211 = vst [vmem:[%s191 + $0x48] sm:%s183] %v210
                %v212 = vld [vmem:[%s190 + $0xf0] sm:%s183]
                %213 = vst [vmem:[%s191 + $0x50] sm:%s183] %v212
                %v214 = vld [vmem:[%s190 + $0x108] sm:%s183]
                %215 = vst [vmem:[%s191 + $0x58] sm:%s183] %v214
                %v216 = vld [vmem:[%s190 + $0x120] sm:%s183]
                %217 = vst [vmem:[%s191 + $0x60] sm:%s183] %v216
                %v218 = vld [vmem:[%s190 + $0x138] sm:%s183]
                %219 = vst [vmem:[%s191 + $0x68] sm:%s183] %v218
                %v220 = vld [vmem:[%s190 + $0x150] sm:%s183]
                %221 = vst [vmem:[%s191 + $0x70] sm:%s183] %v220
                %v222 = vld [vmem:[%s190 + $0x168] sm:%s183]
                %223 = vst [vmem:[%s191 + $0x78] sm:%s183] %v222
              $region41: #{simple_diffusion_forward.23} parent=35 // loop_footer
                %s189 = sadd.s32 1, %s185
              $region42: #{simple_diffusion_forward.23} parent=35 // loop_footer_branch
                %184 = sbr.rel target = $region38
              $region43: #{simple_diffusion_forward.23} parent=35 // loop_exit
                _
            $region36: #{simple_diffusion_forward.23} parent=27 // pred_fallthru
              _
          $region28: #{simple_diffusion_forward.23} parent=23 // pred_fallthru
            _
          %268 = vnop
        $region24: #{simple_diffusion_forward.23} parent=19 // pred_fallthru
          _
        // Predicated region
        $region59: #{simple_diffusion_forward.23} parent=19 // pred_check
          %p269 = pneg %p78
        $region60: #{simple_diffusion_forward.23} parent=19 // pred_check_branch
          %271 = sbr.rel (%p269) target = $region62
        $region61: #{simple_diffusion_forward.23} parent=19 // pred_region
          %s272 = smul.u32 32, %s18
          %p273 = scmp.lt.s32.totalorder %s272, 95
          %s274 = scalar_select %p273, %s272, 95
          %p275 = scmp.lt.s32.totalorder %s17, 0
          %s276 = scalar_select %p275, %s17, 0
          %s277 = sadd.s32 %s276, %s274
          %s278 = smul.addr %s277, 4
          %s279 = scalar_lea.vmem %s1, %s278
          %s280 = smul.u32 32, %s18
        $region62: #{simple_diffusion_forward.23} parent=19 // pred_fallthru
          _
      $region20: #{simple_diffusion_forward.23} parent=5 // pred_fallthru
        _
      %p281 = scmp.le.s32.totalorder 1, %s9
      %p282 = scmp.lt.s32.totalorder %s9, 13
      %p283 = pnand %p281, %p282
      %p284 = pneg %p283
      // Predicated region
      $region63: #{simple_diffusion_forward.23} parent=5 // pred_check
        _
      $region64: #{simple_diffusion_forward.23} parent=5 // pred_check_branch
        %286 = sbr.rel (%p283) target = $region66
      $region65: #{simple_diffusion_forward.23} parent=5 // pred_region
        %s287 = ssub.s32 %s9, 1
        %s288 = sand.u32 %s43, 1
        %s289 = sand.u32 %s43, 1
        %s290 = smul.addr %s289, 128
        %s291 = scalar_lea.vmem [#allocation3], %s290
        // Predicated region
        $region67: #{simple_diffusion_forward.23} parent=65 // pred_check
          %p292 = pneg %p56
        $region68: #{simple_diffusion_forward.23} parent=65 // pred_check_branch
          %294 = sbr.rel (%p292) target = $region70
        $region69: #{simple_diffusion_forward.23} parent=65 // pred_region
          _
        $region70: #{simple_diffusion_forward.23} parent=65 // pred_fallthru
          _
        %s295 = sand.u32 %s43, 1
        %s296 = sand.u32 %s43, 1
        %s297 = smul.addr %s296, 128
        %s298 = scalar_lea.vmem [#allocation3], %s297
        %p299 = pneg %p56
        %p300 = pneg %p53
        %s301 = smul.u32 32, %s21
        %p302 = scmp.lt.s32.totalorder %s301, 95
        %s303 = scalar_select %p302, %s301, 95
        %p304 = scmp.lt.s32.totalorder %s20, 0
        %s305 = scalar_select %p304, %s20, 0
        %s306 = sadd.s32 %s305, %s303
        %s307 = smul.addr %s306, 4
        %s308 = scalar_lea.vmem %s1, %s307
        %p309 = pneg %p84
        %p310 = pneg %p81
        %p311 = scmp.lt.s32.totalorder %s20, 0
        %s312 = scalar_select %p311, %s20, 0
        %s313 = scalar_lea.vmem %s2, %s312
        %p314 = pneg %p110
        %p315 = pneg %p107
        %p316 = pneg %p138
        %p317 = pneg %p135
        %s318 = smul.u32 16, %s19
        %p319 = scmp.lt.s32.totalorder %s318, 63
        %s320 = scalar_select %p319, %s318, 63
        %p321 = scmp.lt.s32.totalorder %s20, 0
        %s322 = scalar_select %p321, %s20, 0
        %s323 = sadd.s32 %s322, %s320
        %s324 = smul.addr %s323, 8
        %s325 = scalar_lea.vmem %s3, %s324
        %s326 = smul.u32 16, %s19
        %s327 = smul.u32 2, %s21
        %s328 = smul.u32 32, %s21
        %p329 = scmp.lt.s32.totalorder %s328, 95
        %s330 = scalar_select %p329, %s328, 95
        %p331 = scmp.lt.s32.totalorder %s20, 0
        %s332 = scalar_select %p331, %s20, 0
        %s333 = sadd.s32 %s332, %s330
        %s334 = smul.addr %s333, 4
        %s335 = scalar_lea.vmem %s1, %s334
        %s336 = smul.u32 32, %s21
        %p337 = scmp.lt.s32.totalorder %s20, 0
        %s338 = scalar_select %p337, %s20, 0
        %s339 = scalar_lea.vmem %s2, %s338
        %s340 = smul.u32 16, %s19
        %p341 = scmp.lt.s32.totalorder %s340, 63
        %s342 = scalar_select %p341, %s340, 63
        %p343 = scmp.lt.s32.totalorder %s20, 0
        %s344 = scalar_select %p343, %s20, 0
        %s345 = sadd.s32 %s344, %s342
        %s346 = smul.addr %s345, 8
        %s347 = scalar_lea.vmem %s3, %s346
        %s348 = smul.u32 16, %s19
        %p350 = scmp.eq.s32.totalorder %s21, 0
        // Predicated region
        $region71: #{simple_diffusion_forward.23} parent=65 // pred_check
          %p351 = pneg %p350
        $region72: #{simple_diffusion_forward.23} parent=65 // pred_check_branch
          %353 = sbr.rel (%p351) target = $region74
        $region73: #{simple_diffusion_forward.23} parent=65 // pred_region
          %354 = vst [vmem:[#allocation2] sm:$0xff] 0.0
          %355 = vst [vmem:[#allocation2 + $0x8] sm:$0xff] 0.0
          %356 = vst [vmem:[#allocation2 + $0x10] sm:$0xff] 0.0
          %357 = vst [vmem:[#allocation2 + $0x18] sm:$0xff] 0.0
          %358 = vst [vmem:[#allocation2 + $0x20] sm:$0xff] 0.0
          %359 = vst [vmem:[#allocation2 + $0x28] sm:$0xff] 0.0
          %360 = vst [vmem:[#allocation2 + $0x30] sm:$0xff] 0.0
          %361 = vst [vmem:[#allocation2 + $0x38] sm:$0xff] 0.0
          %362 = vst [vmem:[#allocation2 + $0x40] sm:$0xff] 0.0
          %363 = vst [vmem:[#allocation2 + $0x48] sm:$0xff] 0.0
          %364 = vst [vmem:[#allocation2 + $0x50] sm:$0xff] 0.0
          %365 = vst [vmem:[#allocation2 + $0x58] sm:$0xff] 0.0
          %366 = vst [vmem:[#allocation2 + $0x60] sm:$0xff] 0.0
          %367 = vst [vmem:[#allocation2 + $0x68] sm:$0xff] 0.0
          %368 = vst [vmem:[#allocation2 + $0x70] sm:$0xff] 0.0
          %369 = vst [vmem:[#allocation2 + $0x78] sm:$0xff] 0.0
        $region74: #{simple_diffusion_forward.23} parent=65 // pred_fallthru
          _
        %v370 = vld [vmem:[#allocation2] sm:$0xff]
        %v371 = vld [vmem:[#allocation2 + $0x8] sm:$0xff]
        %v372 = vld [vmem:[#allocation2 + $0x10] sm:$0xff]
        %v373 = vld [vmem:[#allocation2 + $0x18] sm:$0xff]
        %v374 = vld [vmem:[#allocation2 + $0x20] sm:$0xff]
        %v375 = vld [vmem:[#allocation2 + $0x28] sm:$0xff]
        %v376 = vld [vmem:[#allocation2 + $0x30] sm:$0xff]
        %v377 = vld [vmem:[#allocation2 + $0x38] sm:$0xff]
        %v378 = vld [vmem:[#allocation2 + $0x40] sm:$0xff]
        %v379 = vld [vmem:[#allocation2 + $0x48] sm:$0xff]
        %v380 = vld [vmem:[#allocation2 + $0x50] sm:$0xff]
        %v381 = vld [vmem:[#allocation2 + $0x58] sm:$0xff]
        %v382 = vld [vmem:[#allocation2 + $0x60] sm:$0xff]
        %v383 = vld [vmem:[#allocation2 + $0x68] sm:$0xff]
        %v384 = vld [vmem:[#allocation2 + $0x70] sm:$0xff]
        %v385 = vld [vmem:[#allocation2 + $0x78] sm:$0xff]
        %v386 = vld [vmem:[%s291] sm:$0xff]
        %v387 = vld [vmem:[%s291 + $0x8] sm:$0xff]
        %v388 = vld [vmem:[%s291 + $0x10] sm:$0xff]
        %v389 = vld [vmem:[%s291 + $0x18] sm:$0xff]
        %v390 = vld [vmem:[%s291 + $0x20] sm:$0xff]
        %v391 = vld [vmem:[%s291 + $0x28] sm:$0xff]
        %v392 = vld [vmem:[%s291 + $0x30] sm:$0xff]
        %v393 = vld [vmem:[%s291 + $0x38] sm:$0xff]
        %v394 = vld [vmem:[%s291 + $0x40] sm:$0xff]
        %v395 = vld [vmem:[%s291 + $0x48] sm:$0xff]
        %v396 = vld [vmem:[%s291 + $0x50] sm:$0xff]
        %v397 = vld [vmem:[%s291 + $0x58] sm:$0xff]
        %v398 = vld [vmem:[%s291 + $0x60] sm:$0xff]
        %v399 = vld [vmem:[%s291 + $0x68] sm:$0xff]
        %v400 = vld [vmem:[%s291 + $0x70] sm:$0xff]
        %v401 = vld [vmem:[%s291 + $0x78] sm:$0xff]
        %v402 = vld [vmem:[%s335] sm:$0xf]
        %v403 = vld [vmem:[%s335 + $0x4] sm:$0xf]
        %v404 = vld [vmem:[%s335 + $0x8] sm:$0xf]
        %v405 = vld [vmem:[%s335 + $0xc] sm:$0xf]
        %v406 = vld [vmem:[%s335 + $0x10] sm:$0xf]
        %v407 = vld [vmem:[%s335 + $0x14] sm:$0xf]
        %v408 = vld [vmem:[%s335 + $0x18] sm:$0xf]
        %v409 = vld [vmem:[%s335 + $0x1c] sm:$0xf]
        %v410 = vld [vmem:[%s335 + $0x20] sm:$0xf]
        %v411 = vld [vmem:[%s335 + $0x24] sm:$0xf]
        %v412 = vld [vmem:[%s335 + $0x28] sm:$0xf]
        %v413 = vld [vmem:[%s335 + $0x2c] sm:$0xf]
        %v414 = vld [vmem:[%s335 + $0x30] sm:$0xf]
        %v415 = vld [vmem:[%s335 + $0x34] sm:$0xf]
        %v416 = vld [vmem:[%s335 + $0x38] sm:$0xf]
        %v417 = vld [vmem:[%s335 + $0x3c] sm:$0xf]
        %v418 = vld [vmem:[%s335 + $0x40] sm:$0xf]
        %v419 = vld [vmem:[%s335 + $0x44] sm:$0xf]
        %v420 = vld [vmem:[%s335 + $0x48] sm:$0xf]
        %v421 = vld [vmem:[%s335 + $0x4c] sm:$0xf]
        %v422 = vld [vmem:[%s335 + $0x50] sm:$0xf]
        %v423 = vld [vmem:[%s335 + $0x54] sm:$0xf]
        %v424 = vld [vmem:[%s335 + $0x58] sm:$0xf]
        %v425 = vld [vmem:[%s335 + $0x5c] sm:$0xf]
        %v426 = vld [vmem:[%s335 + $0x60] sm:$0xf]
        %v427 = vld [vmem:[%s335 + $0x64] sm:$0xf]
        %v428 = vld [vmem:[%s335 + $0x68] sm:$0xf]
        %v429 = vld [vmem:[%s335 + $0x6c] sm:$0xf]
        %v430 = vld [vmem:[%s335 + $0x70] sm:$0xf]
        %v431 = vld [vmem:[%s335 + $0x74] sm:$0xf]
        %v432 = vld [vmem:[%s335 + $0x78] sm:$0xf]
        %v433 = vld [vmem:[%s335 + $0x7c] sm:$0xf]
        %v450 = vunpack.c.l.b16 %v386
        %v451 = vunpack.c.h.b16 %v386
        %v452 = vunpack.c.l.b16 %v387
        %v453 = vunpack.c.h.b16 %v387
        %v454 = vunpack.c.l.b16 %v388
        %v455 = vunpack.c.h.b16 %v388
        %v456 = vunpack.c.l.b16 %v389
        %v457 = vunpack.c.h.b16 %v389
        %v458 = vunpack.c.l.b16 %v390
        %v459 = vunpack.c.h.b16 %v390
        %v460 = vunpack.c.l.b16 %v391
        %v461 = vunpack.c.h.b16 %v391
        %v462 = vunpack.c.l.b16 %v392
        %v463 = vunpack.c.h.b16 %v392
        %v464 = vunpack.c.l.b16 %v393
        %v465 = vunpack.c.h.b16 %v393
        %v466 = vunpack.c.l.b16 %v394
        %v467 = vunpack.c.h.b16 %v394
        %v468 = vunpack.c.l.b16 %v395
        %v469 = vunpack.c.h.b16 %v395
        %v470 = vunpack.c.l.b16 %v396
        %v471 = vunpack.c.h.b16 %v396
        %v472 = vunpack.c.l.b16 %v397
        %v473 = vunpack.c.h.b16 %v397
        %v474 = vunpack.c.l.b16 %v398
        %v475 = vunpack.c.h.b16 %v398
        %v476 = vunpack.c.l.b16 %v399
        %v477 = vunpack.c.h.b16 %v399
        %v478 = vunpack.c.l.b16 %v400
        %v479 = vunpack.c.h.b16 %v400
        %v480 = vunpack.c.l.b16 %v401
        %v481 = vunpack.c.h.b16 %v401
        %v482 = vpack.c.b16 %v452, %v450
        %v483 = vpack.c.b16 %v453, %v451
        %v484 = vpack.c.b16 %v456, %v454
        %v485 = vpack.c.b16 %v457, %v455
        %v486 = vpack.c.b16 %v460, %v458
        %v487 = vpack.c.b16 %v461, %v459
        %v488 = vpack.c.b16 %v464, %v462
        %v489 = vpack.c.b16 %v465, %v463
        %v490 = vpack.c.b16 %v468, %v466
        %v491 = vpack.c.b16 %v469, %v467
        %v492 = vpack.c.b16 %v472, %v470
        %v493 = vpack.c.b16 %v473, %v471
        %v494 = vpack.c.b16 %v476, %v474
        %v495 = vpack.c.b16 %v477, %v475
        %v496 = vpack.c.b16 %v480, %v478
        %v497 = vpack.c.b16 %v481, %v479
        %v546 = vunpack.c.l.b16 %v402
        %v547 = vunpack.c.l.b16 %v403
        %v548 = vunpack.c.l.b16 %v404
        %v549 = vunpack.c.l.b16 %v405
        %v550 = vunpack.c.l.b16 %v406
        %v551 = vunpack.c.l.b16 %v407
        %v552 = vunpack.c.l.b16 %v408
        %v553 = vunpack.c.l.b16 %v409
        %v554 = vunpack.c.l.b16 %v410
        %v555 = vunpack.c.l.b16 %v411
        %v556 = vunpack.c.l.b16 %v412
        %v557 = vunpack.c.l.b16 %v413
        %v558 = vunpack.c.l.b16 %v414
        %v559 = vunpack.c.l.b16 %v415
        %v560 = vunpack.c.l.b16 %v416
        %v561 = vunpack.c.l.b16 %v417
        %v562 = vunpack.c.l.b16 %v418
        %v563 = vunpack.c.l.b16 %v419
        %v564 = vunpack.c.l.b16 %v420
        %v565 = vunpack.c.l.b16 %v421
        %v566 = vunpack.c.l.b16 %v422
        %v567 = vunpack.c.l.b16 %v423
        %v568 = vunpack.c.l.b16 %v424
        %v569 = vunpack.c.l.b16 %v425
        %v570 = vunpack.c.l.b16 %v426
        %v571 = vunpack.c.l.b16 %v427
        %v572 = vunpack.c.l.b16 %v428
        %v573 = vunpack.c.l.b16 %v429
        %v574 = vunpack.c.l.b16 %v430
        %v575 = vunpack.c.l.b16 %v431
        %v576 = vunpack.c.l.b16 %v432
        %v577 = vunpack.c.l.b16 %v433
        %v578 = vpack.c.b16 %v547, %v546
        %v579 = vpack.c.b16 %v549, %v548
        %v580 = vpack.c.b16 %v551, %v550
        %v581 = vpack.c.b16 %v553, %v552
        %v582 = vpack.c.b16 %v555, %v554
        %v583 = vpack.c.b16 %v557, %v556
        %v584 = vpack.c.b16 %v559, %v558
        %v585 = vpack.c.b16 %v561, %v560
        %v586 = vpack.c.b16 %v563, %v562
        %v587 = vpack.c.b16 %v565, %v564
        %v588 = vpack.c.b16 %v567, %v566
        %v589 = vpack.c.b16 %v569, %v568
        %v590 = vpack.c.b16 %v571, %v570
        %v591 = vpack.c.b16 %v573, %v572
        %v592 = vpack.c.b16 %v575, %v574
        %v593 = vpack.c.b16 %v577, %v576
        %610 = vmatprep.subr.bf16.mxu0 0
        %611 = vmatpush1.bf16.msra.mxu0 %v585
        %612 = vmatprep.subr.bf16.mxu0 0
        %613 = vmatpush1.bf16.msra.mxu0 %v584
        %614 = vmatprep.subr.bf16.mxu0 0
        %615 = vmatpush1.bf16.msra.mxu0 %v583
        %616 = vmatprep.subr.bf16.mxu0 0
        %617 = vmatpush1.bf16.msra.mxu0 %v582
        %618 = vmatprep.subr.bf16.mxu0 0
        %619 = vmatpush1.bf16.msra.mxu0 %v581
        %620 = vmatprep.subr.bf16.mxu0 0
        %621 = vmatpush1.bf16.msra.mxu0 %v580
        %622 = vmatprep.subr.bf16.mxu0 0
        %623 = vmatpush1.bf16.msra.mxu0 %v579
        %624 = vmatprep.subr.bf16.mxu0 0
        %625 = vmatpush1.bf16.msra.mxu0 %v578
        %626 = vmatprep.subr.bf16.mxu0 0
        %627 = vmatpush2.bf16.msra.mxu0 %v593
        %628 = vmatprep.subr.bf16.mxu0 0
        %629 = vmatpush2.bf16.msra.mxu0 %v592
        %630 = vmatprep.subr.bf16.mxu0 0
        %631 = vmatpush2.bf16.msra.mxu0 %v591
        %632 = vmatprep.subr.bf16.mxu0 0
        %633 = vmatpush2.bf16.msra.mxu0 %v590
        %634 = vmatprep.subr.bf16.mxu0 0
        %635 = vmatpush2.bf16.msra.mxu0 %v589
        %636 = vmatprep.subr.bf16.mxu0 0
        %637 = vmatpush2.bf16.msra.mxu0 %v588
        %638 = vmatprep.subr.bf16.mxu0 0
        %639 = vmatpush2.bf16.msra.mxu0 %v587
        %640 = vmatprep.subr.bf16.mxu0 0
        %641 = vmatpush2.bf16.msra.mxu0 %v586
        %642 = vmatprep.mubr.bf16.mxu0 %v483
        %643 = vmatmul.mubr.bf16.gmra.mxu0 %v482
        %v644 = vpop.f32.mrf.mxu0
        %v645 = vadd.f32 0.0, %v644
        %v646 = vpop.f32.mrf.mxu0
        %v647 = vpop.f32.mrf.mxu0
        %v648 = vadd.f32 0.0, %v647
        %v649 = vpop.f32.mrf.mxu0
        %650 = vmatprep.mubr.bf16.mxu0 %v485
        %651 = vmatmul.mubr.bf16.gmra.mxu0 %v484
        %v652 = vpop.f32.mrf.mxu0
        %v653 = vadd.f32 0.0, %v652
        %v654 = vpop.f32.mrf.mxu0
        %v655 = vpop.f32.mrf.mxu0
        %v656 = vadd.f32 0.0, %v655
        %v657 = vpop.f32.mrf.mxu0
        %658 = vmatprep.mubr.bf16.mxu0 %v487
        %659 = vmatmul.mubr.bf16.gmra.mxu0 %v486
        %v660 = vpop.f32.mrf.mxu0
        %v661 = vadd.f32 0.0, %v660
        %v662 = vpop.f32.mrf.mxu0
        %v663 = vpop.f32.mrf.mxu0
        %v664 = vadd.f32 0.0, %v663
        %v665 = vpop.f32.mrf.mxu0
        %666 = vmatprep.mubr.bf16.mxu0 %v489
        %667 = vmatmul.mubr.bf16.gmra.mxu0 %v488
        %v668 = vpop.f32.mrf.mxu0
        %v669 = vadd.f32 0.0, %v668
        %v670 = vpop.f32.mrf.mxu0
        %v671 = vpop.f32.mrf.mxu0
        %v672 = vadd.f32 0.0, %v671
        %v673 = vpop.f32.mrf.mxu0
        %674 = vmatprep.mubr.bf16.mxu0 %v491
        %675 = vmatmul.mubr.bf16.gmra.mxu0 %v490
        %v676 = vpop.f32.mrf.mxu0
        %v677 = vadd.f32 0.0, %v676
        %v678 = vpop.f32.mrf.mxu0
        %v679 = vpop.f32.mrf.mxu0
        %v680 = vadd.f32 0.0, %v679
        %v681 = vpop.f32.mrf.mxu0
        %682 = vmatprep.mubr.bf16.mxu0 %v493
        %683 = vmatmul.mubr.bf16.gmra.mxu0 %v492
        %v684 = vpop.f32.mrf.mxu0
        %v685 = vadd.f32 0.0, %v684
        %v686 = vpop.f32.mrf.mxu0
        %v687 = vpop.f32.mrf.mxu0
        %v688 = vadd.f32 0.0, %v687
        %v689 = vpop.f32.mrf.mxu0
        %690 = vmatprep.mubr.bf16.mxu0 %v495
        %691 = vmatmul.mubr.bf16.gmra.mxu0 %v494
        %v692 = vpop.f32.mrf.mxu0
        %v693 = vadd.f32 0.0, %v692
        %v694 = vpop.f32.mrf.mxu0
        %v695 = vpop.f32.mrf.mxu0
        %v696 = vadd.f32 0.0, %v695
        %v697 = vpop.f32.mrf.mxu0
        %698 = vmatprep.mubr.bf16.mxu0 %v497
        %699 = vmatmul.mubr.bf16.gmra.mxu0 %v496
        %v700 = vpop.f32.mrf.mxu0
        %v701 = vadd.f32 0.0, %v700
        %v702 = vpop.f32.mrf.mxu0
        %v703 = vpop.f32.mrf.mxu0
        %v704 = vadd.f32 0.0, %v703
        %v705 = vpop.f32.mrf.mxu0
        %706 = vdwg.mxu0
        %v707 = vadd.f32 %v370, %v645
        %v708 = vadd.f32 %v371, %v648
        %v709 = vadd.f32 %v372, %v653
        %v710 = vadd.f32 %v373, %v656
        %v711 = vadd.f32 %v374, %v661
        %v712 = vadd.f32 %v375, %v664
        %v713 = vadd.f32 %v376, %v669
        %v714 = vadd.f32 %v377, %v672
        %v715 = vadd.f32 %v378, %v677
        %v716 = vadd.f32 %v379, %v680
        %v717 = vadd.f32 %v380, %v685
        %v718 = vadd.f32 %v381, %v688
        %v719 = vadd.f32 %v382, %v693
        %v720 = vadd.f32 %v383, %v696
        %v721 = vadd.f32 %v384, %v701
        %v722 = vadd.f32 %v385, %v704
        %723 = vst [vmem:[#allocation2] sm:$0xff] %v707
        %724 = vst [vmem:[#allocation2 + $0x8] sm:$0xff] %v708
        %725 = vst [vmem:[#allocation2 + $0x10] sm:$0xff] %v709
        %726 = vst [vmem:[#allocation2 + $0x18] sm:$0xff] %v710
        %727 = vst [vmem:[#allocation2 + $0x20] sm:$0xff] %v711
        %728 = vst [vmem:[#allocation2 + $0x28] sm:$0xff] %v712
        %729 = vst [vmem:[#allocation2 + $0x30] sm:$0xff] %v713
        %730 = vst [vmem:[#allocation2 + $0x38] sm:$0xff] %v714
        %731 = vst [vmem:[#allocation2 + $0x40] sm:$0xff] %v715
        %732 = vst [vmem:[#allocation2 + $0x48] sm:$0xff] %v716
        %733 = vst [vmem:[#allocation2 + $0x50] sm:$0xff] %v717
        %734 = vst [vmem:[#allocation2 + $0x58] sm:$0xff] %v718
        %735 = vst [vmem:[#allocation2 + $0x60] sm:$0xff] %v719
        %736 = vst [vmem:[#allocation2 + $0x68] sm:$0xff] %v720
        %737 = vst [vmem:[#allocation2 + $0x70] sm:$0xff] %v721
        %738 = vst [vmem:[#allocation2 + $0x78] sm:$0xff] %v722
        %p739 = scmp.eq.s32.totalorder %s21, 2
        // Predicated region
        $region75: #{simple_diffusion_forward.23} parent=65 // pred_check
          %p740 = pneg %p739
        $region76: #{simple_diffusion_forward.23} parent=65 // pred_check_branch
          %742 = sbr.rel (%p740) target = $region78
        $region77: #{simple_diffusion_forward.23} parent=65 // pred_region
          %v743 = vld [vmem:[#allocation2] sm:$0xff]
          %v744 = vld [vmem:[#allocation2 + $0x8] sm:$0xff]
          %v745 = vld [vmem:[#allocation2 + $0x10] sm:$0xff]
          %v746 = vld [vmem:[#allocation2 + $0x18] sm:$0xff]
          %v747 = vld [vmem:[#allocation2 + $0x20] sm:$0xff]
          %v748 = vld [vmem:[#allocation2 + $0x28] sm:$0xff]
          %v749 = vld [vmem:[#allocation2 + $0x30] sm:$0xff]
          %v750 = vld [vmem:[#allocation2 + $0x38] sm:$0xff]
          %v751 = vld [vmem:[#allocation2 + $0x40] sm:$0xff]
          %v752 = vld [vmem:[#allocation2 + $0x48] sm:$0xff]
          %v753 = vld [vmem:[#allocation2 + $0x50] sm:$0xff]
          %v754 = vld [vmem:[#allocation2 + $0x58] sm:$0xff]
          %v755 = vld [vmem:[#allocation2 + $0x60] sm:$0xff]
          %v756 = vld [vmem:[#allocation2 + $0x68] sm:$0xff]
          %v757 = vld [vmem:[#allocation2 + $0x70] sm:$0xff]
          %v758 = vld [vmem:[#allocation2 + $0x78] sm:$0xff]
          %v759 = vld [vmem:[%s339] sm:$0x1]
          %v761 = vlaneseq
          %v762 = vshrl.u32 %v761, 7
          %v763 = vsub.s32 0, %v762
          %v764 = vrot.slane %v759, %v763
          %v766 = vadd.f32 %v743, %v764
          %v767 = vadd.f32 %v744, %v764
          %v768 = vadd.f32 %v745, %v764
          %v769 = vadd.f32 %v746, %v764
          %v770 = vadd.f32 %v747, %v764
          %v771 = vadd.f32 %v748, %v764
          %v772 = vadd.f32 %v749, %v764
          %v773 = vadd.f32 %v750, %v764
          %v774 = vadd.f32 %v751, %v764
          %v775 = vadd.f32 %v752, %v764
          %v776 = vadd.f32 %v753, %v764
          %v777 = vadd.f32 %v754, %v764
          %v778 = vadd.f32 %v755, %v764
          %v779 = vadd.f32 %v756, %v764
          %v780 = vadd.f32 %v757, %v764
          %v781 = vadd.f32 %v758, %v764
          %v782 = vxor.u32 %v766, 2147483648
          %v783 = vxor.u32 %v767, 2147483648
          %v784 = vxor.u32 %v768, 2147483648
          %v785 = vxor.u32 %v769, 2147483648
          %v786 = vxor.u32 %v770, 2147483648
          %v787 = vxor.u32 %v771, 2147483648
          %v788 = vxor.u32 %v772, 2147483648
          %v789 = vxor.u32 %v773, 2147483648
          %v790 = vxor.u32 %v774, 2147483648
          %v791 = vxor.u32 %v775, 2147483648
          %v792 = vxor.u32 %v776, 2147483648
          %v793 = vxor.u32 %v777, 2147483648
          %v794 = vxor.u32 %v778, 2147483648
          %v795 = vxor.u32 %v779, 2147483648
          %v796 = vxor.u32 %v780, 2147483648
          %v797 = vxor.u32 %v781, 2147483648
          %v798 = vmul.f32 %v782, 1.442695
          %v799 = vpow.pop %v798
          %v800 = vmul.f32 %v783, 1.442695
          %v801 = vpow.pop %v800
          %v802 = vmul.f32 %v784, 1.442695
          %v803 = vpow.pop %v802
          %v804 = vmul.f32 %v785, 1.442695
          %v805 = vpow.pop %v804
          %v806 = vmul.f32 %v786, 1.442695
          %v807 = vpow.pop %v806
          %v808 = vmul.f32 %v787, 1.442695
          %v809 = vpow.pop %v808
          %v810 = vmul.f32 %v788, 1.442695
          %v811 = vpow.pop %v810
          %v812 = vmul.f32 %v789, 1.442695
          %v813 = vpow.pop %v812
          %v814 = vmul.f32 %v790, 1.442695
          %v815 = vpow.pop %v814
          %v816 = vmul.f32 %v791, 1.442695
          %v817 = vpow.pop %v816
          %v818 = vmul.f32 %v792, 1.442695
          %v819 = vpow.pop %v818
          %v820 = vmul.f32 %v793, 1.442695
          %v821 = vpow.pop %v820
          %v822 = vmul.f32 %v794, 1.442695
          %v823 = vpow.pop %v822
          %v824 = vmul.f32 %v795, 1.442695
          %v825 = vpow.pop %v824
          %v826 = vmul.f32 %v796, 1.442695
          %v827 = vpow.pop %v826
          %v828 = vmul.f32 %v797, 1.442695
          %v829 = vpow.pop %v828
          %v830 = vadd.f32 %v799, 1.0
          %v831 = vadd.f32 %v801, 1.0
          %v832 = vadd.f32 %v803, 1.0
          %v833 = vadd.f32 %v805, 1.0
          %v834 = vadd.f32 %v807, 1.0
          %v835 = vadd.f32 %v809, 1.0
          %v836 = vadd.f32 %v811, 1.0
          %v837 = vadd.f32 %v813, 1.0
          %v838 = vadd.f32 %v815, 1.0
          %v839 = vadd.f32 %v817, 1.0
          %v840 = vadd.f32 %v819, 1.0
          %v841 = vadd.f32 %v821, 1.0
          %v842 = vadd.f32 %v823, 1.0
          %v843 = vadd.f32 %v825, 1.0
          %v844 = vadd.f32 %v827, 1.0
          %v845 = vadd.f32 %v829, 1.0
          %v846 = vrcp.pop %v830
          %v847 = vmul.f32 1.0, %v846
          %v848 = vrcp.pop %v831
          %v849 = vmul.f32 1.0, %v848
          %v850 = vrcp.pop %v832
          %v851 = vmul.f32 1.0, %v850
          %v852 = vrcp.pop %v833
          %v853 = vmul.f32 1.0, %v852
          %v854 = vrcp.pop %v834
          %v855 = vmul.f32 1.0, %v854
          %v856 = vrcp.pop %v835
          %v857 = vmul.f32 1.0, %v856
          %v858 = vrcp.pop %v836
          %v859 = vmul.f32 1.0, %v858
          %v860 = vrcp.pop %v837
          %v861 = vmul.f32 1.0, %v860
          %v862 = vrcp.pop %v838
          %v863 = vmul.f32 1.0, %v862
          %v864 = vrcp.pop %v839
          %v865 = vmul.f32 1.0, %v864
          %v866 = vrcp.pop %v840
          %v867 = vmul.f32 1.0, %v866
          %v868 = vrcp.pop %v841
          %v869 = vmul.f32 1.0, %v868
          %v870 = vrcp.pop %v842
          %v871 = vmul.f32 1.0, %v870
          %v872 = vrcp.pop %v843
          %v873 = vmul.f32 1.0, %v872
          %v874 = vrcp.pop %v844
          %v875 = vmul.f32 1.0, %v874
          %v876 = vrcp.pop %v845
          %v877 = vmul.f32 1.0, %v876
          %878 = vst [vmem:[%s347] sm:$0xff] %v847
          %879 = vst [vmem:[%s347 + $0x8] sm:$0xff] %v849
          %880 = vst [vmem:[%s347 + $0x10] sm:$0xff] %v851
          %881 = vst [vmem:[%s347 + $0x18] sm:$0xff] %v853
          %882 = vst [vmem:[%s347 + $0x20] sm:$0xff] %v855
          %883 = vst [vmem:[%s347 + $0x28] sm:$0xff] %v857
          %884 = vst [vmem:[%s347 + $0x30] sm:$0xff] %v859
          %885 = vst [vmem:[%s347 + $0x38] sm:$0xff] %v861
          %886 = vst [vmem:[%s347 + $0x40] sm:$0xff] %v863
          %887 = vst [vmem:[%s347 + $0x48] sm:$0xff] %v865
          %888 = vst [vmem:[%s347 + $0x50] sm:$0xff] %v867
          %889 = vst [vmem:[%s347 + $0x58] sm:$0xff] %v869
          %890 = vst [vmem:[%s347 + $0x60] sm:$0xff] %v871
          %891 = vst [vmem:[%s347 + $0x68] sm:$0xff] %v873
          %892 = vst [vmem:[%s347 + $0x70] sm:$0xff] %v875
          %893 = vst [vmem:[%s347 + $0x78] sm:$0xff] %v877
        $region78: #{simple_diffusion_forward.23} parent=65 // pred_fallthru
          _
        %s894 = smul.u32 16, %s19
        %p895 = scmp.lt.s32.totalorder %s894, 63
        %s896 = scalar_select %p895, %s894, 63
        %p897 = scmp.lt.s32.totalorder %s20, 0
        %s898 = scalar_select %p897, %s20, 0
        %s899 = sadd.s32 %s898, %s896
        %s900 = smul.addr %s899, 8
        %s901 = scalar_lea.vmem %s3, %s900
        // Predicated region
        $region79: #{simple_diffusion_forward.23} parent=65 // pred_check
          %p902 = pneg %p135
        $region80: #{simple_diffusion_forward.23} parent=65 // pred_check_branch
          %904 = sbr.rel (%p902) target = $region82
        $region81: #{simple_diffusion_forward.23} parent=65 // pred_region
          %s905 = smul.u32 16, %s19
        $region82: #{simple_diffusion_forward.23} parent=65 // pred_fallthru
          _
      $region66: #{simple_diffusion_forward.23} parent=5 // pred_fallthru
        _
      %p906 = scmp.le.s32.totalorder 2, %s9
      // Predicated region
      $region83: #{simple_diffusion_forward.23} parent=5 // pred_check
        %p907 = pneg %p906
      $region84: #{simple_diffusion_forward.23} parent=5 // pred_check_branch
        %909 = sbr.rel (%p907) target = $region86
      $region85: #{simple_diffusion_forward.23} parent=5 // pred_region
        %s910 = ssub.s32 %s9, 2
        // Predicated region
        $region87: #{simple_diffusion_forward.23} parent=85 // pred_check
          %p911 = pneg %p141
        $region88: #{simple_diffusion_forward.23} parent=85 // pred_check_branch
          %913 = sbr.rel (%p911) target = $region90
        $region89: #{simple_diffusion_forward.23} parent=85 // pred_region
          %s914 = smul.u32 16, %s22
          %p915 = scmp.lt.s32.totalorder %s914, 63
          %s916 = scalar_select %p915, %s914, 63
          %p917 = scmp.lt.s32.totalorder %s23, 0
          %s918 = scalar_select %p917, %s23, 0
          %s919 = sadd.s32 %s918, %s916
          %s920 = smul.addr %s919, 8
          %s921 = scalar_lea.vmem %s3, %s920
        $region90: #{simple_diffusion_forward.23} parent=85 // pred_fallthru
          _
      $region86: #{simple_diffusion_forward.23} parent=5 // pred_fallthru
        _
    $region6: #{simple_diffusion_forward.23} parent=1 // loop_footer
      %s13 = sadd.s32 1, %s9
    $region7: #{simple_diffusion_forward.23} parent=1 // loop_footer_branch
      %8 = sbr.rel target = $region3
    $region8: #{simple_diffusion_forward.23} parent=1 // loop_exit
      _

</llo_original>
